<compile_context>
chip_gen: v5e
topology: v5e:2x2
jax: 0.10.0
libtpu: 0.0.40
codegen_flags: <defaults>
</compile_context>

<pallas_src>
import functools

import jax
import jax.numpy as jnp
from jax.experimental import pallas as pl
from jax.experimental.pallas import tpu as pltpu


def _round_up(x, m):
    return ((x + m - 1) // m) * m


def _vmem_phys_bytes():
    """Physical VMEM per core (trace-time query; conservative fallback)."""
    try:
        return int(pltpu.get_tpu_info().vmem_capacity_bytes)
    except Exception:
        return 64 << 20          # v7x-sized fallback: safe on every generation


def _vmem_limit(byte_counts, phys_bytes):
    # 3x the single-buffer block footprint (covers double buffering + fp32
    # intermediates) + headroom for Mosaic internal scratch; capped at 3/4 of
    # physical VMEM (~48 MiB on v7x, ~96 MiB on v5e/v6e).  No artificial floor.
    est = 3 * sum(int(b) for b in byte_counts) + (8 << 20)
    cap = (int(phys_bytes) * 3) // 4
    return int(min(est, cap))


# ---------------------------------------------------------------------------
# Pass 0: layers 0 and 1 (Linear + tanh), run once per forward (no grid).
# ---------------------------------------------------------------------------
def _mlp_head_kernel(x_ref, w0_ref, b0_ref, w1_ref, b1_ref, h1_ref):
    h0 = jnp.tanh(jnp.dot(x_ref[...], w0_ref[...],
                          preferred_element_type=jnp.float32) + b0_ref[...])
    h1 = jnp.tanh(jnp.dot(h0.astype(jnp.bfloat16), w1_ref[...],
                          preferred_element_type=jnp.float32) + b1_ref[...])
    h1_ref[...] = h1.astype(jnp.bfloat16)


# ---------------------------------------------------------------------------
# Pass 1: layer 2 on one (1024, tile_n) slice of W2 + per-tile masked min/max.
# ---------------------------------------------------------------------------
def _fcgen_tile_kernel(h1_ref, w2_ref, b2_ref, h2_ref, tmin_ref, tmax_ref,
                       *, valid_rows, out_dim, tile_n):
    j = pl.program_id(0)
    h2 = jnp.tanh(jnp.dot(h1_ref[...], w2_ref[...],
                          preferred_element_type=jnp.float32) + b2_ref[...])
    h2_b = h2.astype(jnp.bfloat16)          # bf16 intermediate -> fewer HBM bytes
    h2_ref[...] = h2_b

    # min/max over *valid* (unpadded) rows/cols, computed on the SAME
    # bf16-rounded values pass 2 reads so the rescale stays within [0, 255].
    h2_v = h2_b.astype(jnp.float32)
    rows = jax.lax.broadcasted_iota(jnp.int32, h2_v.shape, 0)
    cols = j * tile_n + jax.lax.broadcasted_iota(jnp.int32, h2_v.shape, 1)
    valid = (rows < valid_rows) & (cols < out_dim)
    tmin = jnp.min(jnp.where(valid, h2_v, jnp.inf))
    tmax = jnp.max(jnp.where(valid, h2_v, -jnp.inf))
    # Lane-aligned (8,128) broadcast blocks -> unmasked stores.
    tmin_ref[...] = jnp.broadcast_to(tmin, tmin_ref.shape)
    tmax_ref[...] = jnp.broadcast_to(tmax, tmax_ref.shape)


# ---------------------------------------------------------------------------
# Pass 2: global rescale to [0, 255]:  (h2 - min) * (255 / (max - min)).
# ---------------------------------------------------------------------------
def _rescale_kernel(h2_ref, mn_ref, scale_ref, o_ref):
    # min and precomputed scale arrive as SMEM scalars (no padded VMEM tile).
    mn = mn_ref[0]
    scale = scale_ref[0]
    o_ref[...] = (h2_ref[...].astype(jnp.float32) - mn) * scale


# ---------------------------------------------------------------------------
# Wrapper
# ---------------------------------------------------------------------------
def fully_connected_generator_forward(x, params, channels, height, width):
    """x: (B, latent) float32.  Returns (B, C, H, W) float32 in [0, 255]."""
    # TODO(synk): Generator.batch_norm (LazyBatchNorm2d) branch not implemented
    # — the module default is batch_norm=False, which is what this matches.
    w0, b0, w1, b1, w2, b2 = params
    B, latent = x.shape
    d0 = w0.shape[1]                      # 512
    d1 = w1.shape[1]                      # 1024
    out_dim = channels * height * width
    assert w2.shape == (d1, out_dim)

    phys_vmem = _vmem_phys_bytes()

    # ---- padding / tiling ---------------------------------------------------
    # bf16 packs 16 rows per sublane tile -> pad batch to a multiple of 16.
    # Callers who care about MXU efficiency should batch to M>=128 (v5e) /
    # M>=256 (v6e/v7x); at small B the kernel is W2-DMA bound anyway.
    b_pad = _round_up(max(B, 16), 16)
    # N tile for streaming W2: as large as the generation's VMEM allows
    # (2048 on 64 MiB v7x, 4096 on 128 MiB v5e/v6e), but force >=2 tiles when
    # out_dim allows so the v7x megacore can shard the "parallel" N axis.
    cap_n = 4096 if phys_vmem >= (100 << 20) else 2048
    tile_n = min(_round_up(out_dim, 128), cap_n)
    if out_dim > 128:
        tile_n = min(tile_n, max(_round_up(pl.cdiv(out_dim, 2), 128), 128))
    n_pad = _round_up(out_dim, tile_n)
    n_tiles = n_pad // tile_n

    # ---- operand prep: bf16 matmul operands, fp32 for bias / rescale ---------
    x_p = jnp.zeros((b_pad, latent), jnp.bfloat16).at[:B].set(
        x.astype(jnp.bfloat16))
    w0_b = w0.astype(jnp.bfloat16)
    w1_b = w1.astype(jnp.bfloat16)
    # TODO(synk): int8 W2 (fp8 on v7x) with per-column scales would halve the
    # dominant HBM stream; kept bf16 here to preserve accuracy.
    w2_b = jnp.zeros((d1, n_pad), jnp.bfloat16).at[:, :out_dim].set(
        w2.astype(jnp.bfloat16))
    b2_p = jnp.zeros((1, n_pad), jnp.float32).at[:, :out_dim].set(b2)

    # ---- pass 0: layers 0/1 computed once (hoisted out of the N stream) ------
    h1 = pl.pallas_call(
        _mlp_head_kernel,
        out_shape=jax.ShapeDtypeStruct((b_pad, d1), jnp.bfloat16),
    )(x_p, w0_b, b0, w1_b, b1)

    # ---- pass 1: layer 2, W2 streamed over the N grid -------------------------
    kernel1 = functools.partial(
        _fcgen_tile_kernel, valid_rows=B, out_dim=out_dim, tile_n=tile_n)
    vmem1 = _vmem_limit(
        [b_pad * d1 * 2,            # h1 (grid-invariant)
         d1 * tile_n * 2,           # W2 tile (bf16)
         tile_n * 4,                # b2 tile
         b_pad * tile_n * 2,        # h2 output tile (bf16)
         2 * 8 * 128 * 4],          # min/max blocks
        phys_vmem)

    h2_raw, tmins, tmaxs = pl.pallas_call(
        kernel1,
        out_shape=(
            jax.ShapeDtypeStruct((b_pad, n_pad), jnp.bfloat16),     # raw tanh
            jax.ShapeDtypeStruct((n_tiles * 8, 128), jnp.float32),  # tile mins
            jax.ShapeDtypeStruct((n_tiles * 8, 128), jnp.float32),  # tile maxs
        ),
        grid_spec=pltpu.PrefetchScalarGridSpec(
            num_scalar_prefetch=0,
            grid=(n_tiles,),
            in_specs=[
                pl.BlockSpec((b_pad, d1), lambda j: (0, 0)),         # h1 (invariant)
                pl.BlockSpec((d1, tile_n), lambda j: (0, j),         # W2: streamed,
                             pipeline_mode=pl.Buffered(2)),          # double-buffered
                pl.BlockSpec((1, tile_n), lambda j: (0, j)),         # b2 tile
            ],
            out_specs=(
                pl.BlockSpec((b_pad, tile_n), lambda j: (0, j)),
                pl.BlockSpec((8, 128), lambda j: (j, 0)),
                pl.BlockSpec((8, 128), lambda j: (j, 0)),
            ),
        ),
        compiler_params=pltpu.CompilerParams(
            dimension_semantics=("parallel",),   # independent N tiles -> megacore
            vmem_limit_bytes=vmem1,
        ),
    )(h1, w2_b, b2_p)

    # ---- tiny cross-tile reduction to the global min / scale (plain JAX) ------
    mn = jnp.min(tmins)
    mx = jnp.max(tmaxs)
    # NOTE: mx == mn yields inf/NaN, matching the PyTorch reference.
    scale = jnp.float32(255.0) / (mx - mn)
    mn_arr = mn.reshape(1).astype(jnp.float32)
    scale_arr = scale.reshape(1).astype(jnp.float32)

    # ---- pass 2: mem-bound global rescale, blocks decoupled from pass 1 -------
    # Merge as many pass-1 N tiles per block as fit a ~4 MiB traffic budget
    # (bf16 read + fp32 write = 6 B/elem); k chosen to divide n_tiles exactly.
    budget_elems = (4 << 20) // 6
    kmax = max(1, budget_elems // max(1, b_pad * tile_n))
    k = 1
    for cand in range(min(kmax, n_tiles), 0, -1):
        if n_tiles % cand == 0:
            k = cand
            break
    tile2_n = tile_n * k
    grid2 = n_tiles // k
    vmem2 = _vmem_limit(
        [b_pad * tile2_n * 2, b_pad * tile2_n * 4, 64], phys_vmem)

    scaled = pl.pallas_call(
        _rescale_kernel,
        out_shape=jax.ShapeDtypeStruct((b_pad, n_pad), jnp.float32),
        grid_spec=pltpu.PrefetchScalarGridSpec(
            num_scalar_prefetch=0,
            grid=(grid2,),
            in_specs=[
                pl.BlockSpec((b_pad, tile2_n), lambda j: (0, j)),
                pl.BlockSpec(memory_space=pltpu.MemorySpace.SMEM),   # min
                pl.BlockSpec(memory_space=pltpu.MemorySpace.SMEM),   # scale
            ],
            out_specs=pl.BlockSpec((b_pad, tile2_n), lambda j: (0, j)),
        ),
        compiler_params=pltpu.CompilerParams(
            dimension_semantics=("parallel",),
            vmem_limit_bytes=vmem2,
        ),
    )(h2_raw, mn_arr, scale_arr)

    # Generator.forward reshape to NCHW — glue, stays in plain JAX.
    # (Padded rows/cols contain garbage; they are sliced off here.)
    return scaled[:B, :out_dim].reshape(B, channels, height, width)


# ---------------------------------------------------------------------------
# Params / reference / demo
# ---------------------------------------------------------------------------
def init_params(key, latent_dim, channels, height, width):
    """PyTorch-Linear-style init U(-1/sqrt(in), 1/sqrt(in)); weights stored
    (in_features, out_features); biases stored (1, out_features); fp32 masters."""
    dims = [(latent_dim, 512), (512, 1024), (1024, channels * height * width)]
    params = []
    for fan_in, fan_out in dims:
        key, kw, kb = jax.random.split(key, 3)
        bound = 1.0 / jnp.sqrt(float(fan_in))
        w = jax.random.uniform(kw, (fan_in, fan_out), jnp.float32, -bound, bound)
        b = jax.random.uniform(kb, (1, fan_out), jnp.float32, -bound, bound)
        params.extend([w, b])
    return tuple(params)


def reference_forward(x, params, channels, height, width):
    """Pure-JAX fp32 reference of the PyTorch forward."""
    w0, b0, w1, b1, w2, b2 = params
    h = jnp.tanh(x @ w0 + b0)
    h = jnp.tanh(h @ w1 + b1)
    h = jnp.tanh(h @ w2 + b2)
    mn, mx = jnp.min(h), jnp.max(h)
    h = (h - mn) / (mx - mn) * 255.0
    return h.reshape(x.shape[0], channels, height, width)


if __name__ == "__main__":
    # Small shapes consistent with the module (latent=128; widths 512/1024;
    # layer_2_out = C*H*W).  B and C*H*W are deliberately NOT tile multiples so
    # the padding + masked-min/max path (and the 2-tile megacore path) runs.
    B, C, H, W = 6, 1, 12, 16          # out_dim = 192 -> two 128-wide N tiles
    LATENT = 128

    key = jax.random.PRNGKey(0)
    key, kx = jax.random.split(key)
    x = jax.random.normal(kx, (B, LATENT), jnp.float32)
    params = init_params(key, LATENT, C, H, W)

    fwd = jax.jit(fully_connected_generator_forward, static_argnums=(2, 3, 4))
    out = jax.block_until_ready(fwd(x, params, C, H, W))

    assert out.shape == (B, C, H, W), out.shape
    assert out.dtype == jnp.float32
    # scaled to [0, 255]
    assert float(jnp.min(out)) >= -1e-3 and float(jnp.max(out)) <= 255.0 + 1e-3
    # loose tolerance vs fp32 reference (bf16 matmul operands + bf16 h2 storage)
    ref = reference_forward(x, params, C, H, W)
    max_err = float(jnp.max(jnp.abs(out - ref)))
    assert max_err < 10.0, f"max abs err {max_err}"

    print("KERNEL_OK")
</pallas_src>

<mosaic_0001>
module attributes {stable_mosaic.version = 11 : i64} {
  func.func @_mlp_head_kernel(%arg0: memref<16x128xbf16, #tpu.memory_space<vmem>>, %arg1: memref<128x512xbf16, #tpu.memory_space<vmem>>, %arg2: memref<1x512xf32, #tpu.memory_space<vmem>>, %arg3: memref<512x1024xbf16, #tpu.memory_space<vmem>>, %arg4: memref<1x1024xf32, #tpu.memory_space<vmem>>, %arg5: memref<16x1024xbf16, #tpu.memory_space<vmem>>) attributes {dimension_semantics = [], scalar_prefetch = 0 : i64, scratch_operands = 0 : i64, tpu.core_type = #tpu.core_type<tc>} {
    %c0 = arith.constant 0 : index
    %c0_0 = arith.constant 0 : index
    %0 = vector.load %arg0[%c0, %c0_0] : memref<16x128xbf16, #tpu.memory_space<vmem>>, vector<16x128xbf16>
    %c0_1 = arith.constant 0 : index
    %c0_2 = arith.constant 0 : index
    %1 = vector.load %arg1[%c0_1, %c0_2] : memref<128x512xbf16, #tpu.memory_space<vmem>>, vector<128x512xbf16>
    %cst = arith.constant dense<0.000000e+00> : vector<16x512xf32>
    %2 = tpu.matmul %0, %1, %cst {dimension_numbers = #tpu.dot_dimension_numbers<[1], [0], [0], [1], [0, 0, 1, 1], [], []>} : vector<16x128xbf16>, vector<128x512xbf16>, vector<16x512xf32> -> vector<16x512xf32>
    %c0_3 = arith.constant 0 : index
    %c0_4 = arith.constant 0 : index
    %3 = vector.load %arg2[%c0_3, %c0_4] : memref<1x512xf32, #tpu.memory_space<vmem>>, vector<1x512xf32>
    %4 = vector.broadcast %3 : vector<1x512xf32> to vector<16x512xf32>
    %5 = arith.addf %2, %4 : vector<16x512xf32>
    %6 = math.tanh %5 : vector<16x512xf32>
    %7 = arith.truncf %6 : vector<16x512xf32> to vector<16x512xbf16>
    %c0_5 = arith.constant 0 : index
    %c0_6 = arith.constant 0 : index
    %8 = vector.load %arg3[%c0_5, %c0_6] : memref<512x1024xbf16, #tpu.memory_space<vmem>>, vector<512x1024xbf16>
    %cst_7 = arith.constant dense<0.000000e+00> : vector<16x1024xf32>
    %9 = tpu.matmul %7, %8, %cst_7 {dimension_numbers = #tpu.dot_dimension_numbers<[1], [0], [0], [1], [0, 0, 1, 1], [], []>} : vector<16x512xbf16>, vector<512x1024xbf16>, vector<16x1024xf32> -> vector<16x1024xf32>
    %c0_8 = arith.constant 0 : index
    %c0_9 = arith.constant 0 : index
    %10 = vector.load %arg4[%c0_8, %c0_9] : memref<1x1024xf32, #tpu.memory_space<vmem>>, vector<1x1024xf32>
    %11 = vector.broadcast %10 : vector<1x1024xf32> to vector<16x1024xf32>
    %12 = arith.addf %9, %11 : vector<16x1024xf32>
    %13 = math.tanh %12 : vector<16x1024xf32>
    %14 = arith.truncf %13 : vector<16x1024xf32> to vector<16x1024xbf16>
    %c0_10 = arith.constant 0 : index
    %c0_11 = arith.constant 0 : index
    %15 = vector.load %arg5[%c0_10, %c0_11] : memref<16x1024xbf16, #tpu.memory_space<vmem>>, vector<16x1024xbf16>
    tpu.vector_store %arg5[%c0_10, %c0_11], %14 {strides = array<i32>} : memref<16x1024xbf16, #tpu.memory_space<vmem>>, vector<16x1024xbf16>,
    return
  }
}

module attributes {stable_mosaic.version = 11 : i64} {
  func.func @_fcgen_tile_kernel(%arg0: i32, %arg1: memref<16x1024xbf16, #tpu.memory_space<vmem>>, %arg2: memref<1024x128xbf16, #tpu.memory_space<vmem>>, %arg3: memref<1x128xf32, #tpu.memory_space<vmem>>, %arg4: memref<16x128xbf16, #tpu.memory_space<vmem>>, %arg5: memref<8x128xf32, #tpu.memory_space<vmem>>, %arg6: memref<8x128xf32, #tpu.memory_space<vmem>>) attributes {dimension_semantics = [#tpu.dimension_semantics<parallel>], iteration_bounds = array<i64: 2>, scalar_prefetch = 0 : i64, scratch_operands = 0 : i64, tpu.core_type = #tpu.core_type<tc>, window_params = [{pipeline_mode = #tpu.pipeline_mode<synchronous>, transform_indices = @transform_0, window_bounds = array<i64: 16, 1024>}, {pipeline_mode = #tpu.pipeline_mode<double_buffered>, transform_indices = @transform_1, window_bounds = array<i64: 1024, 128>}, {transform_indices = @transform_2, window_bounds = array<i64: 1, 128>}, {transform_indices = @transform_3, window_bounds = array<i64: 16, 128>}, {transform_indices = @transform_4, window_bounds = array<i64: 8, 128>}, {transform_indices = @transform_5, window_bounds = array<i64: 8, 128>}]} {
    %c0 = arith.constant 0 : index
    %c0_0 = arith.constant 0 : index
    %0 = vector.load %arg1[%c0, %c0_0] : memref<16x1024xbf16, #tpu.memory_space<vmem>>, vector<16x1024xbf16>
    %c0_1 = arith.constant 0 : index
    %c0_2 = arith.constant 0 : index
    %1 = vector.load %arg2[%c0_1, %c0_2] : memref<1024x128xbf16, #tpu.memory_space<vmem>>, vector<1024x128xbf16>
    %cst = arith.constant dense<0.000000e+00> : vector<16x128xf32>
    %2 = tpu.matmul %0, %1, %cst {dimension_numbers = #tpu.dot_dimension_numbers<[1], [0], [0], [1], [0, 0, 1, 1], [], []>} : vector<16x1024xbf16>, vector<1024x128xbf16>, vector<16x128xf32> -> vector<16x128xf32>
    %c0_3 = arith.constant 0 : index
    %c0_4 = arith.constant 0 : index
    %3 = vector.load %arg3[%c0_3, %c0_4] : memref<1x128xf32, #tpu.memory_space<vmem>>, vector<1x128xf32>
    %4 = vector.broadcast %3 : vector<1x128xf32> to vector<16x128xf32>
    %5 = arith.addf %2, %4 : vector<16x128xf32>
    %6 = math.tanh %5 : vector<16x128xf32>
    %7 = arith.truncf %6 : vector<16x128xf32> to vector<16x128xbf16>
    %c0_5 = arith.constant 0 : index
    %c0_6 = arith.constant 0 : index
    %8 = vector.load %arg4[%c0_5, %c0_6] : memref<16x128xbf16, #tpu.memory_space<vmem>>, vector<16x128xbf16>
    tpu.vector_store %arg4[%c0_5, %c0_6], %7 {strides = array<i32>} : memref<16x128xbf16, #tpu.memory_space<vmem>>, vector<16x128xbf16>,
    %9 = arith.extf %7 : vector<16x128xbf16> to vector<16x128xf32>
    %10 = tpu.iota {dimensions = array<i32: 0>} : vector<16x128xi32>
    %c128_i32 = arith.constant 128 : i32
    %11 = arith.muli %arg0, %c128_i32 : i32
    %12 = tpu.iota {dimensions = array<i32: 1>} : vector<16x128xi32>
    %13 = vector.broadcast %11 : i32 to vector<16x128xi32>
    %14 = arith.addi %13, %12 : vector<16x128xi32>
    %c6_i32 = arith.constant 6 : i32
    %15 = vector.broadcast %c6_i32 : i32 to vector<16x128xi32>
    %16 = arith.cmpi slt, %10, %15 : vector<16x128xi32>
    %c192_i32 = arith.constant 192 : i32
    %17 = vector.broadcast %c192_i32 : i32 to vector<16x128xi32>
    %18 = arith.cmpi slt, %14, %17 : vector<16x128xi32>
    %19 = arith.andi %16, %18 : vector<16x128xi1>
    %cst_7 = arith.constant 0x7F800000 : f32
    %20 = vector.broadcast %cst_7 : f32 to vector<16x128xf32>
    %21 = arith.select %19, %9, %20 : vector<16x128xi1>, vector<16x128xf32>
    %22 = vector.shape_cast %21 : vector<16x128xf32> to vector<1x16x128xf32>
    %cst_8 = arith.constant dense<0x7F800000> : vector<1xf32>
    %23 = vector.multi_reduction <minimumf>, %22, %cst_8 [1, 2] : vector<1x16x128xf32> to vector<1xf32>
    %24 = vector.shape_cast %23 : vector<1xf32> to vector<1x1x1xf32>
    %25 = vector.extract %24[0, 0, 0] : f32 from vector<1x1x1xf32>
    %cst_9 = arith.constant 0xFF800000 : f32
    %26 = vector.broadcast %cst_9 : f32 to vector<16x128xf32>
    %27 = arith.select %19, %9, %26 : vector<16x128xi1>, vector<16x128xf32>
    %28 = vector.shape_cast %27 : vector<16x128xf32> to vector<1x16x128xf32>
    %cst_10 = arith.constant dense<0xFF800000> : vector<1xf32>
    %29 = vector.multi_reduction <maximumf>, %28, %cst_10 [1, 2] : vector<1x16x128xf32> to vector<1xf32>
    %30 = vector.shape_cast %29 : vector<1xf32> to vector<1x1x1xf32>
    %31 = vector.extract %30[0, 0, 0] : f32 from vector<1x1x1xf32>
    %32 = vector.broadcast %25 : f32 to vector<8x128xf32>
    %c0_11 = arith.constant 0 : index
    %c0_12 = arith.constant 0 : index
    %33 = vector.load %arg5[%c0_11, %c0_12] : memref<8x128xf32, #tpu.memory_space<vmem>>, vector<8x128xf32>
    tpu.vector_store %arg5[%c0_11, %c0_12], %32 {strides = array<i32>} : memref<8x128xf32, #tpu.memory_space<vmem>>, vector<8x128xf32>,
    %34 = vector.broadcast %31 : f32 to vector<8x128xf32>
    %c0_13 = arith.constant 0 : index
    %c0_14 = arith.constant 0 : index
    %35 = vector.load %arg6[%c0_13, %c0_14] : memref<8x128xf32, #tpu.memory_space<vmem>>, vector<8x128xf32>
    tpu.vector_store %arg6[%c0_13, %c0_14], %34 {strides = array<i32>} : memref<8x128xf32, #tpu.memory_space<vmem>>, vector<8x128xf32>,
    return
  }
  func.func @transform_0(%arg0: i32) -> (i32, i32) {
    %c0_i32 = arith.constant 0 : i32
    %c0_i32_0 = arith.constant 0 : i32
    %c0_i32_1 = arith.constant 0 : i32
    return %c0_i32, %c0_i32_0 : i32, i32
  }
  func.func @transform_1(%arg0: i32) -> (i32, i32) {
    %c0_i32 = arith.constant 0 : i32
    %c0_i32_0 = arith.constant 0 : i32
    return %c0_i32, %arg0 : i32, i32
  }
  func.func @transform_2(%arg0: i32) -> (i32, i32) {
    %c0_i32 = arith.constant 0 : i32
    %c0_i32_0 = arith.constant 0 : i32
    return %c0_i32, %arg0 : i32, i32
  }
  func.func @transform_3(%arg0: i32) -> (i32, i32) {
    %c0_i32 = arith.constant 0 : i32
    %c0_i32_0 = arith.constant 0 : i32
    return %c0_i32, %arg0 : i32, i32
  }
  func.func @transform_4(%arg0: i32) -> (i32, i32) {
    %c0_i32 = arith.constant 0 : i32
    %c0_i32_0 = arith.constant 0 : i32
    return %arg0, %c0_i32 : i32, i32
  }
  func.func @transform_5(%arg0: i32) -> (i32, i32) {
    %c0_i32 = arith.constant 0 : i32
    %c0_i32_0 = arith.constant 0 : i32
    return %arg0, %c0_i32 : i32, i32
  }
}

module attributes {stable_mosaic.version = 11 : i64} {
  func.func @_rescale_kernel(%arg0: i32, %arg1: memref<16x256xbf16, #tpu.memory_space<vmem>>, %arg2: memref<1xf32, #tpu.memory_space<smem>>, %arg3: memref<1xf32, #tpu.memory_space<smem>>, %arg4: memref<16x256xf32, #tpu.memory_space<vmem>>) attributes {dimension_semantics = [#tpu.dimension_semantics<parallel>], iteration_bounds = array<i64: 1>, scalar_prefetch = 0 : i64, scratch_operands = 0 : i64, tpu.core_type = #tpu.core_type<tc>, window_params = [{transform_indices = @transform_0, window_bounds = array<i64: 16, 256>}, {transform_indices = @transform_1, window_bounds = array<i64: 1>}, {transform_indices = @transform_2, window_bounds = array<i64: 1>}, {transform_indices = @transform_3, window_bounds = array<i64: 16, 256>}]} {
    %c0 = arith.constant 0 : index
    %0 = memref.load %arg2[%c0] : memref<1xf32, #tpu.memory_space<smem>>
    %c0_0 = arith.constant 0 : index
    %1 = memref.load %arg3[%c0_0] : memref<1xf32, #tpu.memory_space<smem>>
    %c0_1 = arith.constant 0 : index
    %c0_2 = arith.constant 0 : index
    %2 = vector.load %arg1[%c0_1, %c0_2] : memref<16x256xbf16, #tpu.memory_space<vmem>>, vector<16x256xbf16>
    %3 = arith.extf %2 : vector<16x256xbf16> to vector<16x256xf32>
    %4 = vector.broadcast %0 : f32 to vector<16x256xf32>
    %5 = arith.subf %3, %4 : vector<16x256xf32>
    %6 = vector.broadcast %1 : f32 to vector<16x256xf32>
    %7 = arith.mulf %5, %6 : vector<16x256xf32>
    %c0_3 = arith.constant 0 : index
    %c0_4 = arith.constant 0 : index
    %8 = vector.load %arg4[%c0_3, %c0_4] : memref<16x256xf32, #tpu.memory_space<vmem>>, vector<16x256xf32>
    tpu.vector_store %arg4[%c0_3, %c0_4], %7 {strides = array<i32>} : memref<16x256xf32, #tpu.memory_space<vmem>>, vector<16x256xf32>,
    return
  }
  func.func @transform_0(%arg0: i32) -> (i32, i32) {
    %c0_i32 = arith.constant 0 : i32
    %c0_i32_0 = arith.constant 0 : i32
    return %c0_i32, %arg0 : i32, i32
  }
  func.func @transform_1(%arg0: i32) -> i32 {
    %c0_i32 = arith.constant 0 : i32
    %c0_i32_0 = arith.constant 0 : i32
    return %c0_i32 : i32
  }
  func.func @transform_2(%arg0: i32) -> i32 {
    %c0_i32 = arith.constant 0 : i32
    %c0_i32_0 = arith.constant 0 : i32
    return %c0_i32 : i32
  }
  func.func @transform_3(%arg0: i32) -> (i32, i32) {
    %c0_i32 = arith.constant 0 : i32
    %c0_i32_0 = arith.constant 0 : i32
    return %c0_i32, %arg0 : i32, i32
  }
}

</mosaic_0001>

<llo_original>
// kernel: fully_connected_generator_forward.5
$region0: #{fully_connected_generator_forward.5}
  #allocation0 [shape = 'u32[]', space=smem, size = 0x4, offset = 0x4, fixed_abs, tag = 'smem constant byte address 0x4 - core index']
  #allocation1 [shape = 'u32[72,128]{1,0:T(1,128)}', space=vmem, size = 0x9000, scoped, tag = 'internal scratch']
  #allocation2 [shape = 'f32[1]{0:T(128)S(6)}', space=smem, size = 0x200, scoped, tag = 'scoped memory for fully_connected_generator_forward.5']
  #allocation3 [shape = 'f32[1]{0:T(128)S(6)}', space=smem, size = 0x200, scoped, tag = 'scoped memory for fully_connected_generator_forward.5']
  %s0 = inlined_call_operand.vmem [shape: bf16[16,256], index: 0, kind: input, shape index: {}]
  %s1 = inlined_call_operand.<no memory space> [shape: f32[1], index: 1, kind: input, shape index: {}]
  %s2 = inlined_call_operand.<no memory space> [shape: f32[1], index: 2, kind: input, shape index: {}]
  %s3 = inlined_call_operand.vmem [shape: f32[16,256], index: 3, kind: output, shape index: {}]
  %s4 = sld [smem:[#allocation0]]
  $region22: #{fully_connected_generator_forward.5} parent=0
    _
  %s6 = ssub.s32 1, %s4
  %s7 = scalar_select 0, %s6, %s4
  %8 = sst [smem:[#allocation2]] %s1
  %9 = sst [smem:[#allocation3]] %s2
  // Predicated region
  $region2: #{fully_connected_generator_forward.5} parent=0 // pred_check
    _
  $region3: #{fully_connected_generator_forward.5} parent=0 // pred_check_branch
    %11 = sbr.rel (0) target = $region5
  $region4: #{fully_connected_generator_forward.5} parent=0 // pred_region
    _
  $region5: #{fully_connected_generator_forward.5} parent=0 // pred_fallthru
    _
  // Predicated region
  $region6: #{fully_connected_generator_forward.5} parent=0 // pred_check
    _
  $region7: #{fully_connected_generator_forward.5} parent=0 // pred_check_branch
    %13 = sbr.rel (0) target = $region9
  $region8: #{fully_connected_generator_forward.5} parent=0 // pred_region
    _
  $region9: #{fully_connected_generator_forward.5} parent=0 // pred_fallthru
    _
  // Predicated region
  $region10: #{fully_connected_generator_forward.5} parent=0 // pred_check
    _
  $region11: #{fully_connected_generator_forward.5} parent=0 // pred_check_branch
    %15 = sbr.rel (0) target = $region13
  $region12: #{fully_connected_generator_forward.5} parent=0 // pred_region
    _
  $region13: #{fully_connected_generator_forward.5} parent=0 // pred_fallthru
    _
  %s16 = sld [smem:[#allocation2]]
  %s17 = sld [smem:[#allocation3]]
  %v18 = vld [vmem:[%s0] sm:$0xff]
  %v19 = vld [vmem:[%s0 + $0x8] sm:$0xff]
  %v20 = vunpack.c.l.bf16 %v18
  %v21 = vunpack.c.h.bf16 %v18
  %v22 = vunpack.c.l.bf16 %v19
  %v23 = vunpack.c.h.bf16 %v19
  %v24 = vstv %s16
  %v25 = vsub.f32 %v20, %v24
  %v26 = vsub.f32 %v21, %v24
  %v27 = vsub.f32 %v22, %v24
  %v28 = vsub.f32 %v23, %v24
  %v29 = vstv %s17
  %v30 = vmul.f32 %v25, %v29
  %v31 = vmul.f32 %v26, %v29
  %v32 = vmul.f32 %v27, %v29
  %v33 = vmul.f32 %v28, %v29
  %34 = vst [vmem:[%s3] sm:$0xff] %v30
  %35 = vst [vmem:[%s3 + $0x8] sm:$0xff] %v31
  %36 = vst [vmem:[%s3 + $0x10] sm:$0xff] %v32
  %37 = vst [vmem:[%s3 + $0x18] sm:$0xff] %v33
  // Predicated region
  $region14: #{fully_connected_generator_forward.5} parent=0 // pred_check
    _
  $region15: #{fully_connected_generator_forward.5} parent=0 // pred_check_branch
    %39 = sbr.rel (0) target = $region17
  $region16: #{fully_connected_generator_forward.5} parent=0 // pred_region
    _
  $region17: #{fully_connected_generator_forward.5} parent=0 // pred_fallthru
    _
  // Predicated region
  $region18: #{fully_connected_generator_forward.5} parent=0 // pred_check
    _
  $region19: #{fully_connected_generator_forward.5} parent=0 // pred_check_branch
    %41 = sbr.rel (0) target = $region21
  $region20: #{fully_connected_generator_forward.5} parent=0 // pred_region
    _
  $region21: #{fully_connected_generator_forward.5} parent=0 // pred_fallthru
    _

// kernel: fully_connected_generator_forward.4
$region0: #{fully_connected_generator_forward.4}
  #allocation0 [shape = 'u32[]', space=smem, size = 0x4, offset = 0x4, fixed_abs, tag = 'smem constant byte address 0x4 - core index']
  #allocation1 [shape = 'u32[72,128]{1,0:T(1,128)}', space=vmem, size = 0x9000, scoped, tag = 'internal scratch']
  %s0 = inlined_call_operand.vmem [shape: bf16[16,1024], index: 0, kind: input, shape index: {}]
  %s1 = inlined_call_operand.vmem [shape: bf16[1024,256], index: 1, kind: input, shape index: {}]
  %s2 = inlined_call_operand.vmem [shape: f32[1,256], index: 2, kind: input, shape index: {}]
  %s3 = inlined_call_operand.vmem [shape: bf16[16,256], index: 3, kind: output, shape index: {0}]
  %s4 = inlined_call_operand.vmem [shape: f32[16,128], index: 4, kind: output, shape index: {1}]
  %s5 = inlined_call_operand.vmem [shape: f32[16,128], index: 5, kind: output, shape index: {2}]
  %6 = xla_tuple %s3, %s4, %s5
  %s7 = sld [smem:[#allocation0]]
  $region139: #{fully_connected_generator_forward.4} parent=0
    _
  %s9 = ssub.s32 1, %s7
  %s10 = scalar_select 0, %s9, %s7
  $region1: #{fully_connected_generator_forward.4} parent=0
    #allocation2 [shape = 'u8[524288]{0}', space=vmem, size = 0x80000, scoped, tag = 'input window, operand 1']
    #allocation3 [shape = 'u8[8192]{0}', space=vmem, size = 0x2000, scoped, tag = 'output window, operand 0']
    loop: start=0, step=1, limit=4
    $region2: #{fully_connected_generator_forward.4} parent=1 // loop_pre_header
      _
    $region3: #{fully_connected_generator_forward.4} parent=1 // loop_header
      %s12 = sphi 0, %s16
      %p13 = scmp.ge.s32.totalorder %s12, 4
      %s20 = sphi 0, %s20
      %s22 = sphi 0, %s20
      %s23 = sphi 0, %s22
      %s37 = sphi 0, %s23
      %s43 = sphi 0, %s45
      %s46 = sphi 0, %s43
      %s47 = sphi 0, %s46
      %s63 = sphi 0, %s47
      %s69 = sphi 0, %s71
      %s72 = sphi 0, %s69
      %s73 = sphi 0, %s72
      %s89 = sphi 0, %s73
      %s95 = sphi 0, %s97
      %s98 = sphi 0, %s95
      %s99 = sphi 0, %s98
      %s115 = sphi 0, %s99
      %s121 = sphi 0, %s123
      %s124 = sphi 0, %s121
      %s125 = sphi 0, %s124
      %s141 = sphi 0, %s125
      %s147 = sphi 0, %s149
      %s150 = sphi 0, %s147
      %s151 = sphi 0, %s150
      %s167 = sphi 0, %s151
    $region4: #{fully_connected_generator_forward.4} parent=1 // loop_header_branch
      %15 = sbr.rel (%p13) target = $region8
    $region5: #{fully_connected_generator_forward.4} parent=1 // loop_body
      %s17 = ssub.s32 %s12, 1
      %s18 = ssub.s32 %s12, 2
      %s19 = sadd.s32 %s12, 1
      %s21 = sadd.s32 %s20, 1
      %p24 = scmp.eq.s32.totalorder %s12, 1
      %p25 = scmp.ne.s32.totalorder %s20, %s22
      %p26 = scmp.eq.s32.totalorder %s12, 0
      %p27 = por %p25, %p26
      %p28 = scmp.ne.s32.totalorder %s20, %s22
      %p29 = scmp.eq.s32.totalorder %s17, 1
      %p30 = por %p28, %p29
      %p31 = scmp.ne.s32.totalorder %s22, %s23
      %p32 = scmp.eq.s32.totalorder %s17, 0
      %p33 = por %p31, %p32
      %p34 = scmp.ne.s32.totalorder %s22, %s23
      %p35 = scmp.eq.s32.totalorder %s18, 1
      %p36 = por %p34, %p35
      %p38 = scmp.ne.s32.totalorder %s23, %s37
      %p39 = scmp.eq.s32.totalorder %s18, 0
      %p40 = por %p38, %p39
      %s41 = ssub.s32 %s12, %s19
      %p42 = scmp.eq.s32.totalorder %s41, 0
      %s44 = sadd.s32 %s43, 1
      %s45 = scalar_select %p42, %s43, %s44
      %p48 = pneg %p42
      %p49 = scmp.eq.s32.totalorder %s12, 1
      %p50 = por %p48, %p49
      %p51 = scmp.ne.s32.totalorder %s43, %s46
      %p52 = scmp.eq.s32.totalorder %s12, 0
      %p53 = por %p51, %p52
      %p54 = scmp.ne.s32.totalorder %s43, %s46
      %p55 = scmp.eq.s32.totalorder %s17, 1
      %p56 = por %p54, %p55
      %p57 = scmp.ne.s32.totalorder %s46, %s47
      %p58 = scmp.eq.s32.totalorder %s17, 0
      %p59 = por %p57, %p58
      %p60 = scmp.ne.s32.totalorder %s46, %s47
      %p61 = scmp.eq.s32.totalorder %s18, 1
      %p62 = por %p60, %p61
      %p64 = scmp.ne.s32.totalorder %s47, %s63
      %p65 = scmp.eq.s32.totalorder %s18, 0
      %p66 = por %p64, %p65
      %s67 = ssub.s32 %s12, %s19
      %p68 = scmp.eq.s32.totalorder %s67, 0
      %s70 = sadd.s32 %s69, 1
      %s71 = scalar_select %p68, %s69, %s70
      %p74 = pneg %p68
      %p75 = scmp.eq.s32.totalorder %s12, 1
      %p76 = por %p74, %p75
      %p77 = scmp.ne.s32.totalorder %s69, %s72
      %p78 = scmp.eq.s32.totalorder %s12, 0
      %p79 = por %p77, %p78
      %p80 = scmp.ne.s32.totalorder %s69, %s72
      %p81 = scmp.eq.s32.totalorder %s17, 1
      %p82 = por %p80, %p81
      %p83 = scmp.ne.s32.totalorder %s72, %s73
      %p84 = scmp.eq.s32.totalorder %s17, 0
      %p85 = por %p83, %p84
      %p86 = scmp.ne.s32.totalorder %s72, %s73
      %p87 = scmp.eq.s32.totalorder %s18, 1
      %p88 = por %p86, %p87
      %p90 = scmp.ne.s32.totalorder %s73, %s89
      %p91 = scmp.eq.s32.totalorder %s18, 0
      %p92 = por %p90, %p91
      %s93 = ssub.s32 %s12, %s19
      %p94 = scmp.eq.s32.totalorder %s93, 0
      %s96 = sadd.s32 %s95, 1
      %s97 = scalar_select %p94, %s95, %s96
      %p100 = pneg %p94
      %p101 = scmp.eq.s32.totalorder %s12, 1
      %p102 = por %p100, %p101
      %p103 = scmp.ne.s32.totalorder %s95, %s98
      %p104 = scmp.eq.s32.totalorder %s12, 0
      %p105 = por %p103, %p104
      %p106 = scmp.ne.s32.totalorder %s95, %s98
      %p107 = scmp.eq.s32.totalorder %s17, 1
      %p108 = por %p106, %p107
      %p109 = scmp.ne.s32.totalorder %s98, %s99
      %p110 = scmp.eq.s32.totalorder %s17, 0
      %p111 = por %p109, %p110
      %p112 = scmp.ne.s32.totalorder %s98, %s99
      %p113 = scmp.eq.s32.totalorder %s18, 1
      %p114 = por %p112, %p113
      %p116 = scmp.ne.s32.totalorder %s99, %s115
      %p117 = scmp.eq.s32.totalorder %s18, 0
      %p118 = por %p116, %p117
      %s119 = ssub.s32 %s12, %s19
      %p120 = scmp.eq.s32.totalorder %s119, 0
      %s122 = sadd.s32 %s121, 1
      %s123 = scalar_select %p120, %s121, %s122
      %p126 = pneg %p120
      %p127 = scmp.eq.s32.totalorder %s12, 1
      %p128 = por %p126, %p127
      %p129 = scmp.ne.s32.totalorder %s121, %s124
      %p130 = scmp.eq.s32.totalorder %s12, 0
      %p131 = por %p129, %p130
      %p132 = scmp.ne.s32.totalorder %s121, %s124
      %p133 = scmp.eq.s32.totalorder %s17, 1
      %p134 = por %p132, %p133
      %p135 = scmp.ne.s32.totalorder %s124, %s125
      %p136 = scmp.eq.s32.totalorder %s17, 0
      %p137 = por %p135, %p136
      %p138 = scmp.ne.s32.totalorder %s124, %s125
      %p139 = scmp.eq.s32.totalorder %s18, 1
      %p140 = por %p138, %p139
      %p142 = scmp.ne.s32.totalorder %s125, %s141
      %p143 = scmp.eq.s32.totalorder %s18, 0
      %p144 = por %p142, %p143
      %s145 = ssub.s32 %s12, %s19
      %p146 = scmp.eq.s32.totalorder %s145, 0
      %s148 = sadd.s32 %s147, 1
      %s149 = scalar_select %p146, %s147, %s148
      %p152 = pneg %p146
      %p153 = scmp.eq.s32.totalorder %s12, 1
      %p154 = por %p152, %p153
      %p155 = scmp.ne.s32.totalorder %s147, %s150
      %p156 = scmp.eq.s32.totalorder %s12, 0
      %p157 = por %p155, %p156
      %p158 = scmp.ne.s32.totalorder %s147, %s150
      %p159 = scmp.eq.s32.totalorder %s17, 1
      %p160 = por %p158, %p159
      %p161 = scmp.ne.s32.totalorder %s150, %s151
      %p162 = scmp.eq.s32.totalorder %s17, 0
      %p163 = por %p161, %p162
      %p164 = scmp.ne.s32.totalorder %s150, %s151
      %p165 = scmp.eq.s32.totalorder %s18, 1
      %p166 = por %p164, %p165
      %p168 = scmp.ne.s32.totalorder %s151, %s167
      %p169 = scmp.eq.s32.totalorder %s18, 0
      %p170 = por %p168, %p169
      %p171 = scmp.le.s32.totalorder 1, %s12
      %p172 = scmp.lt.s32.totalorder %s12, 3
      %p173 = pnand %p171, %p172
      %p174 = pneg %p173
      // Predicated region
      $region9: #{fully_connected_generator_forward.4} parent=5 // pred_check
        _
      $region10: #{fully_connected_generator_forward.4} parent=5 // pred_check_branch
        %176 = sbr.rel (%p173) target = $region12
      $region11: #{fully_connected_generator_forward.4} parent=5 // pred_region
        %s177 = ssub.s32 %s12, 1
        // Predicated region
        $region13: #{fully_connected_generator_forward.4} parent=11 // pred_check
          %p178 = pneg %p33
        $region14: #{fully_connected_generator_forward.4} parent=11 // pred_check_branch
          %180 = sbr.rel (%p178) target = $region16
        $region15: #{fully_connected_generator_forward.4} parent=11 // pred_region
          _
        $region16: #{fully_connected_generator_forward.4} parent=11 // pred_fallthru
          _
      $region12: #{fully_connected_generator_forward.4} parent=5 // pred_fallthru
        _
      %p181 = scmp.lt.s32.totalorder %s12, 2
      // Predicated region
      $region17: #{fully_connected_generator_forward.4} parent=5 // pred_check
        %p182 = pneg %p181
      $region18: #{fully_connected_generator_forward.4} parent=5 // pred_check_branch
        %184 = sbr.rel (%p182) target = $region20
      $region19: #{fully_connected_generator_forward.4} parent=5 // pred_region
        // Predicated region
        $region21: #{fully_connected_generator_forward.4} parent=19 // pred_check
          %p185 = pneg %p53
        $region22: #{fully_connected_generator_forward.4} parent=19 // pred_check_branch
          %187 = sbr.rel (%p185) target = $region24
        $region23: #{fully_connected_generator_forward.4} parent=19 // pred_region
          %s188 = sand.u32 %s43, 1
          %s189 = sand.u32 %s43, 1
          %s190 = smul.addr %s189, 512
          %s191 = scalar_lea.vmem [#allocation2], %s190
          %s192 = smul.addr %s12, 4
          %s193 = scalar_lea.vmem %s1, %s192
          // Predicated region
          $region25: #{fully_connected_generator_forward.4} parent=23 // pred_check
            _
          $region26: #{fully_connected_generator_forward.4} parent=23 // pred_check_branch
            %195 = sbr.rel (0) target = $region28
          $region27: #{fully_connected_generator_forward.4} parent=23 // pred_region
            // Predicated region
            $region29: #{fully_connected_generator_forward.4} parent=27 // pred_check
              _
            $region30: #{fully_connected_generator_forward.4} parent=27 // pred_check_branch
              %197 = sbr.rel target = $region32
            $region31: #{fully_connected_generator_forward.4} parent=27 // pred_region
              // Predicated region
              $region44: #{fully_connected_generator_forward.4} parent=31 // pred_check
                _
              $region45: #{fully_connected_generator_forward.4} parent=31 // pred_check_branch
                %467 = sbr.rel (0) target = $region47
              $region46: #{fully_connected_generator_forward.4} parent=31 // pred_region
                loop: start=0, step=1, limit=1
                $region48: #{fully_connected_generator_forward.4} parent=46 // loop_pre_header
                  _
                $region49: #{fully_connected_generator_forward.4} parent=46 // loop_header
                  %s469 = sphi 0, %s473
                  %p470 = scmp.ge.s32.totalorder %s469, 1
                  %s474 = sphi %s193, %s193
                  %s475 = sphi %s191, %s191
                $region50: #{fully_connected_generator_forward.4} parent=46 // loop_header_branch
                  %472 = sbr.rel (%p470) target = $region54
                $region51: #{fully_connected_generator_forward.4} parent=46 // loop_body
                  _
                $region52: #{fully_connected_generator_forward.4} parent=46 // loop_footer
                  %s473 = sadd.s32 1, %s469
                $region53: #{fully_connected_generator_forward.4} parent=46 // loop_footer_branch
                  %468 = sbr.rel target = $region49
                $region54: #{fully_connected_generator_forward.4} parent=46 // loop_exit
                  _
                %s477 = ssub.s32 16, 1
                loop: start=0, step=1, limit=1
                $region55: #{fully_connected_generator_forward.4} parent=46 // loop_pre_header
                  _
                $region56: #{fully_connected_generator_forward.4} parent=46 // loop_header
                  %s479 = sphi 0, %s483
                  %p480 = scmp.ge.s32.totalorder %s479, 1
                  %s484 = sphi %s193, %s193
                  %s485 = sphi %s191, %s191
                $region57: #{fully_connected_generator_forward.4} parent=46 // loop_header_branch
                  %482 = sbr.rel (%p480) target = $region61
                $region58: #{fully_connected_generator_forward.4} parent=46 // loop_body
                  %v486 = vld [vmem:[%s484] sm:%s477]
                  %487 = vst [vmem:[%s485] sm:%s477] %v486
                  %v488 = vld [vmem:[%s484 + $0x8] sm:%s477]
                  %489 = vst [vmem:[%s485 + $0x4] sm:%s477] %v488
                  %v490 = vld [vmem:[%s484 + $0x10] sm:%s477]
                  %491 = vst [vmem:[%s485 + $0x8] sm:%s477] %v490
                  %v492 = vld [vmem:[%s484 + $0x18] sm:%s477]
                  %493 = vst [vmem:[%s485 + $0xc] sm:%s477] %v492
                  %v494 = vld [vmem:[%s484 + $0x20] sm:%s477]
                  %495 = vst [vmem:[%s485 + $0x10] sm:%s477] %v494
                  %v496 = vld [vmem:[%s484 + $0x28] sm:%s477]
                  %497 = vst [vmem:[%s485 + $0x14] sm:%s477] %v496
                  %v498 = vld [vmem:[%s484 + $0x30] sm:%s477]
                  %499 = vst [vmem:[%s485 + $0x18] sm:%s477] %v498
                  %v500 = vld [vmem:[%s484 + $0x38] sm:%s477]
                  %501 = vst [vmem:[%s485 + $0x1c] sm:%s477] %v500
                  %v502 = vld [vmem:[%s484 + $0x40] sm:%s477]
                  %503 = vst [vmem:[%s485 + $0x20] sm:%s477] %v502
                  %v504 = vld [vmem:[%s484 + $0x48] sm:%s477]
                  %505 = vst [vmem:[%s485 + $0x24] sm:%s477] %v504
                  %v506 = vld [vmem:[%s484 + $0x50] sm:%s477]
                  %507 = vst [vmem:[%s485 + $0x28] sm:%s477] %v506
                  %v508 = vld [vmem:[%s484 + $0x58] sm:%s477]
                  %509 = vst [vmem:[%s485 + $0x2c] sm:%s477] %v508
                  %v510 = vld [vmem:[%s484 + $0x60] sm:%s477]
                  %511 = vst [vmem:[%s485 + $0x30] sm:%s477] %v510
                  %v512 = vld [vmem:[%s484 + $0x68] sm:%s477]
                  %513 = vst [vmem:[%s485 + $0x34] sm:%s477] %v512
                  %v514 = vld [vmem:[%s484 + $0x70] sm:%s477]
                  %515 = vst [vmem:[%s485 + $0x38] sm:%s477] %v514
                  %v516 = vld [vmem:[%s484 + $0x78] sm:%s477]
                  %517 = vst [vmem:[%s485 + $0x3c] sm:%s477] %v516
                  %v518 = vld [vmem:[%s484 + $0x80] sm:%s477]
                  %519 = vst [vmem:[%s485 + $0x40] sm:%s477] %v518
                  %v520 = vld [vmem:[%s484 + $0x88] sm:%s477]
                  %521 = vst [vmem:[%s485 + $0x44] sm:%s477] %v520
                  %v522 = vld [vmem:[%s484 + $0x90] sm:%s477]
                  %523 = vst [vmem:[%s485 + $0x48] sm:%s477] %v522
                  %v524 = vld [vmem:[%s484 + $0x98] sm:%s477]
                  %525 = vst [vmem:[%s485 + $0x4c] sm:%s477] %v524
                  %v526 = vld [vmem:[%s484 + $0xa0] sm:%s477]
                  %527 = vst [vmem:[%s485 + $0x50] sm:%s477] %v526
                  %v528 = vld [vmem:[%s484 + $0xa8] sm:%s477]
                  %529 = vst [vmem:[%s485 + $0x54] sm:%s477] %v528
                  %v530 = vld [vmem:[%s484 + $0xb0] sm:%s477]
                  %531 = vst [vmem:[%s485 + $0x58] sm:%s477] %v530
                  %v532 = vld [vmem:[%s484 + $0xb8] sm:%s477]
                  %533 = vst [vmem:[%s485 + $0x5c] sm:%s477] %v532
                  %v534 = vld [vmem:[%s484 + $0xc0] sm:%s477]
                  %535 = vst [vmem:[%s485 + $0x60] sm:%s477] %v534
                  %v536 = vld [vmem:[%s484 + $0xc8] sm:%s477]
                  %537 = vst [vmem:[%s485 + $0x64] sm:%s477] %v536
                  %v538 = vld [vmem:[%s484 + $0xd0] sm:%s477]
                  %539 = vst [vmem:[%s485 + $0x68] sm:%s477] %v538
                  %v540 = vld [vmem:[%s484 + $0xd8] sm:%s477]
                  %541 = vst [vmem:[%s485 + $0x6c] sm:%s477] %v540
                  %v542 = vld [vmem:[%s484 + $0xe0] sm:%s477]
                  %543 = vst [vmem:[%s485 + $0x70] sm:%s477] %v542
                  %v544 = vld [vmem:[%s484 + $0xe8] sm:%s477]
                  %545 = vst [vmem:[%s485 + $0x74] sm:%s477] %v544
                  %v546 = vld [vmem:[%s484 + $0xf0] sm:%s477]
                  %547 = vst [vmem:[%s485 + $0x78] sm:%s477] %v546
                  %v548 = vld [vmem:[%s484 + $0xf8] sm:%s477]
                  %549 = vst [vmem:[%s485 + $0x7c] sm:%s477] %v548
                  %v550 = vld [vmem:[%s484 + $0x100] sm:%s477]
                  %551 = vst [vmem:[%s485 + $0x80] sm:%s477] %v550
                  %v552 = vld [vmem:[%s484 + $0x108] sm:%s477]
                  %553 = vst [vmem:[%s485 + $0x84] sm:%s477] %v552
                  %v554 = vld [vmem:[%s484 + $0x110] sm:%s477]
                  %555 = vst [vmem:[%s485 + $0x88] sm:%s477] %v554
                  %v556 = vld [vmem:[%s484 + $0x118] sm:%s477]
                  %557 = vst [vmem:[%s485 + $0x8c] sm:%s477] %v556
                  %v558 = vld [vmem:[%s484 + $0x120] sm:%s477]
                  %559 = vst [vmem:[%s485 + $0x90] sm:%s477] %v558
                  %v560 = vld [vmem:[%s484 + $0x128] sm:%s477]
                  %561 = vst [vmem:[%s485 + $0x94] sm:%s477] %v560
                  %v562 = vld [vmem:[%s484 + $0x130] sm:%s477]
                  %563 = vst [vmem:[%s485 + $0x98] sm:%s477] %v562
                  %v564 = vld [vmem:[%s484 + $0x138] sm:%s477]
                  %565 = vst [vmem:[%s485 + $0x9c] sm:%s477] %v564
                  %v566 = vld [vmem:[%s484 + $0x140] sm:%s477]
                  %567 = vst [vmem:[%s485 + $0xa0] sm:%s477] %v566
                  %v568 = vld [vmem:[%s484 + $0x148] sm:%s477]
                  %569 = vst [vmem:[%s485 + $0xa4] sm:%s477] %v568
                  %v570 = vld [vmem:[%s484 + $0x150] sm:%s477]
                  %571 = vst [vmem:[%s485 + $0xa8] sm:%s477] %v570
                  %v572 = vld [vmem:[%s484 + $0x158] sm:%s477]
                  %573 = vst [vmem:[%s485 + $0xac] sm:%s477] %v572
                  %v574 = vld [vmem:[%s484 + $0x160] sm:%s477]
                  %575 = vst [vmem:[%s485 + $0xb0] sm:%s477] %v574
                  %v576 = vld [vmem:[%s484 + $0x168] sm:%s477]
                  %577 = vst [vmem:[%s485 + $0xb4] sm:%s477] %v576
                  %v578 = vld [vmem:[%s484 + $0x170] sm:%s477]
                  %579 = vst [vmem:[%s485 + $0xb8] sm:%s477] %v578
                  %v580 = vld [vmem:[%s484 + $0x178] sm:%s477]
                  %581 = vst [vmem:[%s485 + $0xbc] sm:%s477] %v580
                  %v582 = vld [vmem:[%s484 + $0x180] sm:%s477]
                  %583 = vst [vmem:[%s485 + $0xc0] sm:%s477] %v582
                  %v584 = vld [vmem:[%s484 + $0x188] sm:%s477]
                  %585 = vst [vmem:[%s485 + $0xc4] sm:%s477] %v584
                  %v586 = vld [vmem:[%s484 + $0x190] sm:%s477]
                  %587 = vst [vmem:[%s485 + $0xc8] sm:%s477] %v586
                  %v588 = vld [vmem:[%s484 + $0x198] sm:%s477]
                  %589 = vst [vmem:[%s485 + $0xcc] sm:%s477] %v588
                  %v590 = vld [vmem:[%s484 + $0x1a0] sm:%s477]
                  %591 = vst [vmem:[%s485 + $0xd0] sm:%s477] %v590
                  %v592 = vld [vmem:[%s484 + $0x1a8] sm:%s477]
                  %593 = vst [vmem:[%s485 + $0xd4] sm:%s477] %v592
                  %v594 = vld [vmem:[%s484 + $0x1b0] sm:%s477]
                  %595 = vst [vmem:[%s485 + $0xd8] sm:%s477] %v594
                  %v596 = vld [vmem:[%s484 + $0x1b8] sm:%s477]
                  %597 = vst [vmem:[%s485 + $0xdc] sm:%s477] %v596
                  %v598 = vld [vmem:[%s484 + $0x1c0] sm:%s477]
                  %599 = vst [vmem:[%s485 + $0xe0] sm:%s477] %v598
                  %v600 = vld [vmem:[%s484 + $0x1c8] sm:%s477]
                  %601 = vst [vmem:[%s485 + $0xe4] sm:%s477] %v600
                  %v602 = vld [vmem:[%s484 + $0x1d0] sm:%s477]
                  %603 = vst [vmem:[%s485 + $0xe8] sm:%s477] %v602
                  %v604 = vld [vmem:[%s484 + $0x1d8] sm:%s477]
                  %605 = vst [vmem:[%s485 + $0xec] sm:%s477] %v604
                  %v606 = vld [vmem:[%s484 + $0x1e0] sm:%s477]
                  %607 = vst [vmem:[%s485 + $0xf0] sm:%s477] %v606
                  %v608 = vld [vmem:[%s484 + $0x1e8] sm:%s477]
                  %609 = vst [vmem:[%s485 + $0xf4] sm:%s477] %v608
                  %v610 = vld [vmem:[%s484 + $0x1f0] sm:%s477]
                  %611 = vst [vmem:[%s485 + $0xf8] sm:%s477] %v610
                  %v612 = vld [vmem:[%s484 + $0x1f8] sm:%s477]
                  %613 = vst [vmem:[%s485 + $0xfc] sm:%s477] %v612
                  %v614 = vld [vmem:[%s484 + $0x200] sm:%s477]
                  %615 = vst [vmem:[%s485 + $0x100] sm:%s477] %v614
                  %v616 = vld [vmem:[%s484 + $0x208] sm:%s477]
                  %617 = vst [vmem:[%s485 + $0x104] sm:%s477] %v616
                  %v618 = vld [vmem:[%s484 + $0x210] sm:%s477]
                  %619 = vst [vmem:[%s485 + $0x108] sm:%s477] %v618
                  %v620 = vld [vmem:[%s484 + $0x218] sm:%s477]
                  %621 = vst [vmem:[%s485 + $0x10c] sm:%s477] %v620
                  %v622 = vld [vmem:[%s484 + $0x220] sm:%s477]
                  %623 = vst [vmem:[%s485 + $0x110] sm:%s477] %v622
                  %v624 = vld [vmem:[%s484 + $0x228] sm:%s477]
                  %625 = vst [vmem:[%s485 + $0x114] sm:%s477] %v624
                  %v626 = vld [vmem:[%s484 + $0x230] sm:%s477]
                  %627 = vst [vmem:[%s485 + $0x118] sm:%s477] %v626
                  %v628 = vld [vmem:[%s484 + $0x238] sm:%s477]
                  %629 = vst [vmem:[%s485 + $0x11c] sm:%s477] %v628
                  %v630 = vld [vmem:[%s484 + $0x240] sm:%s477]
                  %631 = vst [vmem:[%s485 + $0x120] sm:%s477] %v630
                  %v632 = vld [vmem:[%s484 + $0x248] sm:%s477]
                  %633 = vst [vmem:[%s485 + $0x124] sm:%s477] %v632
                  %v634 = vld [vmem:[%s484 + $0x250] sm:%s477]
                  %635 = vst [vmem:[%s485 + $0x128] sm:%s477] %v634
                  %v636 = vld [vmem:[%s484 + $0x258] sm:%s477]
                  %637 = vst [vmem:[%s485 + $0x12c] sm:%s477] %v636
                  %v638 = vld [vmem:[%s484 + $0x260] sm:%s477]
                  %639 = vst [vmem:[%s485 + $0x130] sm:%s477] %v638
                  %v640 = vld [vmem:[%s484 + $0x268] sm:%s477]
                  %641 = vst [vmem:[%s485 + $0x134] sm:%s477] %v640
                  %v642 = vld [vmem:[%s484 + $0x270] sm:%s477]
                  %643 = vst [vmem:[%s485 + $0x138] sm:%s477] %v642
                  %v644 = vld [vmem:[%s484 + $0x278] sm:%s477]
                  %645 = vst [vmem:[%s485 + $0x13c] sm:%s477] %v644
                  %v646 = vld [vmem:[%s484 + $0x280] sm:%s477]
                  %647 = vst [vmem:[%s485 + $0x140] sm:%s477] %v646
                  %v648 = vld [vmem:[%s484 + $0x288] sm:%s477]
                  %649 = vst [vmem:[%s485 + $0x144] sm:%s477] %v648
                  %v650 = vld [vmem:[%s484 + $0x290] sm:%s477]
                  %651 = vst [vmem:[%s485 + $0x148] sm:%s477] %v650
                  %v652 = vld [vmem:[%s484 + $0x298] sm:%s477]
                  %653 = vst [vmem:[%s485 + $0x14c] sm:%s477] %v652
                  %v654 = vld [vmem:[%s484 + $0x2a0] sm:%s477]
                  %655 = vst [vmem:[%s485 + $0x150] sm:%s477] %v654
                  %v656 = vld [vmem:[%s484 + $0x2a8] sm:%s477]
                  %657 = vst [vmem:[%s485 + $0x154] sm:%s477] %v656
                  %v658 = vld [vmem:[%s484 + $0x2b0] sm:%s477]
                  %659 = vst [vmem:[%s485 + $0x158] sm:%s477] %v658
                  %v660 = vld [vmem:[%s484 + $0x2b8] sm:%s477]
                  %661 = vst [vmem:[%s485 + $0x15c] sm:%s477] %v660
                  %v662 = vld [vmem:[%s484 + $0x2c0] sm:%s477]
                  %663 = vst [vmem:[%s485 + $0x160] sm:%s477] %v662
                  %v664 = vld [vmem:[%s484 + $0x2c8] sm:%s477]
                  %665 = vst [vmem:[%s485 + $0x164] sm:%s477] %v664
                  %v666 = vld [vmem:[%s484 + $0x2d0] sm:%s477]
                  %667 = vst [vmem:[%s485 + $0x168] sm:%s477] %v666
                  %v668 = vld [vmem:[%s484 + $0x2d8] sm:%s477]
                  %669 = vst [vmem:[%s485 + $0x16c] sm:%s477] %v668
                  %v670 = vld [vmem:[%s484 + $0x2e0] sm:%s477]
                  %671 = vst [vmem:[%s485 + $0x170] sm:%s477] %v670
                  %v672 = vld [vmem:[%s484 + $0x2e8] sm:%s477]
                  %673 = vst [vmem:[%s485 + $0x174] sm:%s477] %v672
                  %v674 = vld [vmem:[%s484 + $0x2f0] sm:%s477]
                  %675 = vst [vmem:[%s485 + $0x178] sm:%s477] %v674
                  %v676 = vld [vmem:[%s484 + $0x2f8] sm:%s477]
                  %677 = vst [vmem:[%s485 + $0x17c] sm:%s477] %v676
                  %v678 = vld [vmem:[%s484 + $0x300] sm:%s477]
                  %679 = vst [vmem:[%s485 + $0x180] sm:%s477] %v678
                  %v680 = vld [vmem:[%s484 + $0x308] sm:%s477]
                  %681 = vst [vmem:[%s485 + $0x184] sm:%s477] %v680
                  %v682 = vld [vmem:[%s484 + $0x310] sm:%s477]
                  %683 = vst [vmem:[%s485 + $0x188] sm:%s477] %v682
                  %v684 = vld [vmem:[%s484 + $0x318] sm:%s477]
                  %685 = vst [vmem:[%s485 + $0x18c] sm:%s477] %v684
                  %v686 = vld [vmem:[%s484 + $0x320] sm:%s477]
                  %687 = vst [vmem:[%s485 + $0x190] sm:%s477] %v686
                  %v688 = vld [vmem:[%s484 + $0x328] sm:%s477]
                  %689 = vst [vmem:[%s485 + $0x194] sm:%s477] %v688
                  %v690 = vld [vmem:[%s484 + $0x330] sm:%s477]
                  %691 = vst [vmem:[%s485 + $0x198] sm:%s477] %v690
                  %v692 = vld [vmem:[%s484 + $0x338] sm:%s477]
                  %693 = vst [vmem:[%s485 + $0x19c] sm:%s477] %v692
                  %v694 = vld [vmem:[%s484 + $0x340] sm:%s477]
                  %695 = vst [vmem:[%s485 + $0x1a0] sm:%s477] %v694
                  %v696 = vld [vmem:[%s484 + $0x348] sm:%s477]
                  %697 = vst [vmem:[%s485 + $0x1a4] sm:%s477] %v696
                  %v698 = vld [vmem:[%s484 + $0x350] sm:%s477]
                  %699 = vst [vmem:[%s485 + $0x1a8] sm:%s477] %v698
                  %v700 = vld [vmem:[%s484 + $0x358] sm:%s477]
                  %701 = vst [vmem:[%s485 + $0x1ac] sm:%s477] %v700
                  %v702 = vld [vmem:[%s484 + $0x360] sm:%s477]
                  %703 = vst [vmem:[%s485 + $0x1b0] sm:%s477] %v702
                  %v704 = vld [vmem:[%s484 + $0x368] sm:%s477]
                  %705 = vst [vmem:[%s485 + $0x1b4] sm:%s477] %v704
                  %v706 = vld [vmem:[%s484 + $0x370] sm:%s477]
                  %707 = vst [vmem:[%s485 + $0x1b8] sm:%s477] %v706
                  %v708 = vld [vmem:[%s484 + $0x378] sm:%s477]
                  %709 = vst [vmem:[%s485 + $0x1bc] sm:%s477] %v708
                  %v710 = vld [vmem:[%s484 + $0x380] sm:%s477]
                  %711 = vst [vmem:[%s485 + $0x1c0] sm:%s477] %v710
                  %v712 = vld [vmem:[%s484 + $0x388] sm:%s477]
                  %713 = vst [vmem:[%s485 + $0x1c4] sm:%s477] %v712
                  %v714 = vld [vmem:[%s484 + $0x390] sm:%s477]
                  %715 = vst [vmem:[%s485 + $0x1c8] sm:%s477] %v714
                  %v716 = vld [vmem:[%s484 + $0x398] sm:%s477]
                  %717 = vst [vmem:[%s485 + $0x1cc] sm:%s477] %v716
                  %v718 = vld [vmem:[%s484 + $0x3a0] sm:%s477]
                  %719 = vst [vmem:[%s485 + $0x1d0] sm:%s477] %v718
                  %v720 = vld [vmem:[%s484 + $0x3a8] sm:%s477]
                  %721 = vst [vmem:[%s485 + $0x1d4] sm:%s477] %v720
                  %v722 = vld [vmem:[%s484 + $0x3b0] sm:%s477]
                  %723 = vst [vmem:[%s485 + $0x1d8] sm:%s477] %v722
                  %v724 = vld [vmem:[%s484 + $0x3b8] sm:%s477]
                  %725 = vst [vmem:[%s485 + $0x1dc] sm:%s477] %v724
                  %v726 = vld [vmem:[%s484 + $0x3c0] sm:%s477]
                  %727 = vst [vmem:[%s485 + $0x1e0] sm:%s477] %v726
                  %v728 = vld [vmem:[%s484 + $0x3c8] sm:%s477]
                  %729 = vst [vmem:[%s485 + $0x1e4] sm:%s477] %v728
                  %v730 = vld [vmem:[%s484 + $0x3d0] sm:%s477]
                  %731 = vst [vmem:[%s485 + $0x1e8] sm:%s477] %v730
                  %v732 = vld [vmem:[%s484 + $0x3d8] sm:%s477]
                  %733 = vst [vmem:[%s485 + $0x1ec] sm:%s477] %v732
                  %v734 = vld [vmem:[%s484 + $0x3e0] sm:%s477]
                  %735 = vst [vmem:[%s485 + $0x1f0] sm:%s477] %v734
                  %v736 = vld [vmem:[%s484 + $0x3e8] sm:%s477]
                  %737 = vst [vmem:[%s485 + $0x1f4] sm:%s477] %v736
                  %v738 = vld [vmem:[%s484 + $0x3f0] sm:%s477]
                  %739 = vst [vmem:[%s485 + $0x1f8] sm:%s477] %v738
                  %v740 = vld [vmem:[%s484 + $0x3f8] sm:%s477]
                  %741 = vst [vmem:[%s485 + $0x1fc] sm:%s477] %v740
                $region59: #{fully_connected_generator_forward.4} parent=46 // loop_footer
                  %s483 = sadd.s32 1, %s479
                $region60: #{fully_connected_generator_forward.4} parent=46 // loop_footer_branch
                  %478 = sbr.rel target = $region56
                $region61: #{fully_connected_generator_forward.4} parent=46 // loop_exit
                  _
              $region47: #{fully_connected_generator_forward.4} parent=31 // pred_fallthru
                _
            $region32: #{fully_connected_generator_forward.4} parent=27 // pred_fallthru
              _
            // Predicated region
            $region33: #{fully_connected_generator_forward.4} parent=27 // pred_check
              _
            $region34: #{fully_connected_generator_forward.4} parent=27 // pred_check_branch
              %199 = sbr.rel (0) target = $region36
            $region35: #{fully_connected_generator_forward.4} parent=27 // pred_region
              %s201 = ssub.s32 16, 1
              loop: start=0, step=1, limit=1
              $region37: #{fully_connected_generator_forward.4} parent=35 // loop_pre_header
                _
              $region38: #{fully_connected_generator_forward.4} parent=35 // loop_header
                %s203 = sphi 0, %s207
                %p204 = scmp.ge.s32.totalorder %s203, 1
                %s208 = sphi %s193, %s193
                %s209 = sphi %s191, %s191
              $region39: #{fully_connected_generator_forward.4} parent=35 // loop_header_branch
                %206 = sbr.rel (%p204) target = $region43
              $region40: #{fully_connected_generator_forward.4} parent=35 // loop_body
                %v210 = vld [vmem:[%s208] sm:%s201]
                %211 = vst [vmem:[%s209] sm:%s201] %v210
                %v212 = vld [vmem:[%s208 + $0x8] sm:%s201]
                %213 = vst [vmem:[%s209 + $0x4] sm:%s201] %v212
                %v214 = vld [vmem:[%s208 + $0x10] sm:%s201]
                %215 = vst [vmem:[%s209 + $0x8] sm:%s201] %v214
                %v216 = vld [vmem:[%s208 + $0x18] sm:%s201]
                %217 = vst [vmem:[%s209 + $0xc] sm:%s201] %v216
                %v218 = vld [vmem:[%s208 + $0x20] sm:%s201]
                %219 = vst [vmem:[%s209 + $0x10] sm:%s201] %v218
                %v220 = vld [vmem:[%s208 + $0x28] sm:%s201]
                %221 = vst [vmem:[%s209 + $0x14] sm:%s201] %v220
                %v222 = vld [vmem:[%s208 + $0x30] sm:%s201]
                %223 = vst [vmem:[%s209 + $0x18] sm:%s201] %v222
                %v224 = vld [vmem:[%s208 + $0x38] sm:%s201]
                %225 = vst [vmem:[%s209 + $0x1c] sm:%s201] %v224
                %v226 = vld [vmem:[%s208 + $0x40] sm:%s201]
                %227 = vst [vmem:[%s209 + $0x20] sm:%s201] %v226
                %v228 = vld [vmem:[%s208 + $0x48] sm:%s201]
                %229 = vst [vmem:[%s209 + $0x24] sm:%s201] %v228
                %v230 = vld [vmem:[%s208 + $0x50] sm:%s201]
                %231 = vst [vmem:[%s209 + $0x28] sm:%s201] %v230
                %v232 = vld [vmem:[%s208 + $0x58] sm:%s201]
                %233 = vst [vmem:[%s209 + $0x2c] sm:%s201] %v232
                %v234 = vld [vmem:[%s208 + $0x60] sm:%s201]
                %235 = vst [vmem:[%s209 + $0x30] sm:%s201] %v234
                %v236 = vld [vmem:[%s208 + $0x68] sm:%s201]
                %237 = vst [vmem:[%s209 + $0x34] sm:%s201] %v236
                %v238 = vld [vmem:[%s208 + $0x70] sm:%s201]
                %239 = vst [vmem:[%s209 + $0x38] sm:%s201] %v238
                %v240 = vld [vmem:[%s208 + $0x78] sm:%s201]
                %241 = vst [vmem:[%s209 + $0x3c] sm:%s201] %v240
                %v242 = vld [vmem:[%s208 + $0x80] sm:%s201]
                %243 = vst [vmem:[%s209 + $0x40] sm:%s201] %v242
                %v244 = vld [vmem:[%s208 + $0x88] sm:%s201]
                %245 = vst [vmem:[%s209 + $0x44] sm:%s201] %v244
                %v246 = vld [vmem:[%s208 + $0x90] sm:%s201]
                %247 = vst [vmem:[%s209 + $0x48] sm:%s201] %v246
                %v248 = vld [vmem:[%s208 + $0x98] sm:%s201]
                %249 = vst [vmem:[%s209 + $0x4c] sm:%s201] %v248
                %v250 = vld [vmem:[%s208 + $0xa0] sm:%s201]
                %251 = vst [vmem:[%s209 + $0x50] sm:%s201] %v250
                %v252 = vld [vmem:[%s208 + $0xa8] sm:%s201]
                %253 = vst [vmem:[%s209 + $0x54] sm:%s201] %v252
                %v254 = vld [vmem:[%s208 + $0xb0] sm:%s201]
                %255 = vst [vmem:[%s209 + $0x58] sm:%s201] %v254
                %v256 = vld [vmem:[%s208 + $0xb8] sm:%s201]
                %257 = vst [vmem:[%s209 + $0x5c] sm:%s201] %v256
                %v258 = vld [vmem:[%s208 + $0xc0] sm:%s201]
                %259 = vst [vmem:[%s209 + $0x60] sm:%s201] %v258
                %v260 = vld [vmem:[%s208 + $0xc8] sm:%s201]
                %261 = vst [vmem:[%s209 + $0x64] sm:%s201] %v260
                %v262 = vld [vmem:[%s208 + $0xd0] sm:%s201]
                %263 = vst [vmem:[%s209 + $0x68] sm:%s201] %v262
                %v264 = vld [vmem:[%s208 + $0xd8] sm:%s201]
                %265 = vst [vmem:[%s209 + $0x6c] sm:%s201] %v264
                %v266 = vld [vmem:[%s208 + $0xe0] sm:%s201]
                %267 = vst [vmem:[%s209 + $0x70] sm:%s201] %v266
                %v268 = vld [vmem:[%s208 + $0xe8] sm:%s201]
                %269 = vst [vmem:[%s209 + $0x74] sm:%s201] %v268
                %v270 = vld [vmem:[%s208 + $0xf0] sm:%s201]
                %271 = vst [vmem:[%s209 + $0x78] sm:%s201] %v270
                %v272 = vld [vmem:[%s208 + $0xf8] sm:%s201]
                %273 = vst [vmem:[%s209 + $0x7c] sm:%s201] %v272
                %v274 = vld [vmem:[%s208 + $0x100] sm:%s201]
                %275 = vst [vmem:[%s209 + $0x80] sm:%s201] %v274
                %v276 = vld [vmem:[%s208 + $0x108] sm:%s201]
                %277 = vst [vmem:[%s209 + $0x84] sm:%s201] %v276
                %v278 = vld [vmem:[%s208 + $0x110] sm:%s201]
                %279 = vst [vmem:[%s209 + $0x88] sm:%s201] %v278
                %v280 = vld [vmem:[%s208 + $0x118] sm:%s201]
                %281 = vst [vmem:[%s209 + $0x8c] sm:%s201] %v280
                %v282 = vld [vmem:[%s208 + $0x120] sm:%s201]
                %283 = vst [vmem:[%s209 + $0x90] sm:%s201] %v282
                %v284 = vld [vmem:[%s208 + $0x128] sm:%s201]
                %285 = vst [vmem:[%s209 + $0x94] sm:%s201] %v284
                %v286 = vld [vmem:[%s208 + $0x130] sm:%s201]
                %287 = vst [vmem:[%s209 + $0x98] sm:%s201] %v286
                %v288 = vld [vmem:[%s208 + $0x138] sm:%s201]
                %289 = vst [vmem:[%s209 + $0x9c] sm:%s201] %v288
                %v290 = vld [vmem:[%s208 + $0x140] sm:%s201]
                %291 = vst [vmem:[%s209 + $0xa0] sm:%s201] %v290
                %v292 = vld [vmem:[%s208 + $0x148] sm:%s201]
                %293 = vst [vmem:[%s209 + $0xa4] sm:%s201] %v292
                %v294 = vld [vmem:[%s208 + $0x150] sm:%s201]
                %295 = vst [vmem:[%s209 + $0xa8] sm:%s201] %v294
                %v296 = vld [vmem:[%s208 + $0x158] sm:%s201]
                %297 = vst [vmem:[%s209 + $0xac] sm:%s201] %v296
                %v298 = vld [vmem:[%s208 + $0x160] sm:%s201]
                %299 = vst [vmem:[%s209 + $0xb0] sm:%s201] %v298
                %v300 = vld [vmem:[%s208 + $0x168] sm:%s201]
                %301 = vst [vmem:[%s209 + $0xb4] sm:%s201] %v300
                %v302 = vld [vmem:[%s208 + $0x170] sm:%s201]
                %303 = vst [vmem:[%s209 + $0xb8] sm:%s201] %v302
                %v304 = vld [vmem:[%s208 + $0x178] sm:%s201]
                %305 = vst [vmem:[%s209 + $0xbc] sm:%s201] %v304
                %v306 = vld [vmem:[%s208 + $0x180] sm:%s201]
                %307 = vst [vmem:[%s209 + $0xc0] sm:%s201] %v306
                %v308 = vld [vmem:[%s208 + $0x188] sm:%s201]
                %309 = vst [vmem:[%s209 + $0xc4] sm:%s201] %v308
                %v310 = vld [vmem:[%s208 + $0x190] sm:%s201]
                %311 = vst [vmem:[%s209 + $0xc8] sm:%s201] %v310
                %v312 = vld [vmem:[%s208 + $0x198] sm:%s201]
                %313 = vst [vmem:[%s209 + $0xcc] sm:%s201] %v312
                %v314 = vld [vmem:[%s208 + $0x1a0] sm:%s201]
                %315 = vst [vmem:[%s209 + $0xd0] sm:%s201] %v314
                %v316 = vld [vmem:[%s208 + $0x1a8] sm:%s201]
                %317 = vst [vmem:[%s209 + $0xd4] sm:%s201] %v316
                %v318 = vld [vmem:[%s208 + $0x1b0] sm:%s201]
                %319 = vst [vmem:[%s209 + $0xd8] sm:%s201] %v318
                %v320 = vld [vmem:[%s208 + $0x1b8] sm:%s201]
                %321 = vst [vmem:[%s209 + $0xdc] sm:%s201] %v320
                %v322 = vld [vmem:[%s208 + $0x1c0] sm:%s201]
                %323 = vst [vmem:[%s209 + $0xe0] sm:%s201] %v322
                %v324 = vld [vmem:[%s208 + $0x1c8] sm:%s201]
                %325 = vst [vmem:[%s209 + $0xe4] sm:%s201] %v324
                %v326 = vld [vmem:[%s208 + $0x1d0] sm:%s201]
                %327 = vst [vmem:[%s209 + $0xe8] sm:%s201] %v326
                %v328 = vld [vmem:[%s208 + $0x1d8] sm:%s201]
                %329 = vst [vmem:[%s209 + $0xec] sm:%s201] %v328
                %v330 = vld [vmem:[%s208 + $0x1e0] sm:%s201]
                %331 = vst [vmem:[%s209 + $0xf0] sm:%s201] %v330
                %v332 = vld [vmem:[%s208 + $0x1e8] sm:%s201]
                %333 = vst [vmem:[%s209 + $0xf4] sm:%s201] %v332
                %v334 = vld [vmem:[%s208 + $0x1f0] sm:%s201]
                %335 = vst [vmem:[%s209 + $0xf8] sm:%s201] %v334
                %v336 = vld [vmem:[%s208 + $0x1f8] sm:%s201]
                %337 = vst [vmem:[%s209 + $0xfc] sm:%s201] %v336
                %v338 = vld [vmem:[%s208 + $0x200] sm:%s201]
                %339 = vst [vmem:[%s209 + $0x100] sm:%s201] %v338
                %v340 = vld [vmem:[%s208 + $0x208] sm:%s201]
                %341 = vst [vmem:[%s209 + $0x104] sm:%s201] %v340
                %v342 = vld [vmem:[%s208 + $0x210] sm:%s201]
                %343 = vst [vmem:[%s209 + $0x108] sm:%s201] %v342
                %v344 = vld [vmem:[%s208 + $0x218] sm:%s201]
                %345 = vst [vmem:[%s209 + $0x10c] sm:%s201] %v344
                %v346 = vld [vmem:[%s208 + $0x220] sm:%s201]
                %347 = vst [vmem:[%s209 + $0x110] sm:%s201] %v346
                %v348 = vld [vmem:[%s208 + $0x228] sm:%s201]
                %349 = vst [vmem:[%s209 + $0x114] sm:%s201] %v348
                %v350 = vld [vmem:[%s208 + $0x230] sm:%s201]
                %351 = vst [vmem:[%s209 + $0x118] sm:%s201] %v350
                %v352 = vld [vmem:[%s208 + $0x238] sm:%s201]
                %353 = vst [vmem:[%s209 + $0x11c] sm:%s201] %v352
                %v354 = vld [vmem:[%s208 + $0x240] sm:%s201]
                %355 = vst [vmem:[%s209 + $0x120] sm:%s201] %v354
                %v356 = vld [vmem:[%s208 + $0x248] sm:%s201]
                %357 = vst [vmem:[%s209 + $0x124] sm:%s201] %v356
                %v358 = vld [vmem:[%s208 + $0x250] sm:%s201]
                %359 = vst [vmem:[%s209 + $0x128] sm:%s201] %v358
                %v360 = vld [vmem:[%s208 + $0x258] sm:%s201]
                %361 = vst [vmem:[%s209 + $0x12c] sm:%s201] %v360
                %v362 = vld [vmem:[%s208 + $0x260] sm:%s201]
                %363 = vst [vmem:[%s209 + $0x130] sm:%s201] %v362
                %v364 = vld [vmem:[%s208 + $0x268] sm:%s201]
                %365 = vst [vmem:[%s209 + $0x134] sm:%s201] %v364
                %v366 = vld [vmem:[%s208 + $0x270] sm:%s201]
                %367 = vst [vmem:[%s209 + $0x138] sm:%s201] %v366
                %v368 = vld [vmem:[%s208 + $0x278] sm:%s201]
                %369 = vst [vmem:[%s209 + $0x13c] sm:%s201] %v368
                %v370 = vld [vmem:[%s208 + $0x280] sm:%s201]
                %371 = vst [vmem:[%s209 + $0x140] sm:%s201] %v370
                %v372 = vld [vmem:[%s208 + $0x288] sm:%s201]
                %373 = vst [vmem:[%s209 + $0x144] sm:%s201] %v372
                %v374 = vld [vmem:[%s208 + $0x290] sm:%s201]
                %375 = vst [vmem:[%s209 + $0x148] sm:%s201] %v374
                %v376 = vld [vmem:[%s208 + $0x298] sm:%s201]
                %377 = vst [vmem:[%s209 + $0x14c] sm:%s201] %v376
                %v378 = vld [vmem:[%s208 + $0x2a0] sm:%s201]
                %379 = vst [vmem:[%s209 + $0x150] sm:%s201] %v378
                %v380 = vld [vmem:[%s208 + $0x2a8] sm:%s201]
                %381 = vst [vmem:[%s209 + $0x154] sm:%s201] %v380
                %v382 = vld [vmem:[%s208 + $0x2b0] sm:%s201]
                %383 = vst [vmem:[%s209 + $0x158] sm:%s201] %v382
                %v384 = vld [vmem:[%s208 + $0x2b8] sm:%s201]
                %385 = vst [vmem:[%s209 + $0x15c] sm:%s201] %v384
                %v386 = vld [vmem:[%s208 + $0x2c0] sm:%s201]
                %387 = vst [vmem:[%s209 + $0x160] sm:%s201] %v386
                %v388 = vld [vmem:[%s208 + $0x2c8] sm:%s201]
                %389 = vst [vmem:[%s209 + $0x164] sm:%s201] %v388
                %v390 = vld [vmem:[%s208 + $0x2d0] sm:%s201]
                %391 = vst [vmem:[%s209 + $0x168] sm:%s201] %v390
                %v392 = vld [vmem:[%s208 + $0x2d8] sm:%s201]
                %393 = vst [vmem:[%s209 + $0x16c] sm:%s201] %v392
                %v394 = vld [vmem:[%s208 + $0x2e0] sm:%s201]
                %395 = vst [vmem:[%s209 + $0x170] sm:%s201] %v394
                %v396 = vld [vmem:[%s208 + $0x2e8] sm:%s201]
                %397 = vst [vmem:[%s209 + $0x174] sm:%s201] %v396
                %v398 = vld [vmem:[%s208 + $0x2f0] sm:%s201]
                %399 = vst [vmem:[%s209 + $0x178] sm:%s201] %v398
                %v400 = vld [vmem:[%s208 + $0x2f8] sm:%s201]
                %401 = vst [vmem:[%s209 + $0x17c] sm:%s201] %v400
                %v402 = vld [vmem:[%s208 + $0x300] sm:%s201]
                %403 = vst [vmem:[%s209 + $0x180] sm:%s201] %v402
                %v404 = vld [vmem:[%s208 + $0x308] sm:%s201]
                %405 = vst [vmem:[%s209 + $0x184] sm:%s201] %v404
                %v406 = vld [vmem:[%s208 + $0x310] sm:%s201]
                %407 = vst [vmem:[%s209 + $0x188] sm:%s201] %v406
                %v408 = vld [vmem:[%s208 + $0x318] sm:%s201]
                %409 = vst [vmem:[%s209 + $0x18c] sm:%s201] %v408
                %v410 = vld [vmem:[%s208 + $0x320] sm:%s201]
                %411 = vst [vmem:[%s209 + $0x190] sm:%s201] %v410
                %v412 = vld [vmem:[%s208 + $0x328] sm:%s201]
                %413 = vst [vmem:[%s209 + $0x194] sm:%s201] %v412
                %v414 = vld [vmem:[%s208 + $0x330] sm:%s201]
                %415 = vst [vmem:[%s209 + $0x198] sm:%s201] %v414
                %v416 = vld [vmem:[%s208 + $0x338] sm:%s201]
                %417 = vst [vmem:[%s209 + $0x19c] sm:%s201] %v416
                %v418 = vld [vmem:[%s208 + $0x340] sm:%s201]
                %419 = vst [vmem:[%s209 + $0x1a0] sm:%s201] %v418
                %v420 = vld [vmem:[%s208 + $0x348] sm:%s201]
                %421 = vst [vmem:[%s209 + $0x1a4] sm:%s201] %v420
                %v422 = vld [vmem:[%s208 + $0x350] sm:%s201]
                %423 = vst [vmem:[%s209 + $0x1a8] sm:%s201] %v422
                %v424 = vld [vmem:[%s208 + $0x358] sm:%s201]
                %425 = vst [vmem:[%s209 + $0x1ac] sm:%s201] %v424
                %v426 = vld [vmem:[%s208 + $0x360] sm:%s201]
                %427 = vst [vmem:[%s209 + $0x1b0] sm:%s201] %v426
                %v428 = vld [vmem:[%s208 + $0x368] sm:%s201]
                %429 = vst [vmem:[%s209 + $0x1b4] sm:%s201] %v428
                %v430 = vld [vmem:[%s208 + $0x370] sm:%s201]
                %431 = vst [vmem:[%s209 + $0x1b8] sm:%s201] %v430
                %v432 = vld [vmem:[%s208 + $0x378] sm:%s201]
                %433 = vst [vmem:[%s209 + $0x1bc] sm:%s201] %v432
                %v434 = vld [vmem:[%s208 + $0x380] sm:%s201]
                %435 = vst [vmem:[%s209 + $0x1c0] sm:%s201] %v434
                %v436 = vld [vmem:[%s208 + $0x388] sm:%s201]
                %437 = vst [vmem:[%s209 + $0x1c4] sm:%s201] %v436
                %v438 = vld [vmem:[%s208 + $0x390] sm:%s201]
                %439 = vst [vmem:[%s209 + $0x1c8] sm:%s201] %v438
                %v440 = vld [vmem:[%s208 + $0x398] sm:%s201]
                %441 = vst [vmem:[%s209 + $0x1cc] sm:%s201] %v440
                %v442 = vld [vmem:[%s208 + $0x3a0] sm:%s201]
                %443 = vst [vmem:[%s209 + $0x1d0] sm:%s201] %v442
                %v444 = vld [vmem:[%s208 + $0x3a8] sm:%s201]
                %445 = vst [vmem:[%s209 + $0x1d4] sm:%s201] %v444
                %v446 = vld [vmem:[%s208 + $0x3b0] sm:%s201]
                %447 = vst [vmem:[%s209 + $0x1d8] sm:%s201] %v446
                %v448 = vld [vmem:[%s208 + $0x3b8] sm:%s201]
                %449 = vst [vmem:[%s209 + $0x1dc] sm:%s201] %v448
                %v450 = vld [vmem:[%s208 + $0x3c0] sm:%s201]
                %451 = vst [vmem:[%s209 + $0x1e0] sm:%s201] %v450
                %v452 = vld [vmem:[%s208 + $0x3c8] sm:%s201]
                %453 = vst [vmem:[%s209 + $0x1e4] sm:%s201] %v452
                %v454 = vld [vmem:[%s208 + $0x3d0] sm:%s201]
                %455 = vst [vmem:[%s209 + $0x1e8] sm:%s201] %v454
                %v456 = vld [vmem:[%s208 + $0x3d8] sm:%s201]
                %457 = vst [vmem:[%s209 + $0x1ec] sm:%s201] %v456
                %v458 = vld [vmem:[%s208 + $0x3e0] sm:%s201]
                %459 = vst [vmem:[%s209 + $0x1f0] sm:%s201] %v458
                %v460 = vld [vmem:[%s208 + $0x3e8] sm:%s201]
                %461 = vst [vmem:[%s209 + $0x1f4] sm:%s201] %v460
                %v462 = vld [vmem:[%s208 + $0x3f0] sm:%s201]
                %463 = vst [vmem:[%s209 + $0x1f8] sm:%s201] %v462
                %v464 = vld [vmem:[%s208 + $0x3f8] sm:%s201]
                %465 = vst [vmem:[%s209 + $0x1fc] sm:%s201] %v464
              $region41: #{fully_connected_generator_forward.4} parent=35 // loop_footer
                %s207 = sadd.s32 1, %s203
              $region42: #{fully_connected_generator_forward.4} parent=35 // loop_footer_branch
                %202 = sbr.rel target = $region38
              $region43: #{fully_connected_generator_forward.4} parent=35 // loop_exit
                _
            $region36: #{fully_connected_generator_forward.4} parent=27 // pred_fallthru
              _
          $region28: #{fully_connected_generator_forward.4} parent=23 // pred_fallthru
            _
          %742 = vnop
        $region24: #{fully_connected_generator_forward.4} parent=19 // pred_fallthru
          _
        // Predicated region
        $region62: #{fully_connected_generator_forward.4} parent=19 // pred_check
          %p743 = pneg %p79
        $region63: #{fully_connected_generator_forward.4} parent=19 // pred_check_branch
          %745 = sbr.rel (%p743) target = $region65
        $region64: #{fully_connected_generator_forward.4} parent=19 // pred_region
          %p746 = scmp.lt.s32.totalorder %s12, 1
          %s747 = scalar_select %p746, %s12, 1
          %s748 = scalar_lea.vmem %s2, %s747
        $region65: #{fully_connected_generator_forward.4} parent=19 // pred_fallthru
          _
      $region20: #{fully_connected_generator_forward.4} parent=5 // pred_fallthru
        _
      %p749 = scmp.le.s32.totalorder 1, %s12
      %p750 = scmp.lt.s32.totalorder %s12, 3
      %p751 = pnand %p749, %p750
      %p752 = pneg %p751
      // Predicated region
      $region66: #{fully_connected_generator_forward.4} parent=5 // pred_check
        _
      $region67: #{fully_connected_generator_forward.4} parent=5 // pred_check_branch
        %754 = sbr.rel (%p751) target = $region69
      $region68: #{fully_connected_generator_forward.4} parent=5 // pred_region
        %s755 = ssub.s32 %s12, 1
        %s756 = sand.u32 %s46, 1
        %s757 = sand.u32 %s46, 1
        %s758 = smul.addr %s757, 512
        %s759 = scalar_lea.vmem [#allocation2], %s758
        // Predicated region
        $region70: #{fully_connected_generator_forward.4} parent=68 // pred_check
          %p760 = pneg %p59
        $region71: #{fully_connected_generator_forward.4} parent=68 // pred_check_branch
          %762 = sbr.rel (%p760) target = $region73
        $region72: #{fully_connected_generator_forward.4} parent=68 // pred_region
          _
        $region73: #{fully_connected_generator_forward.4} parent=68 // pred_fallthru
          _
        %p763 = pneg %p33
        %p764 = pneg %p30
        %s765 = sand.u32 %s46, 1
        %s766 = sand.u32 %s46, 1
        %s767 = smul.addr %s766, 512
        %s768 = scalar_lea.vmem [#allocation2], %s767
        %p769 = pneg %p59
        %p770 = pneg %p56
        %p771 = scmp.lt.s32.totalorder %s17, 1
        %s772 = scalar_select %p771, %s17, 1
        %s773 = scalar_lea.vmem %s2, %s772
        %p774 = pneg %p85
        %p775 = pneg %p82
        %p776 = pneg %p111
        %p777 = pneg %p108
        %s778 = sand.u32 %s98, 1
        %s779 = sand.u32 %s98, 1
        %s780 = smul.addr %s779, 8
        %s781 = scalar_lea.vmem [#allocation3], %s780
        %p782 = pneg %p137
        %p783 = pneg %p134
        %p784 = scmp.lt.s32.totalorder %s17, 1
        %s785 = scalar_select %p784, %s17, 1
        %s786 = smul.addr %s785, 8
        %s787 = scalar_lea.vmem %s4, %s786
        %p788 = pneg %p163
        %p789 = pneg %p160
        %p790 = scmp.lt.s32.totalorder %s17, 1
        %s791 = scalar_select %p790, %s17, 1
        %s792 = smul.addr %s791, 8
        %s793 = scalar_lea.vmem %s5, %s792
        %p794 = scmp.lt.s32.totalorder %s17, 1
        %s795 = scalar_select %p794, %s17, 1
        %s796 = scalar_lea.vmem %s2, %s795
        %p797 = scmp.lt.s32.totalorder %s17, 1
        %s798 = scalar_select %p797, %s17, 1
        %s799 = smul.addr %s798, 8
        %s800 = scalar_lea.vmem %s4, %s799
        %p801 = scmp.lt.s32.totalorder %s17, 1
        %s802 = scalar_select %p801, %s17, 1
        %s803 = smul.addr %s802, 8
        %s804 = scalar_lea.vmem %s5, %s803
        %v805 = vld [vmem:[%s0] sm:$0xff]
        %v806 = vld [vmem:[%s0 + $0x8] sm:$0xff]
        %v807 = vld [vmem:[%s0 + $0x10] sm:$0xff]
        %v808 = vld [vmem:[%s0 + $0x18] sm:$0xff]
        %v809 = vld [vmem:[%s0 + $0x20] sm:$0xff]
        %v810 = vld [vmem:[%s0 + $0x28] sm:$0xff]
        %v811 = vld [vmem:[%s0 + $0x30] sm:$0xff]
        %v812 = vld [vmem:[%s0 + $0x38] sm:$0xff]
        %v813 = vld [vmem:[%s759] sm:$0xf]
        %v814 = vld [vmem:[%s759 + $0x4] sm:$0xf]
        %v815 = vld [vmem:[%s759 + $0x8] sm:$0xf]
        %v816 = vld [vmem:[%s759 + $0xc] sm:$0xf]
        %v817 = vld [vmem:[%s759 + $0x10] sm:$0xf]
        %v818 = vld [vmem:[%s759 + $0x14] sm:$0xf]
        %v819 = vld [vmem:[%s759 + $0x18] sm:$0xf]
        %v820 = vld [vmem:[%s759 + $0x1c] sm:$0xf]
        %v821 = vld [vmem:[%s759 + $0x20] sm:$0xf]
        %v822 = vld [vmem:[%s759 + $0x24] sm:$0xf]
        %v823 = vld [vmem:[%s759 + $0x28] sm:$0xf]
        %v824 = vld [vmem:[%s759 + $0x2c] sm:$0xf]
        %v825 = vld [vmem:[%s759 + $0x30] sm:$0xf]
        %v826 = vld [vmem:[%s759 + $0x34] sm:$0xf]
        %v827 = vld [vmem:[%s759 + $0x38] sm:$0xf]
        %v828 = vld [vmem:[%s759 + $0x3c] sm:$0xf]
        %v829 = vld [vmem:[%s759 + $0x40] sm:$0xf]
        %v830 = vld [vmem:[%s759 + $0x44] sm:$0xf]
        %v831 = vld [vmem:[%s759 + $0x48] sm:$0xf]
        %v832 = vld [vmem:[%s759 + $0x4c] sm:$0xf]
        %v833 = vld [vmem:[%s759 + $0x50] sm:$0xf]
        %v834 = vld [vmem:[%s759 + $0x54] sm:$0xf]
        %v835 = vld [vmem:[%s759 + $0x58] sm:$0xf]
        %v836 = vld [vmem:[%s759 + $0x5c] sm:$0xf]
        %v837 = vld [vmem:[%s759 + $0x60] sm:$0xf]
        %v838 = vld [vmem:[%s759 + $0x64] sm:$0xf]
        %v839 = vld [vmem:[%s759 + $0x68] sm:$0xf]
        %v840 = vld [vmem:[%s759 + $0x6c] sm:$0xf]
        %v841 = vld [vmem:[%s759 + $0x70] sm:$0xf]
        %v842 = vld [vmem:[%s759 + $0x74] sm:$0xf]
        %v843 = vld [vmem:[%s759 + $0x78] sm:$0xf]
        %v844 = vld [vmem:[%s759 + $0x7c] sm:$0xf]
        %v845 = vld [vmem:[%s759 + $0x80] sm:$0xf]
        %v846 = vld [vmem:[%s759 + $0x84] sm:$0xf]
        %v847 = vld [vmem:[%s759 + $0x88] sm:$0xf]
        %v848 = vld [vmem:[%s759 + $0x8c] sm:$0xf]
        %v849 = vld [vmem:[%s759 + $0x90] sm:$0xf]
        %v850 = vld [vmem:[%s759 + $0x94] sm:$0xf]
        %v851 = vld [vmem:[%s759 + $0x98] sm:$0xf]
        %v852 = vld [vmem:[%s759 + $0x9c] sm:$0xf]
        %v853 = vld [vmem:[%s759 + $0xa0] sm:$0xf]
        %v854 = vld [vmem:[%s759 + $0xa4] sm:$0xf]
        %v855 = vld [vmem:[%s759 + $0xa8] sm:$0xf]
        %v856 = vld [vmem:[%s759 + $0xac] sm:$0xf]
        %v857 = vld [vmem:[%s759 + $0xb0] sm:$0xf]
        %v858 = vld [vmem:[%s759 + $0xb4] sm:$0xf]
        %v859 = vld [vmem:[%s759 + $0xb8] sm:$0xf]
        %v860 = vld [vmem:[%s759 + $0xbc] sm:$0xf]
        %v861 = vld [vmem:[%s759 + $0xc0] sm:$0xf]
        %v862 = vld [vmem:[%s759 + $0xc4] sm:$0xf]
        %v863 = vld [vmem:[%s759 + $0xc8] sm:$0xf]
        %v864 = vld [vmem:[%s759 + $0xcc] sm:$0xf]
        %v865 = vld [vmem:[%s759 + $0xd0] sm:$0xf]
        %v866 = vld [vmem:[%s759 + $0xd4] sm:$0xf]
        %v867 = vld [vmem:[%s759 + $0xd8] sm:$0xf]
        %v868 = vld [vmem:[%s759 + $0xdc] sm:$0xf]
        %v869 = vld [vmem:[%s759 + $0xe0] sm:$0xf]
        %v870 = vld [vmem:[%s759 + $0xe4] sm:$0xf]
        %v871 = vld [vmem:[%s759 + $0xe8] sm:$0xf]
        %v872 = vld [vmem:[%s759 + $0xec] sm:$0xf]
        %v873 = vld [vmem:[%s759 + $0xf0] sm:$0xf]
        %v874 = vld [vmem:[%s759 + $0xf4] sm:$0xf]
        %v875 = vld [vmem:[%s759 + $0xf8] sm:$0xf]
        %v876 = vld [vmem:[%s759 + $0xfc] sm:$0xf]
        %v877 = vld [vmem:[%s759 + $0x100] sm:$0xf]
        %v878 = vld [vmem:[%s759 + $0x104] sm:$0xf]
        %v879 = vld [vmem:[%s759 + $0x108] sm:$0xf]
        %v880 = vld [vmem:[%s759 + $0x10c] sm:$0xf]
        %v881 = vld [vmem:[%s759 + $0x110] sm:$0xf]
        %v882 = vld [vmem:[%s759 + $0x114] sm:$0xf]
        %v883 = vld [vmem:[%s759 + $0x118] sm:$0xf]
        %v884 = vld [vmem:[%s759 + $0x11c] sm:$0xf]
        %v885 = vld [vmem:[%s759 + $0x120] sm:$0xf]
        %v886 = vld [vmem:[%s759 + $0x124] sm:$0xf]
        %v887 = vld [vmem:[%s759 + $0x128] sm:$0xf]
        %v888 = vld [vmem:[%s759 + $0x12c] sm:$0xf]
        %v889 = vld [vmem:[%s759 + $0x130] sm:$0xf]
        %v890 = vld [vmem:[%s759 + $0x134] sm:$0xf]
        %v891 = vld [vmem:[%s759 + $0x138] sm:$0xf]
        %v892 = vld [vmem:[%s759 + $0x13c] sm:$0xf]
        %v893 = vld [vmem:[%s759 + $0x140] sm:$0xf]
        %v894 = vld [vmem:[%s759 + $0x144] sm:$0xf]
        %v895 = vld [vmem:[%s759 + $0x148] sm:$0xf]
        %v896 = vld [vmem:[%s759 + $0x14c] sm:$0xf]
        %v897 = vld [vmem:[%s759 + $0x150] sm:$0xf]
        %v898 = vld [vmem:[%s759 + $0x154] sm:$0xf]
        %v899 = vld [vmem:[%s759 + $0x158] sm:$0xf]
        %v900 = vld [vmem:[%s759 + $0x15c] sm:$0xf]
        %v901 = vld [vmem:[%s759 + $0x160] sm:$0xf]
        %v902 = vld [vmem:[%s759 + $0x164] sm:$0xf]
        %v903 = vld [vmem:[%s759 + $0x168] sm:$0xf]
        %v904 = vld [vmem:[%s759 + $0x16c] sm:$0xf]
        %v905 = vld [vmem:[%s759 + $0x170] sm:$0xf]
        %v906 = vld [vmem:[%s759 + $0x174] sm:$0xf]
        %v907 = vld [vmem:[%s759 + $0x178] sm:$0xf]
        %v908 = vld [vmem:[%s759 + $0x17c] sm:$0xf]
        %v909 = vld [vmem:[%s759 + $0x180] sm:$0xf]
        %v910 = vld [vmem:[%s759 + $0x184] sm:$0xf]
        %v911 = vld [vmem:[%s759 + $0x188] sm:$0xf]
        %v912 = vld [vmem:[%s759 + $0x18c] sm:$0xf]
        %v913 = vld [vmem:[%s759 + $0x190] sm:$0xf]
        %v914 = vld [vmem:[%s759 + $0x194] sm:$0xf]
        %v915 = vld [vmem:[%s759 + $0x198] sm:$0xf]
        %v916 = vld [vmem:[%s759 + $0x19c] sm:$0xf]
        %v917 = vld [vmem:[%s759 + $0x1a0] sm:$0xf]
        %v918 = vld [vmem:[%s759 + $0x1a4] sm:$0xf]
        %v919 = vld [vmem:[%s759 + $0x1a8] sm:$0xf]
        %v920 = vld [vmem:[%s759 + $0x1ac] sm:$0xf]
        %v921 = vld [vmem:[%s759 + $0x1b0] sm:$0xf]
        %v922 = vld [vmem:[%s759 + $0x1b4] sm:$0xf]
        %v923 = vld [vmem:[%s759 + $0x1b8] sm:$0xf]
        %v924 = vld [vmem:[%s759 + $0x1bc] sm:$0xf]
        %v925 = vld [vmem:[%s759 + $0x1c0] sm:$0xf]
        %v926 = vld [vmem:[%s759 + $0x1c4] sm:$0xf]
        %v927 = vld [vmem:[%s759 + $0x1c8] sm:$0xf]
        %v928 = vld [vmem:[%s759 + $0x1cc] sm:$0xf]
        %v929 = vld [vmem:[%s759 + $0x1d0] sm:$0xf]
        %v930 = vld [vmem:[%s759 + $0x1d4] sm:$0xf]
        %v931 = vld [vmem:[%s759 + $0x1d8] sm:$0xf]
        %v932 = vld [vmem:[%s759 + $0x1dc] sm:$0xf]
        %v933 = vld [vmem:[%s759 + $0x1e0] sm:$0xf]
        %v934 = vld [vmem:[%s759 + $0x1e4] sm:$0xf]
        %v935 = vld [vmem:[%s759 + $0x1e8] sm:$0xf]
        %v936 = vld [vmem:[%s759 + $0x1ec] sm:$0xf]
        %v937 = vld [vmem:[%s759 + $0x1f0] sm:$0xf]
        %v938 = vld [vmem:[%s759 + $0x1f4] sm:$0xf]
        %v939 = vld [vmem:[%s759 + $0x1f8] sm:$0xf]
        %v940 = vld [vmem:[%s759 + $0x1fc] sm:$0xf]
        %v941 = vld [vmem:[%s796] sm:$0x1]
        %v943 = vperm.slane %v941, 0
        %v953 = vunpack.c.l.b16 %v805
        %v954 = vunpack.c.h.b16 %v805
        %v955 = vunpack.c.l.b16 %v806
        %v956 = vunpack.c.h.b16 %v806
        %v957 = vunpack.c.l.b16 %v807
        %v958 = vunpack.c.h.b16 %v807
        %v959 = vunpack.c.l.b16 %v808
        %v960 = vunpack.c.h.b16 %v808
        %v961 = vunpack.c.l.b16 %v809
        %v962 = vunpack.c.h.b16 %v809
        %v963 = vunpack.c.l.b16 %v810
        %v964 = vunpack.c.h.b16 %v810
        %v965 = vunpack.c.l.b16 %v811
        %v966 = vunpack.c.h.b16 %v811
        %v967 = vunpack.c.l.b16 %v812
        %v968 = vunpack.c.h.b16 %v812
        %v969 = vpack.c.b16 %v961, %v953
        %v970 = vpack.c.b16 %v962, %v954
        %v971 = vpack.c.b16 %v963, %v955
        %v972 = vpack.c.b16 %v964, %v956
        %v973 = vpack.c.b16 %v965, %v957
        %v974 = vpack.c.b16 %v966, %v958
        %v975 = vpack.c.b16 %v967, %v959
        %v976 = vpack.c.b16 %v968, %v960
        %v1113 = vunpack.c.l.b16 %v813
        %v1114 = vunpack.c.l.b16 %v814
        %v1115 = vunpack.c.l.b16 %v815
        %v1116 = vunpack.c.l.b16 %v816
        %v1117 = vunpack.c.l.b16 %v817
        %v1118 = vunpack.c.l.b16 %v818
        %v1119 = vunpack.c.l.b16 %v819
        %v1120 = vunpack.c.l.b16 %v820
        %v1121 = vunpack.c.l.b16 %v821
        %v1122 = vunpack.c.l.b16 %v822
        %v1123 = vunpack.c.l.b16 %v823
        %v1124 = vunpack.c.l.b16 %v824
        %v1125 = vunpack.c.l.b16 %v825
        %v1126 = vunpack.c.l.b16 %v826
        %v1127 = vunpack.c.l.b16 %v827
        %v1128 = vunpack.c.l.b16 %v828
        %v1129 = vunpack.c.l.b16 %v829
        %v1130 = vunpack.c.l.b16 %v830
        %v1131 = vunpack.c.l.b16 %v831
        %v1132 = vunpack.c.l.b16 %v832
        %v1133 = vunpack.c.l.b16 %v833
        %v1134 = vunpack.c.l.b16 %v834
        %v1135 = vunpack.c.l.b16 %v835
        %v1136 = vunpack.c.l.b16 %v836
        %v1137 = vunpack.c.l.b16 %v837
        %v1138 = vunpack.c.l.b16 %v838
        %v1139 = vunpack.c.l.b16 %v839
        %v1140 = vunpack.c.l.b16 %v840
        %v1141 = vunpack.c.l.b16 %v841
        %v1142 = vunpack.c.l.b16 %v842
        %v1143 = vunpack.c.l.b16 %v843
        %v1144 = vunpack.c.l.b16 %v844
        %v1145 = vunpack.c.l.b16 %v845
        %v1146 = vunpack.c.l.b16 %v846
        %v1147 = vunpack.c.l.b16 %v847
        %v1148 = vunpack.c.l.b16 %v848
        %v1149 = vunpack.c.l.b16 %v849
        %v1150 = vunpack.c.l.b16 %v850
        %v1151 = vunpack.c.l.b16 %v851
        %v1152 = vunpack.c.l.b16 %v852
        %v1153 = vunpack.c.l.b16 %v853
        %v1154 = vunpack.c.l.b16 %v854
        %v1155 = vunpack.c.l.b16 %v855
        %v1156 = vunpack.c.l.b16 %v856
        %v1157 = vunpack.c.l.b16 %v857
        %v1158 = vunpack.c.l.b16 %v858
        %v1159 = vunpack.c.l.b16 %v859
        %v1160 = vunpack.c.l.b16 %v860
        %v1161 = vunpack.c.l.b16 %v861
        %v1162 = vunpack.c.l.b16 %v862
        %v1163 = vunpack.c.l.b16 %v863
        %v1164 = vunpack.c.l.b16 %v864
        %v1165 = vunpack.c.l.b16 %v865
        %v1166 = vunpack.c.l.b16 %v866
        %v1167 = vunpack.c.l.b16 %v867
        %v1168 = vunpack.c.l.b16 %v868
        %v1169 = vunpack.c.l.b16 %v869
        %v1170 = vunpack.c.l.b16 %v870
        %v1171 = vunpack.c.l.b16 %v871
        %v1172 = vunpack.c.l.b16 %v872
        %v1173 = vunpack.c.l.b16 %v873
        %v1174 = vunpack.c.l.b16 %v874
        %v1175 = vunpack.c.l.b16 %v875
        %v1176 = vunpack.c.l.b16 %v876
        %v1177 = vunpack.c.l.b16 %v877
        %v1178 = vunpack.c.l.b16 %v878
        %v1179 = vunpack.c.l.b16 %v879
        %v1180 = vunpack.c.l.b16 %v880
        %v1181 = vunpack.c.l.b16 %v881
        %v1182 = vunpack.c.l.b16 %v882
        %v1183 = vunpack.c.l.b16 %v883
        %v1184 = vunpack.c.l.b16 %v884
        %v1185 = vunpack.c.l.b16 %v885
        %v1186 = vunpack.c.l.b16 %v886
        %v1187 = vunpack.c.l.b16 %v887
        %v1188 = vunpack.c.l.b16 %v888
        %v1189 = vunpack.c.l.b16 %v889
        %v1190 = vunpack.c.l.b16 %v890
        %v1191 = vunpack.c.l.b16 %v891
        %v1192 = vunpack.c.l.b16 %v892
        %v1193 = vunpack.c.l.b16 %v893
        %v1194 = vunpack.c.l.b16 %v894
        %v1195 = vunpack.c.l.b16 %v895
        %v1196 = vunpack.c.l.b16 %v896
        %v1197 = vunpack.c.l.b16 %v897
        %v1198 = vunpack.c.l.b16 %v898
        %v1199 = vunpack.c.l.b16 %v899
        %v1200 = vunpack.c.l.b16 %v900
        %v1201 = vunpack.c.l.b16 %v901
        %v1202 = vunpack.c.l.b16 %v902
        %v1203 = vunpack.c.l.b16 %v903
        %v1204 = vunpack.c.l.b16 %v904
        %v1205 = vunpack.c.l.b16 %v905
        %v1206 = vunpack.c.l.b16 %v906
        %v1207 = vunpack.c.l.b16 %v907
        %v1208 = vunpack.c.l.b16 %v908
        %v1209 = vunpack.c.l.b16 %v909
        %v1210 = vunpack.c.l.b16 %v910
        %v1211 = vunpack.c.l.b16 %v911
        %v1212 = vunpack.c.l.b16 %v912
        %v1213 = vunpack.c.l.b16 %v913
        %v1214 = vunpack.c.l.b16 %v914
        %v1215 = vunpack.c.l.b16 %v915
        %v1216 = vunpack.c.l.b16 %v916
        %v1217 = vunpack.c.l.b16 %v917
        %v1218 = vunpack.c.l.b16 %v918
        %v1219 = vunpack.c.l.b16 %v919
        %v1220 = vunpack.c.l.b16 %v920
        %v1221 = vunpack.c.l.b16 %v921
        %v1222 = vunpack.c.l.b16 %v922
        %v1223 = vunpack.c.l.b16 %v923
        %v1224 = vunpack.c.l.b16 %v924
        %v1225 = vunpack.c.l.b16 %v925
        %v1226 = vunpack.c.l.b16 %v926
        %v1227 = vunpack.c.l.b16 %v927
        %v1228 = vunpack.c.l.b16 %v928
        %v1229 = vunpack.c.l.b16 %v929
        %v1230 = vunpack.c.l.b16 %v930
        %v1231 = vunpack.c.l.b16 %v931
        %v1232 = vunpack.c.l.b16 %v932
        %v1233 = vunpack.c.l.b16 %v933
        %v1234 = vunpack.c.l.b16 %v934
        %v1235 = vunpack.c.l.b16 %v935
        %v1236 = vunpack.c.l.b16 %v936
        %v1237 = vunpack.c.l.b16 %v937
        %v1238 = vunpack.c.l.b16 %v938
        %v1239 = vunpack.c.l.b16 %v939
        %v1240 = vunpack.c.l.b16 %v940
        %v1241 = vpack.c.b16 %v1114, %v1113
        %v1242 = vpack.c.b16 %v1116, %v1115
        %v1243 = vpack.c.b16 %v1118, %v1117
        %v1244 = vpack.c.b16 %v1120, %v1119
        %v1245 = vpack.c.b16 %v1122, %v1121
        %v1246 = vpack.c.b16 %v1124, %v1123
        %v1247 = vpack.c.b16 %v1126, %v1125
        %v1248 = vpack.c.b16 %v1128, %v1127
        %v1249 = vpack.c.b16 %v1130, %v1129
        %v1250 = vpack.c.b16 %v1132, %v1131
        %v1251 = vpack.c.b16 %v1134, %v1133
        %v1252 = vpack.c.b16 %v1136, %v1135
        %v1253 = vpack.c.b16 %v1138, %v1137
        %v1254 = vpack.c.b16 %v1140, %v1139
        %v1255 = vpack.c.b16 %v1142, %v1141
        %v1256 = vpack.c.b16 %v1144, %v1143
        %v1257 = vpack.c.b16 %v1146, %v1145
        %v1258 = vpack.c.b16 %v1148, %v1147
        %v1259 = vpack.c.b16 %v1150, %v1149
        %v1260 = vpack.c.b16 %v1152, %v1151
        %v1261 = vpack.c.b16 %v1154, %v1153
        %v1262 = vpack.c.b16 %v1156, %v1155
        %v1263 = vpack.c.b16 %v1158, %v1157
        %v1264 = vpack.c.b16 %v1160, %v1159
        %v1265 = vpack.c.b16 %v1162, %v1161
        %v1266 = vpack.c.b16 %v1164, %v1163
        %v1267 = vpack.c.b16 %v1166, %v1165
        %v1268 = vpack.c.b16 %v1168, %v1167
        %v1269 = vpack.c.b16 %v1170, %v1169
        %v1270 = vpack.c.b16 %v1172, %v1171
        %v1271 = vpack.c.b16 %v1174, %v1173
        %v1272 = vpack.c.b16 %v1176, %v1175
        %v1273 = vpack.c.b16 %v1178, %v1177
        %v1274 = vpack.c.b16 %v1180, %v1179
        %v1275 = vpack.c.b16 %v1182, %v1181
        %v1276 = vpack.c.b16 %v1184, %v1183
        %v1277 = vpack.c.b16 %v1186, %v1185
        %v1278 = vpack.c.b16 %v1188, %v1187
        %v1279 = vpack.c.b16 %v1190, %v1189
        %v1280 = vpack.c.b16 %v1192, %v1191
        %v1281 = vpack.c.b16 %v1194, %v1193
        %v1282 = vpack.c.b16 %v1196, %v1195
        %v1283 = vpack.c.b16 %v1198, %v1197
        %v1284 = vpack.c.b16 %v1200, %v1199
        %v1285 = vpack.c.b16 %v1202, %v1201
        %v1286 = vpack.c.b16 %v1204, %v1203
        %v1287 = vpack.c.b16 %v1206, %v1205
        %v1288 = vpack.c.b16 %v1208, %v1207
        %v1289 = vpack.c.b16 %v1210, %v1209
        %v1290 = vpack.c.b16 %v1212, %v1211
        %v1291 = vpack.c.b16 %v1214, %v1213
        %v1292 = vpack.c.b16 %v1216, %v1215
        %v1293 = vpack.c.b16 %v1218, %v1217
        %v1294 = vpack.c.b16 %v1220, %v1219
        %v1295 = vpack.c.b16 %v1222, %v1221
        %v1296 = vpack.c.b16 %v1224, %v1223
        %v1297 = vpack.c.b16 %v1226, %v1225
        %v1298 = vpack.c.b16 %v1228, %v1227
        %v1299 = vpack.c.b16 %v1230, %v1229
        %v1300 = vpack.c.b16 %v1232, %v1231
        %v1301 = vpack.c.b16 %v1234, %v1233
        %v1302 = vpack.c.b16 %v1236, %v1235
        %v1303 = vpack.c.b16 %v1238, %v1237
        %v1304 = vpack.c.b16 %v1240, %v1239
        %1369 = vmatpush.bf16.msra.mxu0 %v1248
        %1370 = vmatpush.bf16.msra.mxu0 %v1247
        %1371 = vmatpush.bf16.msra.mxu0 %v1246
        %1372 = vmatpush.bf16.msra.mxu0 %v1245
        %1373 = vmatpush.bf16.msra.mxu0 %v1244
        %1374 = vmatpush.bf16.msra.mxu0 %v1243
        %1375 = vmatpush.bf16.msra.mxu0 %v1242
        %1376 = vmatpush.bf16.msra.mxu0 %v1241
        %1377 = vmatmul.bf16.gmra.mxu0 %v969
        %v1378 = vpop.f32.mrf.mxu0
        %v1379 = vadd.f32 %v943, %v1378
        %v1380 = vpop.f32.mrf.mxu0
        %v1381 = vadd.f32 %v943, %v1380
        %1382 = vdwg.mxu0
        %1383 = vmatpush.bf16.msra.mxu0 %v1256
        %1384 = vmatpush.bf16.msra.mxu0 %v1255
        %1385 = vmatpush.bf16.msra.mxu0 %v1254
        %1386 = vmatpush.bf16.msra.mxu0 %v1253
        %1387 = vmatpush.bf16.msra.mxu0 %v1252
        %1388 = vmatpush.bf16.msra.mxu0 %v1251
        %1389 = vmatpush.bf16.msra.mxu0 %v1250
        %1390 = vmatpush.bf16.msra.mxu0 %v1249
        %1391 = vmatmul.bf16.gmra.mxu0 %v970
        %v1392 = vpop.f32.mrf.mxu0
        %v1393 = vadd.f32 %v1379, %v1392
        %v1394 = vpop.f32.mrf.mxu0
        %v1395 = vadd.f32 %v1381, %v1394
        %1396 = vdwg.mxu0
        %1397 = vmatpush.bf16.msra.mxu0 %v1264
        %1398 = vmatpush.bf16.msra.mxu0 %v1263
        %1399 = vmatpush.bf16.msra.mxu0 %v1262
        %1400 = vmatpush.bf16.msra.mxu0 %v1261
        %1401 = vmatpush.bf16.msra.mxu0 %v1260
        %1402 = vmatpush.bf16.msra.mxu0 %v1259
        %1403 = vmatpush.bf16.msra.mxu0 %v1258
        %1404 = vmatpush.bf16.msra.mxu0 %v1257
        %1405 = vmatmul.bf16.gmra.mxu0 %v971
        %v1406 = vpop.f32.mrf.mxu0
        %v1407 = vadd.f32 %v1393, %v1406
        %v1408 = vpop.f32.mrf.mxu0
        %v1409 = vadd.f32 %v1395, %v1408
        %1410 = vdwg.mxu0
        %1411 = vmatpush.bf16.msra.mxu0 %v1272
        %1412 = vmatpush.bf16.msra.mxu0 %v1271
        %1413 = vmatpush.bf16.msra.mxu0 %v1270
        %1414 = vmatpush.bf16.msra.mxu0 %v1269
        %1415 = vmatpush.bf16.msra.mxu0 %v1268
        %1416 = vmatpush.bf16.msra.mxu0 %v1267
        %1417 = vmatpush.bf16.msra.mxu0 %v1266
        %1418 = vmatpush.bf16.msra.mxu0 %v1265
        %1419 = vmatmul.bf16.gmra.mxu0 %v972
        %v1420 = vpop.f32.mrf.mxu0
        %v1421 = vadd.f32 %v1407, %v1420
        %v1422 = vpop.f32.mrf.mxu0
        %v1423 = vadd.f32 %v1409, %v1422
        %1424 = vdwg.mxu0
        %1425 = vmatpush.bf16.msra.mxu0 %v1280
        %1426 = vmatpush.bf16.msra.mxu0 %v1279
        %1427 = vmatpush.bf16.msra.mxu0 %v1278
        %1428 = vmatpush.bf16.msra.mxu0 %v1277
        %1429 = vmatpush.bf16.msra.mxu0 %v1276
        %1430 = vmatpush.bf16.msra.mxu0 %v1275
        %1431 = vmatpush.bf16.msra.mxu0 %v1274
        %1432 = vmatpush.bf16.msra.mxu0 %v1273
        %1433 = vmatmul.bf16.gmra.mxu0 %v973
        %v1434 = vpop.f32.mrf.mxu0
        %v1435 = vadd.f32 %v1421, %v1434
        %v1436 = vpop.f32.mrf.mxu0
        %v1437 = vadd.f32 %v1423, %v1436
        %1438 = vdwg.mxu0
        %1439 = vmatpush.bf16.msra.mxu0 %v1288
        %1440 = vmatpush.bf16.msra.mxu0 %v1287
        %1441 = vmatpush.bf16.msra.mxu0 %v1286
        %1442 = vmatpush.bf16.msra.mxu0 %v1285
        %1443 = vmatpush.bf16.msra.mxu0 %v1284
        %1444 = vmatpush.bf16.msra.mxu0 %v1283
        %1445 = vmatpush.bf16.msra.mxu0 %v1282
        %1446 = vmatpush.bf16.msra.mxu0 %v1281
        %1447 = vmatmul.bf16.gmra.mxu0 %v974
        %v1448 = vpop.f32.mrf.mxu0
        %v1449 = vadd.f32 %v1435, %v1448
        %v1450 = vpop.f32.mrf.mxu0
        %v1451 = vadd.f32 %v1437, %v1450
        %1452 = vdwg.mxu0
        %1453 = vmatpush.bf16.msra.mxu0 %v1296
        %1454 = vmatpush.bf16.msra.mxu0 %v1295
        %1455 = vmatpush.bf16.msra.mxu0 %v1294
        %1456 = vmatpush.bf16.msra.mxu0 %v1293
        %1457 = vmatpush.bf16.msra.mxu0 %v1292
        %1458 = vmatpush.bf16.msra.mxu0 %v1291
        %1459 = vmatpush.bf16.msra.mxu0 %v1290
        %1460 = vmatpush.bf16.msra.mxu0 %v1289
        %1461 = vmatmul.bf16.gmra.mxu0 %v975
        %v1462 = vpop.f32.mrf.mxu0
        %v1463 = vadd.f32 %v1449, %v1462
        %v1464 = vpop.f32.mrf.mxu0
        %v1465 = vadd.f32 %v1451, %v1464
        %1466 = vdwg.mxu0
        %1467 = vmatpush.bf16.msra.mxu0 %v1304
        %1468 = vmatpush.bf16.msra.mxu0 %v1303
        %1469 = vmatpush.bf16.msra.mxu0 %v1302
        %1470 = vmatpush.bf16.msra.mxu0 %v1301
        %1471 = vmatpush.bf16.msra.mxu0 %v1300
        %1472 = vmatpush.bf16.msra.mxu0 %v1299
        %1473 = vmatpush.bf16.msra.mxu0 %v1298
        %1474 = vmatpush.bf16.msra.mxu0 %v1297
        %1475 = vmatmul.bf16.gmra.mxu0 %v976
        %v1476 = vpop.f32.mrf.mxu0
        %v1477 = vadd.f32 %v1463, %v1476
        %v1478 = vpop.f32.mrf.mxu0
        %v1479 = vadd.f32 %v1465, %v1478
        %1480 = vdwg.mxu0
        %v1481 = vtanh.pop %v1477
        %v1482 = vtanh.pop %v1479
        %v1483 = vpack.c.bf16 %v1481, %v1481
        %v1484 = vpack.c.bf16 %v1482, %v1482
        %1485 = vst [vmem:[%s781] sm:$0xf] %v1483
        %1486 = vst [vmem:[%s781 + $0x4] sm:$0xf] %v1484
        %v1487 = vunpack.c.l.bf16 %v1483
        %v1488 = vunpack.c.l.bf16 %v1484
        %v1489 = vlaneseq
        %v1490 = vshrl.u32 %v1489, 7
        %v1491 = vadd.s32 %v1490, 8
        %s1492 = smul.u32 %s17, 128
        %v1493 = vlaneseq
        %v1494 = vand.u32 %v1493, 127
        %v1495 = vstv %s1492
        %v1496 = vadd.s32 %v1495, %v1494
        %vm1497 = vcmp.lt.s32.totalorder %v1490, 6
        %vm1498 = vcmp.lt.s32.totalorder %v1491, 6
        %vm1499 = vcmp.lt.s32.totalorder %v1496, 192
        %vm1500 = vmand %vm1497, %vm1499
        %vm1501 = vmand %vm1498, %vm1499
        %v1502 = vsel %vm1500, %v1487, inf
        %v1503 = vsel %vm1501, %v1488, inf
        %v1504 = vmin.f32 %v1502, %v1503
        %1505 = vmin.xlane.f32.xlu0 %v1504
        %v1506 = vpop.xlane.xlu0 %1505
        %v1507 = vrot.slane %v1506, 4
        %v1508 = vmin.f32 %v1506, %v1507
        %v1509 = vrot.slane %v1508, 2
        %v1510 = vmin.f32 %v1508, %v1509
        %v1511 = vrot.slane %v1510, 1
        %v1512 = vmin.f32 %v1510, %v1511
        %s1513 = vtos %v1512
        %v1514 = vsel %vm1500, %v1487, -inf
        %v1515 = vsel %vm1501, %v1488, -inf
        %v1516 = vmax.f32 %v1514, %v1515
        %1517 = vmax.xlane.f32.xlu0 %v1516
        %v1518 = vpop.xlane.xlu0 %1517
        %v1519 = vrot.slane %v1518, 4
        %v1520 = vmax.f32 %v1518, %v1519
        %v1521 = vrot.slane %v1520, 2
        %v1522 = vmax.f32 %v1520, %v1521
        %v1523 = vrot.slane %v1522, 1
        %v1524 = vmax.f32 %v1522, %v1523
        %s1525 = vtos %v1524
        %v1526 = vstv %s1513
        %1527 = vst [vmem:[%s800] sm:$0xff] %v1526
        %v1528 = vstv %s1525
        %1529 = vst [vmem:[%s804] sm:$0xff] %v1528
        %s1530 = sand.u32 %s98, 1
        %s1531 = sand.u32 %s98, 1
        %s1532 = smul.addr %s1531, 8
        %s1533 = scalar_lea.vmem [#allocation3], %s1532
        %p1534 = scmp.lt.s32.totalorder %s17, 1
        %s1535 = scalar_select %p1534, %s17, 1
        %s1536 = smul.addr %s1535, 8
        %s1537 = scalar_lea.vmem %s4, %s1536
        %p1538 = scmp.lt.s32.totalorder %s17, 1
        %s1539 = scalar_select %p1538, %s17, 1
        %s1540 = smul.addr %s1539, 8
        %s1541 = scalar_lea.vmem %s5, %s1540
        // Predicated region
        $region74: #{fully_connected_generator_forward.4} parent=68 // pred_check
          %p1542 = pneg %p108
        $region75: #{fully_connected_generator_forward.4} parent=68 // pred_check_branch
          %1544 = sbr.rel (%p1542) target = $region77
        $region76: #{fully_connected_generator_forward.4} parent=68 // pred_region
          %s1545 = smul.addr %s17, 4
          %s1546 = scalar_lea.vmem %s3, %s1545
          // Predicated region
          $region78: #{fully_connected_generator_forward.4} parent=76 // pred_check
            _
          $region79: #{fully_connected_generator_forward.4} parent=76 // pred_check_branch
            %1548 = sbr.rel (0) target = $region81
          $region80: #{fully_connected_generator_forward.4} parent=76 // pred_region
            // Predicated region
            $region82: #{fully_connected_generator_forward.4} parent=80 // pred_check
              _
            $region83: #{fully_connected_generator_forward.4} parent=80 // pred_check_branch
              %1550 = sbr.rel target = $region85
            $region84: #{fully_connected_generator_forward.4} parent=80 // pred_region
              // Predicated region
              $region97: #{fully_connected_generator_forward.4} parent=84 // pred_check
                _
              $region98: #{fully_connected_generator_forward.4} parent=84 // pred_check_branch
                %1568 = sbr.rel (0) target = $region100
              $region99: #{fully_connected_generator_forward.4} parent=84 // pred_region
                loop: start=0, step=1, limit=1
                $region101: #{fully_connected_generator_forward.4} parent=99 // loop_pre_header
                  _
                $region102: #{fully_connected_generator_forward.4} parent=99 // loop_header
                  %s1570 = sphi 0, %s1574
                  %p1571 = scmp.ge.s32.totalorder %s1570, 1
                  %s1575 = sphi %s1533, %s1533
                  %s1576 = sphi %s1546, %s1546
                $region103: #{fully_connected_generator_forward.4} parent=99 // loop_header_branch
                  %1573 = sbr.rel (%p1571) target = $region107
                $region104: #{fully_connected_generator_forward.4} parent=99 // loop_body
                  _
                $region105: #{fully_connected_generator_forward.4} parent=99 // loop_footer
                  %s1574 = sadd.s32 1, %s1570
                $region106: #{fully_connected_generator_forward.4} parent=99 // loop_footer_branch
                  %1569 = sbr.rel target = $region102
                $region107: #{fully_connected_generator_forward.4} parent=99 // loop_exit
                  _
                %s1578 = ssub.s32 16, 1
                loop: start=0, step=1, limit=1
                $region108: #{fully_connected_generator_forward.4} parent=99 // loop_pre_header
                  _
                $region109: #{fully_connected_generator_forward.4} parent=99 // loop_header
                  %s1580 = sphi 0, %s1584
                  %p1581 = scmp.ge.s32.totalorder %s1580, 1
                  %s1585 = sphi %s1533, %s1533
                  %s1586 = sphi %s1546, %s1546
                $region110: #{fully_connected_generator_forward.4} parent=99 // loop_header_branch
                  %1583 = sbr.rel (%p1581) target = $region114
                $region111: #{fully_connected_generator_forward.4} parent=99 // loop_body
                  %v1587 = vld [vmem:[%s1585] sm:%s1578]
                  %1588 = vst [vmem:[%s1586] sm:%s1578] %v1587
                  %v1589 = vld [vmem:[%s1585 + $0x4] sm:%s1578]
                  %1590 = vst [vmem:[%s1586 + $0x8] sm:%s1578] %v1589
                $region112: #{fully_connected_generator_forward.4} parent=99 // loop_footer
                  %s1584 = sadd.s32 1, %s1580
                $region113: #{fully_connected_generator_forward.4} parent=99 // loop_footer_branch
                  %1579 = sbr.rel target = $region109
                $region114: #{fully_connected_generator_forward.4} parent=99 // loop_exit
                  _
              $region100: #{fully_connected_generator_forward.4} parent=84 // pred_fallthru
                _
            $region85: #{fully_connected_generator_forward.4} parent=80 // pred_fallthru
              _
            // Predicated region
            $region86: #{fully_connected_generator_forward.4} parent=80 // pred_check
              _
            $region87: #{fully_connected_generator_forward.4} parent=80 // pred_check_branch
              %1552 = sbr.rel (0) target = $region89
            $region88: #{fully_connected_generator_forward.4} parent=80 // pred_region
              %s1554 = ssub.s32 16, 1
              loop: start=0, step=1, limit=1
              $region90: #{fully_connected_generator_forward.4} parent=88 // loop_pre_header
                _
              $region91: #{fully_connected_generator_forward.4} parent=88 // loop_header
                %s1556 = sphi 0, %s1560
                %p1557 = scmp.ge.s32.totalorder %s1556, 1
                %s1561 = sphi %s1533, %s1533
                %s1562 = sphi %s1546, %s1546
              $region92: #{fully_connected_generator_forward.4} parent=88 // loop_header_branch
                %1559 = sbr.rel (%p1557) target = $region96
              $region93: #{fully_connected_generator_forward.4} parent=88 // loop_body
                %v1563 = vld [vmem:[%s1561] sm:%s1554]
                %1564 = vst [vmem:[%s1562] sm:%s1554] %v1563
                %v1565 = vld [vmem:[%s1561 + $0x4] sm:%s1554]
                %1566 = vst [vmem:[%s1562 + $0x8] sm:%s1554] %v1565
              $region94: #{fully_connected_generator_forward.4} parent=88 // loop_footer
                %s1560 = sadd.s32 1, %s1556
              $region95: #{fully_connected_generator_forward.4} parent=88 // loop_footer_branch
                %1555 = sbr.rel target = $region91
              $region96: #{fully_connected_generator_forward.4} parent=88 // loop_exit
                _
            $region89: #{fully_connected_generator_forward.4} parent=80 // pred_fallthru
              _
          $region81: #{fully_connected_generator_forward.4} parent=76 // pred_fallthru
            _
          %1591 = vnop
        $region77: #{fully_connected_generator_forward.4} parent=68 // pred_fallthru
          _
        // Predicated region
        $region115: #{fully_connected_generator_forward.4} parent=68 // pred_check
          %p1592 = pneg %p134
        $region116: #{fully_connected_generator_forward.4} parent=68 // pred_check_branch
          %1594 = sbr.rel (%p1592) target = $region118
        $region117: #{fully_connected_generator_forward.4} parent=68 // pred_region
          _
        $region118: #{fully_connected_generator_forward.4} parent=68 // pred_fallthru
          _
        // Predicated region
        $region119: #{fully_connected_generator_forward.4} parent=68 // pred_check
          %p1595 = pneg %p160
        $region120: #{fully_connected_generator_forward.4} parent=68 // pred_check_branch
          %1597 = sbr.rel (%p1595) target = $region122
        $region121: #{fully_connected_generator_forward.4} parent=68 // pred_region
          _
        $region122: #{fully_connected_generator_forward.4} parent=68 // pred_fallthru
          _
      $region69: #{fully_connected_generator_forward.4} parent=5 // pred_fallthru
        _
      %p1598 = scmp.le.s32.totalorder 2, %s12
      // Predicated region
      $region123: #{fully_connected_generator_forward.4} parent=5 // pred_check
        %p1599 = pneg %p1598
      $region124: #{fully_connected_generator_forward.4} parent=5 // pred_check_branch
        %1601 = sbr.rel (%p1599) target = $region126
      $region125: #{fully_connected_generator_forward.4} parent=5 // pred_region
        %s1602 = ssub.s32 %s12, 2
        // Predicated region
        $region127: #{fully_connected_generator_forward.4} parent=125 // pred_check
          %p1603 = pneg %p114
        $region128: #{fully_connected_generator_forward.4} parent=125 // pred_check_branch
          %1605 = sbr.rel (%p1603) target = $region130
        $region129: #{fully_connected_generator_forward.4} parent=125 // pred_region
          %s1606 = sand.u32 %s99, 1
          %s1607 = sand.u32 %s99, 1
          %s1608 = smul.addr %s1607, 8
          %s1609 = scalar_lea.vmem [#allocation3], %s1608
        $region130: #{fully_connected_generator_forward.4} parent=125 // pred_fallthru
          _
        // Predicated region
        $region131: #{fully_connected_generator_forward.4} parent=125 // pred_check
          %p1610 = pneg %p140
        $region132: #{fully_connected_generator_forward.4} parent=125 // pred_check_branch
          %1612 = sbr.rel (%p1610) target = $region134
        $region133: #{fully_connected_generator_forward.4} parent=125 // pred_region
          %p1613 = scmp.lt.s32.totalorder %s18, 1
          %s1614 = scalar_select %p1613, %s18, 1
          %s1615 = smul.addr %s1614, 8
          %s1616 = scalar_lea.vmem %s4, %s1615
        $region134: #{fully_connected_generator_forward.4} parent=125 // pred_fallthru
          _
        // Predicated region
        $region135: #{fully_connected_generator_forward.4} parent=125 // pred_check
          %p1617 = pneg %p166
        $region136: #{fully_connected_generator_forward.4} parent=125 // pred_check_branch
          %1619 = sbr.rel (%p1617) target = $region138
        $region137: #{fully_connected_generator_forward.4} parent=125 // pred_region
          %p1620 = scmp.lt.s32.totalorder %s18, 1
          %s1621 = scalar_select %p1620, %s18, 1
          %s1622 = smul.addr %s1621, 8
          %s1623 = scalar_lea.vmem %s5, %s1622
        $region138: #{fully_connected_generator_forward.4} parent=125 // pred_fallthru
          _
      $region126: #{fully_connected_generator_forward.4} parent=5 // pred_fallthru
        _
    $region6: #{fully_connected_generator_forward.4} parent=1 // loop_footer
      %s16 = sadd.s32 1, %s12
    $region7: #{fully_connected_generator_forward.4} parent=1 // loop_footer_branch
      %11 = sbr.rel target = $region3
    $region8: #{fully_connected_generator_forward.4} parent=1 // loop_exit
      _

// kernel: fully_connected_generator_forward.3
$region0: #{fully_connected_generator_forward.3}
  #allocation0 [shape = 'u32[]', space=smem, size = 0x4, offset = 0x4, fixed_abs, tag = 'smem constant byte address 0x4 - core index']
  #allocation1 [shape = 'u32[72,128]{1,0:T(1,128)}', space=vmem, size = 0x9000, scoped, tag = 'internal scratch']
  %s0 = inlined_call_operand.vmem [shape: bf16[16,128], index: 0, kind: input, shape index: {}]
  %s1 = inlined_call_operand.vmem [shape: bf16[128,512], index: 1, kind: input, shape index: {}]
  %s2 = inlined_call_operand.vmem [shape: f32[1,512], index: 2, kind: input, shape index: {}]
  %s3 = inlined_call_operand.vmem [shape: bf16[512,1024], index: 3, kind: input, shape index: {}]
  %s4 = inlined_call_operand.vmem [shape: f32[1,1024], index: 4, kind: input, shape index: {}]
  %s5 = inlined_call_operand.vmem [shape: bf16[16,1024], index: 5, kind: output, shape index: {}]
  %s6 = sld [smem:[#allocation0]]
  $region30: #{fully_connected_generator_forward.3} parent=0
    _
  %s8 = ssub.s32 1, %s6
  %s9 = scalar_select 0, %s8, %s6
  // Predicated region
  $region2: #{fully_connected_generator_forward.3} parent=0 // pred_check
    _
  $region3: #{fully_connected_generator_forward.3} parent=0 // pred_check_branch
    %11 = sbr.rel (0) target = $region5
  $region4: #{fully_connected_generator_forward.3} parent=0 // pred_region
    _
  $region5: #{fully_connected_generator_forward.3} parent=0 // pred_fallthru
    _
  // Predicated region
  $region6: #{fully_connected_generator_forward.3} parent=0 // pred_check
    _
  $region7: #{fully_connected_generator_forward.3} parent=0 // pred_check_branch
    %13 = sbr.rel (0) target = $region9
  $region8: #{fully_connected_generator_forward.3} parent=0 // pred_region
    _
  $region9: #{fully_connected_generator_forward.3} parent=0 // pred_fallthru
    _
  // Predicated region
  $region10: #{fully_connected_generator_forward.3} parent=0 // pred_check
    _
  $region11: #{fully_connected_generator_forward.3} parent=0 // pred_check_branch
    %15 = sbr.rel (0) target = $region13
  $region12: #{fully_connected_generator_forward.3} parent=0 // pred_region
    _
  $region13: #{fully_connected_generator_forward.3} parent=0 // pred_fallthru
    _
  // Predicated region
  $region14: #{fully_connected_generator_forward.3} parent=0 // pred_check
    _
  $region15: #{fully_connected_generator_forward.3} parent=0 // pred_check_branch
    %17 = sbr.rel (0) target = $region17
  $region16: #{fully_connected_generator_forward.3} parent=0 // pred_region
    _
  $region17: #{fully_connected_generator_forward.3} parent=0 // pred_fallthru
    _
  // Predicated region
  $region18: #{fully_connected_generator_forward.3} parent=0 // pred_check
    _
  $region19: #{fully_connected_generator_forward.3} parent=0 // pred_check_branch
    %19 = sbr.rel (0) target = $region21
  $region20: #{fully_connected_generator_forward.3} parent=0 // pred_region
    _
  $region21: #{fully_connected_generator_forward.3} parent=0 // pred_fallthru
    _
  %v20 = vld [vmem:[%s0] sm:$0xf]
  %v21 = vld [vmem:[%s0 + $0x4] sm:$0xf]
  %v22 = vld [vmem:[%s1] sm:$0xff]
  %v23 = vld [vmem:[%s1 + $0x8] sm:$0xff]
  %v24 = vld [vmem:[%s1 + $0x10] sm:$0xff]
  %v25 = vld [vmem:[%s1 + $0x18] sm:$0xff]
  %v26 = vld [vmem:[%s1 + $0x20] sm:$0xff]
  %v27 = vld [vmem:[%s1 + $0x28] sm:$0xff]
  %v28 = vld [vmem:[%s1 + $0x30] sm:$0xff]
  %v29 = vld [vmem:[%s1 + $0x38] sm:$0xff]
  %v30 = vld [vmem:[%s1 + $0x40] sm:$0xff]
  %v31 = vld [vmem:[%s1 + $0x48] sm:$0xff]
  %v32 = vld [vmem:[%s1 + $0x50] sm:$0xff]
  %v33 = vld [vmem:[%s1 + $0x58] sm:$0xff]
  %v34 = vld [vmem:[%s1 + $0x60] sm:$0xff]
  %v35 = vld [vmem:[%s1 + $0x68] sm:$0xff]
  %v36 = vld [vmem:[%s1 + $0x70] sm:$0xff]
  %v37 = vld [vmem:[%s1 + $0x78] sm:$0xff]
  %v38 = vld [vmem:[%s1 + $0x80] sm:$0xff]
  %v39 = vld [vmem:[%s1 + $0x88] sm:$0xff]
  %v40 = vld [vmem:[%s1 + $0x90] sm:$0xff]
  %v41 = vld [vmem:[%s1 + $0x98] sm:$0xff]
  %v42 = vld [vmem:[%s1 + $0xa0] sm:$0xff]
  %v43 = vld [vmem:[%s1 + $0xa8] sm:$0xff]
  %v44 = vld [vmem:[%s1 + $0xb0] sm:$0xff]
  %v45 = vld [vmem:[%s1 + $0xb8] sm:$0xff]
  %v46 = vld [vmem:[%s1 + $0xc0] sm:$0xff]
  %v47 = vld [vmem:[%s1 + $0xc8] sm:$0xff]
  %v48 = vld [vmem:[%s1 + $0xd0] sm:$0xff]
  %v49 = vld [vmem:[%s1 + $0xd8] sm:$0xff]
  %v50 = vld [vmem:[%s1 + $0xe0] sm:$0xff]
  %v51 = vld [vmem:[%s1 + $0xe8] sm:$0xff]
  %v52 = vld [vmem:[%s1 + $0xf0] sm:$0xff]
  %v53 = vld [vmem:[%s1 + $0xf8] sm:$0xff]
  %v54 = vld [vmem:[%s2] sm:$0xf]
  %v56 = vperm.slane %v54, 0
  %v57 = vperm.slane %v54, 1
  %v58 = vperm.slane %v54, 2
  %v59 = vperm.slane %v54, 3
  %v66 = vunpack.c.l.b16 %v20
  %v67 = vunpack.c.l.b16 %v21
  %v68 = vpack.c.b16 %v67, %v66
  %v102 = vunpack.c.l.b16 %v22
  %v103 = vunpack.c.h.b16 %v22
  %v104 = vunpack.c.l.b16 %v23
  %v105 = vunpack.c.h.b16 %v23
  %v106 = vunpack.c.l.b16 %v24
  %v107 = vunpack.c.h.b16 %v24
  %v108 = vunpack.c.l.b16 %v25
  %v109 = vunpack.c.h.b16 %v25
  %v110 = vunpack.c.l.b16 %v26
  %v111 = vunpack.c.h.b16 %v26
  %v112 = vunpack.c.l.b16 %v27
  %v113 = vunpack.c.h.b16 %v27
  %v114 = vunpack.c.l.b16 %v28
  %v115 = vunpack.c.h.b16 %v28
  %v116 = vunpack.c.l.b16 %v29
  %v117 = vunpack.c.h.b16 %v29
  %v118 = vunpack.c.l.b16 %v30
  %v119 = vunpack.c.h.b16 %v30
  %v120 = vunpack.c.l.b16 %v31
  %v121 = vunpack.c.h.b16 %v31
  %v122 = vunpack.c.l.b16 %v32
  %v123 = vunpack.c.h.b16 %v32
  %v124 = vunpack.c.l.b16 %v33
  %v125 = vunpack.c.h.b16 %v33
  %v126 = vunpack.c.l.b16 %v34
  %v127 = vunpack.c.h.b16 %v34
  %v128 = vunpack.c.l.b16 %v35
  %v129 = vunpack.c.h.b16 %v35
  %v130 = vunpack.c.l.b16 %v36
  %v131 = vunpack.c.h.b16 %v36
  %v132 = vunpack.c.l.b16 %v37
  %v133 = vunpack.c.h.b16 %v37
  %v134 = vunpack.c.l.b16 %v38
  %v135 = vunpack.c.h.b16 %v38
  %v136 = vunpack.c.l.b16 %v39
  %v137 = vunpack.c.h.b16 %v39
  %v138 = vunpack.c.l.b16 %v40
  %v139 = vunpack.c.h.b16 %v40
  %v140 = vunpack.c.l.b16 %v41
  %v141 = vunpack.c.h.b16 %v41
  %v142 = vunpack.c.l.b16 %v42
  %v143 = vunpack.c.h.b16 %v42
  %v144 = vunpack.c.l.b16 %v43
  %v145 = vunpack.c.h.b16 %v43
  %v146 = vunpack.c.l.b16 %v44
  %v147 = vunpack.c.h.b16 %v44
  %v148 = vunpack.c.l.b16 %v45
  %v149 = vunpack.c.h.b16 %v45
  %v150 = vunpack.c.l.b16 %v46
  %v151 = vunpack.c.h.b16 %v46
  %v152 = vunpack.c.l.b16 %v47
  %v153 = vunpack.c.h.b16 %v47
  %v154 = vunpack.c.l.b16 %v48
  %v155 = vunpack.c.h.b16 %v48
  %v156 = vunpack.c.l.b16 %v49
  %v157 = vunpack.c.h.b16 %v49
  %v158 = vunpack.c.l.b16 %v50
  %v159 = vunpack.c.h.b16 %v50
  %v160 = vunpack.c.l.b16 %v51
  %v161 = vunpack.c.h.b16 %v51
  %v162 = vunpack.c.l.b16 %v52
  %v163 = vunpack.c.h.b16 %v52
  %v164 = vunpack.c.l.b16 %v53
  %v165 = vunpack.c.h.b16 %v53
  %v166 = vpack.c.b16 %v106, %v102
  %v167 = vpack.c.b16 %v107, %v103
  %v168 = vpack.c.b16 %v108, %v104
  %v169 = vpack.c.b16 %v109, %v105
  %v170 = vpack.c.b16 %v114, %v110
  %v171 = vpack.c.b16 %v115, %v111
  %v172 = vpack.c.b16 %v116, %v112
  %v173 = vpack.c.b16 %v117, %v113
  %v174 = vpack.c.b16 %v122, %v118
  %v175 = vpack.c.b16 %v123, %v119
  %v176 = vpack.c.b16 %v124, %v120
  %v177 = vpack.c.b16 %v125, %v121
  %v178 = vpack.c.b16 %v130, %v126
  %v179 = vpack.c.b16 %v131, %v127
  %v180 = vpack.c.b16 %v132, %v128
  %v181 = vpack.c.b16 %v133, %v129
  %v182 = vpack.c.b16 %v138, %v134
  %v183 = vpack.c.b16 %v139, %v135
  %v184 = vpack.c.b16 %v140, %v136
  %v185 = vpack.c.b16 %v141, %v137
  %v186 = vpack.c.b16 %v146, %v142
  %v187 = vpack.c.b16 %v147, %v143
  %v188 = vpack.c.b16 %v148, %v144
  %v189 = vpack.c.b16 %v149, %v145
  %v190 = vpack.c.b16 %v154, %v150
  %v191 = vpack.c.b16 %v155, %v151
  %v192 = vpack.c.b16 %v156, %v152
  %v193 = vpack.c.b16 %v157, %v153
  %v194 = vpack.c.b16 %v162, %v158
  %v195 = vpack.c.b16 %v163, %v159
  %v196 = vpack.c.b16 %v164, %v160
  %v197 = vpack.c.b16 %v165, %v161
  %230 = vmatpush.bf16.msra.mxu0 %v194
  %231 = vmatpush.bf16.msra.mxu0 %v190
  %232 = vmatpush.bf16.msra.mxu0 %v186
  %233 = vmatpush.bf16.msra.mxu0 %v182
  %234 = vmatpush.bf16.msra.mxu0 %v178
  %235 = vmatpush.bf16.msra.mxu0 %v174
  %236 = vmatpush.bf16.msra.mxu0 %v170
  %237 = vmatpush.bf16.msra.mxu0 %v166
  %238 = vmatmul.bf16.gmra.mxu0 %v68
  %v239 = vpop.f32.mrf.mxu0
  %v240 = vadd.f32 %v56, %v239
  %v241 = vpop.f32.mrf.mxu0
  %v242 = vadd.f32 %v56, %v241
  %243 = vdwg.mxu0
  %244 = vmatpush.bf16.msra.mxu0 %v195
  %245 = vmatpush.bf16.msra.mxu0 %v191
  %246 = vmatpush.bf16.msra.mxu0 %v187
  %247 = vmatpush.bf16.msra.mxu0 %v183
  %248 = vmatpush.bf16.msra.mxu0 %v179
  %249 = vmatpush.bf16.msra.mxu0 %v175
  %250 = vmatpush.bf16.msra.mxu0 %v171
  %251 = vmatpush.bf16.msra.mxu0 %v167
  %252 = vmatmul.bf16.gmra.mxu0 %v68
  %v253 = vpop.f32.mrf.mxu0
  %v254 = vadd.f32 %v57, %v253
  %v255 = vpop.f32.mrf.mxu0
  %v256 = vadd.f32 %v57, %v255
  %257 = vdwg.mxu0
  %258 = vmatpush.bf16.msra.mxu0 %v196
  %259 = vmatpush.bf16.msra.mxu0 %v192
  %260 = vmatpush.bf16.msra.mxu0 %v188
  %261 = vmatpush.bf16.msra.mxu0 %v184
  %262 = vmatpush.bf16.msra.mxu0 %v180
  %263 = vmatpush.bf16.msra.mxu0 %v176
  %264 = vmatpush.bf16.msra.mxu0 %v172
  %265 = vmatpush.bf16.msra.mxu0 %v168
  %266 = vmatmul.bf16.gmra.mxu0 %v68
  %v267 = vpop.f32.mrf.mxu0
  %v268 = vadd.f32 %v58, %v267
  %v269 = vpop.f32.mrf.mxu0
  %v270 = vadd.f32 %v58, %v269
  %271 = vdwg.mxu0
  %272 = vmatpush.bf16.msra.mxu0 %v197
  %273 = vmatpush.bf16.msra.mxu0 %v193
  %274 = vmatpush.bf16.msra.mxu0 %v189
  %275 = vmatpush.bf16.msra.mxu0 %v185
  %276 = vmatpush.bf16.msra.mxu0 %v181
  %277 = vmatpush.bf16.msra.mxu0 %v177
  %278 = vmatpush.bf16.msra.mxu0 %v173
  %279 = vmatpush.bf16.msra.mxu0 %v169
  %280 = vmatmul.bf16.gmra.mxu0 %v68
  %v281 = vpop.f32.mrf.mxu0
  %v282 = vadd.f32 %v59, %v281
  %v283 = vpop.f32.mrf.mxu0
  %v284 = vadd.f32 %v59, %v283
  %285 = vdwg.mxu0
  %v286 = vtanh.pop %v240
  %v287 = vtanh.pop %v254
  %v288 = vtanh.pop %v268
  %v289 = vtanh.pop %v282
  %v290 = vtanh.pop %v242
  %v291 = vtanh.pop %v256
  %v292 = vtanh.pop %v270
  %v293 = vtanh.pop %v284
  %v294 = vpack.c.bf16 %v290, %v286
  %v295 = vpack.c.bf16 %v291, %v287
  %v296 = vpack.c.bf16 %v292, %v288
  %v297 = vpack.c.bf16 %v293, %v289
  %v298 = vld [vmem:[%s3] sm:$0xff]
  %v299 = vld [vmem:[%s3 + $0x8] sm:$0xff]
  %v300 = vld [vmem:[%s3 + $0x10] sm:$0xff]
  %v301 = vld [vmem:[%s3 + $0x18] sm:$0xff]
  %v302 = vld [vmem:[%s3 + $0x20] sm:$0xff]
  %v303 = vld [vmem:[%s3 + $0x28] sm:$0xff]
  %v304 = vld [vmem:[%s3 + $0x30] sm:$0xff]
  %v305 = vld [vmem:[%s3 + $0x38] sm:$0xff]
  %v306 = vld [vmem:[%s3 + $0x40] sm:$0xff]
  %v307 = vld [vmem:[%s3 + $0x48] sm:$0xff]
  %v308 = vld [vmem:[%s3 + $0x50] sm:$0xff]
  %v309 = vld [vmem:[%s3 + $0x58] sm:$0xff]
  %v310 = vld [vmem:[%s3 + $0x60] sm:$0xff]
  %v311 = vld [vmem:[%s3 + $0x68] sm:$0xff]
  %v312 = vld [vmem:[%s3 + $0x70] sm:$0xff]
  %v313 = vld [vmem:[%s3 + $0x78] sm:$0xff]
  %v314 = vld [vmem:[%s3 + $0x80] sm:$0xff]
  %v315 = vld [vmem:[%s3 + $0x88] sm:$0xff]
  %v316 = vld [vmem:[%s3 + $0x90] sm:$0xff]
  %v317 = vld [vmem:[%s3 + $0x98] sm:$0xff]
  %v318 = vld [vmem:[%s3 + $0xa0] sm:$0xff]
  %v319 = vld [vmem:[%s3 + $0xa8] sm:$0xff]
  %v320 = vld [vmem:[%s3 + $0xb0] sm:$0xff]
  %v321 = vld [vmem:[%s3 + $0xb8] sm:$0xff]
  %v322 = vld [vmem:[%s3 + $0xc0] sm:$0xff]
  %v323 = vld [vmem:[%s3 + $0xc8] sm:$0xff]
  %v324 = vld [vmem:[%s3 + $0xd0] sm:$0xff]
  %v325 = vld [vmem:[%s3 + $0xd8] sm:$0xff]
  %v326 = vld [vmem:[%s3 + $0xe0] sm:$0xff]
  %v327 = vld [vmem:[%s3 + $0xe8] sm:$0xff]
  %v328 = vld [vmem:[%s3 + $0xf0] sm:$0xff]
  %v329 = vld [vmem:[%s3 + $0xf8] sm:$0xff]
  %v330 = vld [vmem:[%s3 + $0x100] sm:$0xff]
  %v331 = vld [vmem:[%s3 + $0x108] sm:$0xff]
  %v332 = vld [vmem:[%s3 + $0x110] sm:$0xff]
  %v333 = vld [vmem:[%s3 + $0x118] sm:$0xff]
  %v334 = vld [vmem:[%s3 + $0x120] sm:$0xff]
  %v335 = vld [vmem:[%s3 + $0x128] sm:$0xff]
  %v336 = vld [vmem:[%s3 + $0x130] sm:$0xff]
  %v337 = vld [vmem:[%s3 + $0x138] sm:$0xff]
  %v338 = vld [vmem:[%s3 + $0x140] sm:$0xff]
  %v339 = vld [vmem:[%s3 + $0x148] sm:$0xff]
  %v340 = vld [vmem:[%s3 + $0x150] sm:$0xff]
  %v341 = vld [vmem:[%s3 + $0x158] sm:$0xff]
  %v342 = vld [vmem:[%s3 + $0x160] sm:$0xff]
  %v343 = vld [vmem:[%s3 + $0x168] sm:$0xff]
  %v344 = vld [vmem:[%s3 + $0x170] sm:$0xff]
  %v345 = vld [vmem:[%s3 + $0x178] sm:$0xff]
  %v346 = vld [vmem:[%s3 + $0x180] sm:$0xff]
  %v347 = vld [vmem:[%s3 + $0x188] sm:$0xff]
  %v348 = vld [vmem:[%s3 + $0x190] sm:$0xff]
  %v349 = vld [vmem:[%s3 + $0x198] sm:$0xff]
  %v350 = vld [vmem:[%s3 + $0x1a0] sm:$0xff]
  %v351 = vld [vmem:[%s3 + $0x1a8] sm:$0xff]
  %v352 = vld [vmem:[%s3 + $0x1b0] sm:$0xff]
  %v353 = vld [vmem:[%s3 + $0x1b8] sm:$0xff]
  %v354 = vld [vmem:[%s3 + $0x1c0] sm:$0xff]
  %v355 = vld [vmem:[%s3 + $0x1c8] sm:$0xff]
  %v356 = vld [vmem:[%s3 + $0x1d0] sm:$0xff]
  %v357 = vld [vmem:[%s3 + $0x1d8] sm:$0xff]
  %v358 = vld [vmem:[%s3 + $0x1e0] sm:$0xff]
  %v359 = vld [vmem:[%s3 + $0x1e8] sm:$0xff]
  %v360 = vld [vmem:[%s3 + $0x1f0] sm:$0xff]
  %v361 = vld [vmem:[%s3 + $0x1f8] sm:$0xff]
  %v362 = vld [vmem:[%s3 + $0x200] sm:$0xff]
  %v363 = vld [vmem:[%s3 + $0x208] sm:$0xff]
  %v364 = vld [vmem:[%s3 + $0x210] sm:$0xff]
  %v365 = vld [vmem:[%s3 + $0x218] sm:$0xff]
  %v366 = vld [vmem:[%s3 + $0x220] sm:$0xff]
  %v367 = vld [vmem:[%s3 + $0x228] sm:$0xff]
  %v368 = vld [vmem:[%s3 + $0x230] sm:$0xff]
  %v369 = vld [vmem:[%s3 + $0x238] sm:$0xff]
  %v370 = vld [vmem:[%s3 + $0x240] sm:$0xff]
  %v371 = vld [vmem:[%s3 + $0x248] sm:$0xff]
  %v372 = vld [vmem:[%s3 + $0x250] sm:$0xff]
  %v373 = vld [vmem:[%s3 + $0x258] sm:$0xff]
  %v374 = vld [vmem:[%s3 + $0x260] sm:$0xff]
  %v375 = vld [vmem:[%s3 + $0x268] sm:$0xff]
  %v376 = vld [vmem:[%s3 + $0x270] sm:$0xff]
  %v377 = vld [vmem:[%s3 + $0x278] sm:$0xff]
  %v378 = vld [vmem:[%s3 + $0x280] sm:$0xff]
  %v379 = vld [vmem:[%s3 + $0x288] sm:$0xff]
  %v380 = vld [vmem:[%s3 + $0x290] sm:$0xff]
  %v381 = vld [vmem:[%s3 + $0x298] sm:$0xff]
  %v382 = vld [vmem:[%s3 + $0x2a0] sm:$0xff]
  %v383 = vld [vmem:[%s3 + $0x2a8] sm:$0xff]
  %v384 = vld [vmem:[%s3 + $0x2b0] sm:$0xff]
  %v385 = vld [vmem:[%s3 + $0x2b8] sm:$0xff]
  %v386 = vld [vmem:[%s3 + $0x2c0] sm:$0xff]
  %v387 = vld [vmem:[%s3 + $0x2c8] sm:$0xff]
  %v388 = vld [vmem:[%s3 + $0x2d0] sm:$0xff]
  %v389 = vld [vmem:[%s3 + $0x2d8] sm:$0xff]
  %v390 = vld [vmem:[%s3 + $0x2e0] sm:$0xff]
  %v391 = vld [vmem:[%s3 + $0x2e8] sm:$0xff]
  %v392 = vld [vmem:[%s3 + $0x2f0] sm:$0xff]
  %v393 = vld [vmem:[%s3 + $0x2f8] sm:$0xff]
  %v394 = vld [vmem:[%s3 + $0x300] sm:$0xff]
  %v395 = vld [vmem:[%s3 + $0x308] sm:$0xff]
  %v396 = vld [vmem:[%s3 + $0x310] sm:$0xff]
  %v397 = vld [vmem:[%s3 + $0x318] sm:$0xff]
  %v398 = vld [vmem:[%s3 + $0x320] sm:$0xff]
  %v399 = vld [vmem:[%s3 + $0x328] sm:$0xff]
  %v400 = vld [vmem:[%s3 + $0x330] sm:$0xff]
  %v401 = vld [vmem:[%s3 + $0x338] sm:$0xff]
  %v402 = vld [vmem:[%s3 + $0x340] sm:$0xff]
  %v403 = vld [vmem:[%s3 + $0x348] sm:$0xff]
  %v404 = vld [vmem:[%s3 + $0x350] sm:$0xff]
  %v405 = vld [vmem:[%s3 + $0x358] sm:$0xff]
  %v406 = vld [vmem:[%s3 + $0x360] sm:$0xff]
  %v407 = vld [vmem:[%s3 + $0x368] sm:$0xff]
  %v408 = vld [vmem:[%s3 + $0x370] sm:$0xff]
  %v409 = vld [vmem:[%s3 + $0x378] sm:$0xff]
  %v410 = vld [vmem:[%s3 + $0x380] sm:$0xff]
  %v411 = vld [vmem:[%s3 + $0x388] sm:$0xff]
  %v412 = vld [vmem:[%s3 + $0x390] sm:$0xff]
  %v413 = vld [vmem:[%s3 + $0x398] sm:$0xff]
  %v414 = vld [vmem:[%s3 + $0x3a0] sm:$0xff]
  %v415 = vld [vmem:[%s3 + $0x3a8] sm:$0xff]
  %v416 = vld [vmem:[%s3 + $0x3b0] sm:$0xff]
  %v417 = vld [vmem:[%s3 + $0x3b8] sm:$0xff]
  %v418 = vld [vmem:[%s3 + $0x3c0] sm:$0xff]
  %v419 = vld [vmem:[%s3 + $0x3c8] sm:$0xff]
  %v420 = vld [vmem:[%s3 + $0x3d0] sm:$0xff]
  %v421 = vld [vmem:[%s3 + $0x3d8] sm:$0xff]
  %v422 = vld [vmem:[%s3 + $0x3e0] sm:$0xff]
  %v423 = vld [vmem:[%s3 + $0x3e8] sm:$0xff]
  %v424 = vld [vmem:[%s3 + $0x3f0] sm:$0xff]
  %v425 = vld [vmem:[%s3 + $0x3f8] sm:$0xff]
  %v426 = vld [vmem:[%s3 + $0x400] sm:$0xff]
  %v427 = vld [vmem:[%s3 + $0x408] sm:$0xff]
  %v428 = vld [vmem:[%s3 + $0x410] sm:$0xff]
  %v429 = vld [vmem:[%s3 + $0x418] sm:$0xff]
  %v430 = vld [vmem:[%s3 + $0x420] sm:$0xff]
  %v431 = vld [vmem:[%s3 + $0x428] sm:$0xff]
  %v432 = vld [vmem:[%s3 + $0x430] sm:$0xff]
  %v433 = vld [vmem:[%s3 + $0x438] sm:$0xff]
  %v434 = vld [vmem:[%s3 + $0x440] sm:$0xff]
  %v435 = vld [vmem:[%s3 + $0x448] sm:$0xff]
  %v436 = vld [vmem:[%s3 + $0x450] sm:$0xff]
  %v437 = vld [vmem:[%s3 + $0x458] sm:$0xff]
  %v438 = vld [vmem:[%s3 + $0x460] sm:$0xff]
  %v439 = vld [vmem:[%s3 + $0x468] sm:$0xff]
  %v440 = vld [vmem:[%s3 + $0x470] sm:$0xff]
  %v441 = vld [vmem:[%s3 + $0x478] sm:$0xff]
  %v442 = vld [vmem:[%s3 + $0x480] sm:$0xff]
  %v443 = vld [vmem:[%s3 + $0x488] sm:$0xff]
  %v444 = vld [vmem:[%s3 + $0x490] sm:$0xff]
  %v445 = vld [vmem:[%s3 + $0x498] sm:$0xff]
  %v446 = vld [vmem:[%s3 + $0x4a0] sm:$0xff]
  %v447 = vld [vmem:[%s3 + $0x4a8] sm:$0xff]
  %v448 = vld [vmem:[%s3 + $0x4b0] sm:$0xff]
  %v449 = vld [vmem:[%s3 + $0x4b8] sm:$0xff]
  %v450 = vld [vmem:[%s3 + $0x4c0] sm:$0xff]
  %v451 = vld [vmem:[%s3 + $0x4c8] sm:$0xff]
  %v452 = vld [vmem:[%s3 + $0x4d0] sm:$0xff]
  %v453 = vld [vmem:[%s3 + $0x4d8] sm:$0xff]
  %v454 = vld [vmem:[%s3 + $0x4e0] sm:$0xff]
  %v455 = vld [vmem:[%s3 + $0x4e8] sm:$0xff]
  %v456 = vld [vmem:[%s3 + $0x4f0] sm:$0xff]
  %v457 = vld [vmem:[%s3 + $0x4f8] sm:$0xff]
  %v458 = vld [vmem:[%s3 + $0x500] sm:$0xff]
  %v459 = vld [vmem:[%s3 + $0x508] sm:$0xff]
  %v460 = vld [vmem:[%s3 + $0x510] sm:$0xff]
  %v461 = vld [vmem:[%s3 + $0x518] sm:$0xff]
  %v462 = vld [vmem:[%s3 + $0x520] sm:$0xff]
  %v463 = vld [vmem:[%s3 + $0x528] sm:$0xff]
  %v464 = vld [vmem:[%s3 + $0x530] sm:$0xff]
  %v465 = vld [vmem:[%s3 + $0x538] sm:$0xff]
  %v466 = vld [vmem:[%s3 + $0x540] sm:$0xff]
  %v467 = vld [vmem:[%s3 + $0x548] sm:$0xff]
  %v468 = vld [vmem:[%s3 + $0x550] sm:$0xff]
  %v469 = vld [vmem:[%s3 + $0x558] sm:$0xff]
  %v470 = vld [vmem:[%s3 + $0x560] sm:$0xff]
  %v471 = vld [vmem:[%s3 + $0x568] sm:$0xff]
  %v472 = vld [vmem:[%s3 + $0x570] sm:$0xff]
  %v473 = vld [vmem:[%s3 + $0x578] sm:$0xff]
  %v474 = vld [vmem:[%s3 + $0x580] sm:$0xff]
  %v475 = vld [vmem:[%s3 + $0x588] sm:$0xff]
  %v476 = vld [vmem:[%s3 + $0x590] sm:$0xff]
  %v477 = vld [vmem:[%s3 + $0x598] sm:$0xff]
  %v478 = vld [vmem:[%s3 + $0x5a0] sm:$0xff]
  %v479 = vld [vmem:[%s3 + $0x5a8] sm:$0xff]
  %v480 = vld [vmem:[%s3 + $0x5b0] sm:$0xff]
  %v481 = vld [vmem:[%s3 + $0x5b8] sm:$0xff]
  %v482 = vld [vmem:[%s3 + $0x5c0] sm:$0xff]
  %v483 = vld [vmem:[%s3 + $0x5c8] sm:$0xff]
  %v484 = vld [vmem:[%s3 + $0x5d0] sm:$0xff]
  %v485 = vld [vmem:[%s3 + $0x5d8] sm:$0xff]
  %v486 = vld [vmem:[%s3 + $0x5e0] sm:$0xff]
  %v487 = vld [vmem:[%s3 + $0x5e8] sm:$0xff]
  %v488 = vld [vmem:[%s3 + $0x5f0] sm:$0xff]
  %v489 = vld [vmem:[%s3 + $0x5f8] sm:$0xff]
  %v490 = vld [vmem:[%s3 + $0x600] sm:$0xff]
  %v491 = vld [vmem:[%s3 + $0x608] sm:$0xff]
  %v492 = vld [vmem:[%s3 + $0x610] sm:$0xff]
  %v493 = vld [vmem:[%s3 + $0x618] sm:$0xff]
  %v494 = vld [vmem:[%s3 + $0x620] sm:$0xff]
  %v495 = vld [vmem:[%s3 + $0x628] sm:$0xff]
  %v496 = vld [vmem:[%s3 + $0x630] sm:$0xff]
  %v497 = vld [vmem:[%s3 + $0x638] sm:$0xff]
  %v498 = vld [vmem:[%s3 + $0x640] sm:$0xff]
  %v499 = vld [vmem:[%s3 + $0x648] sm:$0xff]
  %v500 = vld [vmem:[%s3 + $0x650] sm:$0xff]
  %v501 = vld [vmem:[%s3 + $0x658] sm:$0xff]
  %v502 = vld [vmem:[%s3 + $0x660] sm:$0xff]
  %v503 = vld [vmem:[%s3 + $0x668] sm:$0xff]
  %v504 = vld [vmem:[%s3 + $0x670] sm:$0xff]
  %v505 = vld [vmem:[%s3 + $0x678] sm:$0xff]
  %v506 = vld [vmem:[%s3 + $0x680] sm:$0xff]
  %v507 = vld [vmem:[%s3 + $0x688] sm:$0xff]
  %v508 = vld [vmem:[%s3 + $0x690] sm:$0xff]
  %v509 = vld [vmem:[%s3 + $0x698] sm:$0xff]
  %v510 = vld [vmem:[%s3 + $0x6a0] sm:$0xff]
  %v511 = vld [vmem:[%s3 + $0x6a8] sm:$0xff]
  %v512 = vld [vmem:[%s3 + $0x6b0] sm:$0xff]
  %v513 = vld [vmem:[%s3 + $0x6b8] sm:$0xff]
  %v514 = vld [vmem:[%s3 + $0x6c0] sm:$0xff]
  %v515 = vld [vmem:[%s3 + $0x6c8] sm:$0xff]
  %v516 = vld [vmem:[%s3 + $0x6d0] sm:$0xff]
  %v517 = vld [vmem:[%s3 + $0x6d8] sm:$0xff]
  %v518 = vld [vmem:[%s3 + $0x6e0] sm:$0xff]
  %v519 = vld [vmem:[%s3 + $0x6e8] sm:$0xff]
  %v520 = vld [vmem:[%s3 + $0x6f0] sm:$0xff]
  %v521 = vld [vmem:[%s3 + $0x6f8] sm:$0xff]
  %v522 = vld [vmem:[%s3 + $0x700] sm:$0xff]
  %v523 = vld [vmem:[%s3 + $0x708] sm:$0xff]
  %v524 = vld [vmem:[%s3 + $0x710] sm:$0xff]
  %v525 = vld [vmem:[%s3 + $0x718] sm:$0xff]
  %v526 = vld [vmem:[%s3 + $0x720] sm:$0xff]
  %v527 = vld [vmem:[%s3 + $0x728] sm:$0xff]
  %v528 = vld [vmem:[%s3 + $0x730] sm:$0xff]
  %v529 = vld [vmem:[%s3 + $0x738] sm:$0xff]
  %v530 = vld [vmem:[%s3 + $0x740] sm:$0xff]
  %v531 = vld [vmem:[%s3 + $0x748] sm:$0xff]
  %v532 = vld [vmem:[%s3 + $0x750] sm:$0xff]
  %v533 = vld [vmem:[%s3 + $0x758] sm:$0xff]
  %v534 = vld [vmem:[%s3 + $0x760] sm:$0xff]
  %v535 = vld [vmem:[%s3 + $0x768] sm:$0xff]
  %v536 = vld [vmem:[%s3 + $0x770] sm:$0xff]
  %v537 = vld [vmem:[%s3 + $0x778] sm:$0xff]
  %v538 = vld [vmem:[%s3 + $0x780] sm:$0xff]
  %v539 = vld [vmem:[%s3 + $0x788] sm:$0xff]
  %v540 = vld [vmem:[%s3 + $0x790] sm:$0xff]
  %v541 = vld [vmem:[%s3 + $0x798] sm:$0xff]
  %v542 = vld [vmem:[%s3 + $0x7a0] sm:$0xff]
  %v543 = vld [vmem:[%s3 + $0x7a8] sm:$0xff]
  %v544 = vld [vmem:[%s3 + $0x7b0] sm:$0xff]
  %v545 = vld [vmem:[%s3 + $0x7b8] sm:$0xff]
  %v546 = vld [vmem:[%s3 + $0x7c0] sm:$0xff]
  %v547 = vld [vmem:[%s3 + $0x7c8] sm:$0xff]
  %v548 = vld [vmem:[%s3 + $0x7d0] sm:$0xff]
  %v549 = vld [vmem:[%s3 + $0x7d8] sm:$0xff]
  %v550 = vld [vmem:[%s3 + $0x7e0] sm:$0xff]
  %v551 = vld [vmem:[%s3 + $0x7e8] sm:$0xff]
  %v552 = vld [vmem:[%s3 + $0x7f0] sm:$0xff]
  %v553 = vld [vmem:[%s3 + $0x7f8] sm:$0xff]
  %v554 = vld [vmem:[%s4] sm:$0xff]
  %v556 = vperm.slane %v554, 0
  %v557 = vperm.slane %v554, 1
  %v558 = vperm.slane %v554, 2
  %v559 = vperm.slane %v554, 3
  %v560 = vperm.slane %v554, 4
  %v561 = vperm.slane %v554, 5
  %v562 = vperm.slane %v554, 6
  %v563 = vperm.slane %v554, 7
  %v828 = vunpack.c.l.b16 %v298
  %v829 = vunpack.c.h.b16 %v298
  %v830 = vunpack.c.l.b16 %v299
  %v831 = vunpack.c.h.b16 %v299
  %v832 = vunpack.c.l.b16 %v300
  %v833 = vunpack.c.h.b16 %v300
  %v834 = vunpack.c.l.b16 %v301
  %v835 = vunpack.c.h.b16 %v301
  %v836 = vunpack.c.l.b16 %v302
  %v837 = vunpack.c.h.b16 %v302
  %v838 = vunpack.c.l.b16 %v303
  %v839 = vunpack.c.h.b16 %v303
  %v840 = vunpack.c.l.b16 %v304
  %v841 = vunpack.c.h.b16 %v304
  %v842 = vunpack.c.l.b16 %v305
  %v843 = vunpack.c.h.b16 %v305
  %v844 = vunpack.c.l.b16 %v306
  %v845 = vunpack.c.h.b16 %v306
  %v846 = vunpack.c.l.b16 %v307
  %v847 = vunpack.c.h.b16 %v307
  %v848 = vunpack.c.l.b16 %v308
  %v849 = vunpack.c.h.b16 %v308
  %v850 = vunpack.c.l.b16 %v309
  %v851 = vunpack.c.h.b16 %v309
  %v852 = vunpack.c.l.b16 %v310
  %v853 = vunpack.c.h.b16 %v310
  %v854 = vunpack.c.l.b16 %v311
  %v855 = vunpack.c.h.b16 %v311
  %v856 = vunpack.c.l.b16 %v312
  %v857 = vunpack.c.h.b16 %v312
  %v858 = vunpack.c.l.b16 %v313
  %v859 = vunpack.c.h.b16 %v313
  %v860 = vunpack.c.l.b16 %v314
  %v861 = vunpack.c.h.b16 %v314
  %v862 = vunpack.c.l.b16 %v315
  %v863 = vunpack.c.h.b16 %v315
  %v864 = vunpack.c.l.b16 %v316
  %v865 = vunpack.c.h.b16 %v316
  %v866 = vunpack.c.l.b16 %v317
  %v867 = vunpack.c.h.b16 %v317
  %v868 = vunpack.c.l.b16 %v318
  %v869 = vunpack.c.h.b16 %v318
  %v870 = vunpack.c.l.b16 %v319
  %v871 = vunpack.c.h.b16 %v319
  %v872 = vunpack.c.l.b16 %v320
  %v873 = vunpack.c.h.b16 %v320
  %v874 = vunpack.c.l.b16 %v321
  %v875 = vunpack.c.h.b16 %v321
  %v876 = vunpack.c.l.b16 %v322
  %v877 = vunpack.c.h.b16 %v322
  %v878 = vunpack.c.l.b16 %v323
  %v879 = vunpack.c.h.b16 %v323
  %v880 = vunpack.c.l.b16 %v324
  %v881 = vunpack.c.h.b16 %v324
  %v882 = vunpack.c.l.b16 %v325
  %v883 = vunpack.c.h.b16 %v325
  %v884 = vunpack.c.l.b16 %v326
  %v885 = vunpack.c.h.b16 %v326
  %v886 = vunpack.c.l.b16 %v327
  %v887 = vunpack.c.h.b16 %v327
  %v888 = vunpack.c.l.b16 %v328
  %v889 = vunpack.c.h.b16 %v328
  %v890 = vunpack.c.l.b16 %v329
  %v891 = vunpack.c.h.b16 %v329
  %v892 = vunpack.c.l.b16 %v330
  %v893 = vunpack.c.h.b16 %v330
  %v894 = vunpack.c.l.b16 %v331
  %v895 = vunpack.c.h.b16 %v331
  %v896 = vunpack.c.l.b16 %v332
  %v897 = vunpack.c.h.b16 %v332
  %v898 = vunpack.c.l.b16 %v333
  %v899 = vunpack.c.h.b16 %v333
  %v900 = vunpack.c.l.b16 %v334
  %v901 = vunpack.c.h.b16 %v334
  %v902 = vunpack.c.l.b16 %v335
  %v903 = vunpack.c.h.b16 %v335
  %v904 = vunpack.c.l.b16 %v336
  %v905 = vunpack.c.h.b16 %v336
  %v906 = vunpack.c.l.b16 %v337
  %v907 = vunpack.c.h.b16 %v337
  %v908 = vunpack.c.l.b16 %v338
  %v909 = vunpack.c.h.b16 %v338
  %v910 = vunpack.c.l.b16 %v339
  %v911 = vunpack.c.h.b16 %v339
  %v912 = vunpack.c.l.b16 %v340
  %v913 = vunpack.c.h.b16 %v340
  %v914 = vunpack.c.l.b16 %v341
  %v915 = vunpack.c.h.b16 %v341
  %v916 = vunpack.c.l.b16 %v342
  %v917 = vunpack.c.h.b16 %v342
  %v918 = vunpack.c.l.b16 %v343
  %v919 = vunpack.c.h.b16 %v343
  %v920 = vunpack.c.l.b16 %v344
  %v921 = vunpack.c.h.b16 %v344
  %v922 = vunpack.c.l.b16 %v345
  %v923 = vunpack.c.h.b16 %v345
  %v924 = vunpack.c.l.b16 %v346
  %v925 = vunpack.c.h.b16 %v346
  %v926 = vunpack.c.l.b16 %v347
  %v927 = vunpack.c.h.b16 %v347
  %v928 = vunpack.c.l.b16 %v348
  %v929 = vunpack.c.h.b16 %v348
  %v930 = vunpack.c.l.b16 %v349
  %v931 = vunpack.c.h.b16 %v349
  %v932 = vunpack.c.l.b16 %v350
  %v933 = vunpack.c.h.b16 %v350
  %v934 = vunpack.c.l.b16 %v351
  %v935 = vunpack.c.h.b16 %v351
  %v936 = vunpack.c.l.b16 %v352
  %v937 = vunpack.c.h.b16 %v352
  %v938 = vunpack.c.l.b16 %v353
  %v939 = vunpack.c.h.b16 %v353
  %v940 = vunpack.c.l.b16 %v354
  %v941 = vunpack.c.h.b16 %v354
  %v942 = vunpack.c.l.b16 %v355
  %v943 = vunpack.c.h.b16 %v355
  %v944 = vunpack.c.l.b16 %v356
  %v945 = vunpack.c.h.b16 %v356
  %v946 = vunpack.c.l.b16 %v357
  %v947 = vunpack.c.h.b16 %v357
  %v948 = vunpack.c.l.b16 %v358
  %v949 = vunpack.c.h.b16 %v358
  %v950 = vunpack.c.l.b16 %v359
  %v951 = vunpack.c.h.b16 %v359
  %v952 = vunpack.c.l.b16 %v360
  %v953 = vunpack.c.h.b16 %v360
  %v954 = vunpack.c.l.b16 %v361
  %v955 = vunpack.c.h.b16 %v361
  %v956 = vunpack.c.l.b16 %v362
  %v957 = vunpack.c.h.b16 %v362
  %v958 = vunpack.c.l.b16 %v363
  %v959 = vunpack.c.h.b16 %v363
  %v960 = vunpack.c.l.b16 %v364
  %v961 = vunpack.c.h.b16 %v364
  %v962 = vunpack.c.l.b16 %v365
  %v963 = vunpack.c.h.b16 %v365
  %v964 = vunpack.c.l.b16 %v366
  %v965 = vunpack.c.h.b16 %v366
  %v966 = vunpack.c.l.b16 %v367
  %v967 = vunpack.c.h.b16 %v367
  %v968 = vunpack.c.l.b16 %v368
  %v969 = vunpack.c.h.b16 %v368
  %v970 = vunpack.c.l.b16 %v369
  %v971 = vunpack.c.h.b16 %v369
  %v972 = vunpack.c.l.b16 %v370
  %v973 = vunpack.c.h.b16 %v370
  %v974 = vunpack.c.l.b16 %v371
  %v975 = vunpack.c.h.b16 %v371
  %v976 = vunpack.c.l.b16 %v372
  %v977 = vunpack.c.h.b16 %v372
  %v978 = vunpack.c.l.b16 %v373
  %v979 = vunpack.c.h.b16 %v373
  %v980 = vunpack.c.l.b16 %v374
  %v981 = vunpack.c.h.b16 %v374
  %v982 = vunpack.c.l.b16 %v375
  %v983 = vunpack.c.h.b16 %v375
  %v984 = vunpack.c.l.b16 %v376
  %v985 = vunpack.c.h.b16 %v376
  %v986 = vunpack.c.l.b16 %v377
  %v987 = vunpack.c.h.b16 %v377
  %v988 = vunpack.c.l.b16 %v378
  %v989 = vunpack.c.h.b16 %v378
  %v990 = vunpack.c.l.b16 %v379
  %v991 = vunpack.c.h.b16 %v379
  %v992 = vunpack.c.l.b16 %v380
  %v993 = vunpack.c.h.b16 %v380
  %v994 = vunpack.c.l.b16 %v381
  %v995 = vunpack.c.h.b16 %v381
  %v996 = vunpack.c.l.b16 %v382
  %v997 = vunpack.c.h.b16 %v382
  %v998 = vunpack.c.l.b16 %v383
  %v999 = vunpack.c.h.b16 %v383
  %v1000 = vunpack.c.l.b16 %v384
  %v1001 = vunpack.c.h.b16 %v384
  %v1002 = vunpack.c.l.b16 %v385
  %v1003 = vunpack.c.h.b16 %v385
  %v1004 = vunpack.c.l.b16 %v386
  %v1005 = vunpack.c.h.b16 %v386
  %v1006 = vunpack.c.l.b16 %v387
  %v1007 = vunpack.c.h.b16 %v387
  %v1008 = vunpack.c.l.b16 %v388
  %v1009 = vunpack.c.h.b16 %v388
  %v1010 = vunpack.c.l.b16 %v389
  %v1011 = vunpack.c.h.b16 %v389
  %v1012 = vunpack.c.l.b16 %v390
  %v1013 = vunpack.c.h.b16 %v390
  %v1014 = vunpack.c.l.b16 %v391
  %v1015 = vunpack.c.h.b16 %v391
  %v1016 = vunpack.c.l.b16 %v392
  %v1017 = vunpack.c.h.b16 %v392
  %v1018 = vunpack.c.l.b16 %v393
  %v1019 = vunpack.c.h.b16 %v393
  %v1020 = vunpack.c.l.b16 %v394
  %v1021 = vunpack.c.h.b16 %v394
  %v1022 = vunpack.c.l.b16 %v395
  %v1023 = vunpack.c.h.b16 %v395
  %v1024 = vunpack.c.l.b16 %v396
  %v1025 = vunpack.c.h.b16 %v396
  %v1026 = vunpack.c.l.b16 %v397
  %v1027 = vunpack.c.h.b16 %v397
  %v1028 = vunpack.c.l.b16 %v398
  %v1029 = vunpack.c.h.b16 %v398
  %v1030 = vunpack.c.l.b16 %v399
  %v1031 = vunpack.c.h.b16 %v399
  %v1032 = vunpack.c.l.b16 %v400
  %v1033 = vunpack.c.h.b16 %v400
  %v1034 = vunpack.c.l.b16 %v401
  %v1035 = vunpack.c.h.b16 %v401
  %v1036 = vunpack.c.l.b16 %v402
  %v1037 = vunpack.c.h.b16 %v402
  %v1038 = vunpack.c.l.b16 %v403
  %v1039 = vunpack.c.h.b16 %v403
  %v1040 = vunpack.c.l.b16 %v404
  %v1041 = vunpack.c.h.b16 %v404
  %v1042 = vunpack.c.l.b16 %v405
  %v1043 = vunpack.c.h.b16 %v405
  %v1044 = vunpack.c.l.b16 %v406
  %v1045 = vunpack.c.h.b16 %v406
  %v1046 = vunpack.c.l.b16 %v407
  %v1047 = vunpack.c.h.b16 %v407
  %v1048 = vunpack.c.l.b16 %v408
  %v1049 = vunpack.c.h.b16 %v408
  %v1050 = vunpack.c.l.b16 %v409
  %v1051 = vunpack.c.h.b16 %v409
  %v1052 = vunpack.c.l.b16 %v410
  %v1053 = vunpack.c.h.b16 %v410
  %v1054 = vunpack.c.l.b16 %v411
  %v1055 = vunpack.c.h.b16 %v411
  %v1056 = vunpack.c.l.b16 %v412
  %v1057 = vunpack.c.h.b16 %v412
  %v1058 = vunpack.c.l.b16 %v413
  %v1059 = vunpack.c.h.b16 %v413
  %v1060 = vunpack.c.l.b16 %v414
  %v1061 = vunpack.c.h.b16 %v414
  %v1062 = vunpack.c.l.b16 %v415
  %v1063 = vunpack.c.h.b16 %v415
  %v1064 = vunpack.c.l.b16 %v416
  %v1065 = vunpack.c.h.b16 %v416
  %v1066 = vunpack.c.l.b16 %v417
  %v1067 = vunpack.c.h.b16 %v417
  %v1068 = vunpack.c.l.b16 %v418
  %v1069 = vunpack.c.h.b16 %v418
  %v1070 = vunpack.c.l.b16 %v419
  %v1071 = vunpack.c.h.b16 %v419
  %v1072 = vunpack.c.l.b16 %v420
  %v1073 = vunpack.c.h.b16 %v420
  %v1074 = vunpack.c.l.b16 %v421
  %v1075 = vunpack.c.h.b16 %v421
  %v1076 = vunpack.c.l.b16 %v422
  %v1077 = vunpack.c.h.b16 %v422
  %v1078 = vunpack.c.l.b16 %v423
  %v1079 = vunpack.c.h.b16 %v423
  %v1080 = vunpack.c.l.b16 %v424
  %v1081 = vunpack.c.h.b16 %v424
  %v1082 = vunpack.c.l.b16 %v425
  %v1083 = vunpack.c.h.b16 %v425
  %v1084 = vunpack.c.l.b16 %v426
  %v1085 = vunpack.c.h.b16 %v426
  %v1086 = vunpack.c.l.b16 %v427
  %v1087 = vunpack.c.h.b16 %v427
  %v1088 = vunpack.c.l.b16 %v428
  %v1089 = vunpack.c.h.b16 %v428
  %v1090 = vunpack.c.l.b16 %v429
  %v1091 = vunpack.c.h.b16 %v429
  %v1092 = vunpack.c.l.b16 %v430
  %v1093 = vunpack.c.h.b16 %v430
  %v1094 = vunpack.c.l.b16 %v431
  %v1095 = vunpack.c.h.b16 %v431
  %v1096 = vunpack.c.l.b16 %v432
  %v1097 = vunpack.c.h.b16 %v432
  %v1098 = vunpack.c.l.b16 %v433
  %v1099 = vunpack.c.h.b16 %v433
  %v1100 = vunpack.c.l.b16 %v434
  %v1101 = vunpack.c.h.b16 %v434
  %v1102 = vunpack.c.l.b16 %v435
  %v1103 = vunpack.c.h.b16 %v435
  %v1104 = vunpack.c.l.b16 %v436
  %v1105 = vunpack.c.h.b16 %v436
  %v1106 = vunpack.c.l.b16 %v437
  %v1107 = vunpack.c.h.b16 %v437
  %v1108 = vunpack.c.l.b16 %v438
  %v1109 = vunpack.c.h.b16 %v438
  %v1110 = vunpack.c.l.b16 %v439
  %v1111 = vunpack.c.h.b16 %v439
  %v1112 = vunpack.c.l.b16 %v440
  %v1113 = vunpack.c.h.b16 %v440
  %v1114 = vunpack.c.l.b16 %v441
  %v1115 = vunpack.c.h.b16 %v441
  %v1116 = vunpack.c.l.b16 %v442
  %v1117 = vunpack.c.h.b16 %v442
  %v1118 = vunpack.c.l.b16 %v443
  %v1119 = vunpack.c.h.b16 %v443
  %v1120 = vunpack.c.l.b16 %v444
  %v1121 = vunpack.c.h.b16 %v444
  %v1122 = vunpack.c.l.b16 %v445
  %v1123 = vunpack.c.h.b16 %v445
  %v1124 = vunpack.c.l.b16 %v446
  %v1125 = vunpack.c.h.b16 %v446
  %v1126 = vunpack.c.l.b16 %v447
  %v1127 = vunpack.c.h.b16 %v447
  %v1128 = vunpack.c.l.b16 %v448
  %v1129 = vunpack.c.h.b16 %v448
  %v1130 = vunpack.c.l.b16 %v449
  %v1131 = vunpack.c.h.b16 %v449
  %v1132 = vunpack.c.l.b16 %v450
  %v1133 = vunpack.c.h.b16 %v450
  %v1134 = vunpack.c.l.b16 %v451
  %v1135 = vunpack.c.h.b16 %v451
  %v1136 = vunpack.c.l.b16 %v452
  %v1137 = vunpack.c.h.b16 %v452
  %v1138 = vunpack.c.l.b16 %v453
  %v1139 = vunpack.c.h.b16 %v453
  %v1140 = vunpack.c.l.b16 %v454
  %v1141 = vunpack.c.h.b16 %v454
  %v1142 = vunpack.c.l.b16 %v455
  %v1143 = vunpack.c.h.b16 %v455
  %v1144 = vunpack.c.l.b16 %v456
  %v1145 = vunpack.c.h.b16 %v456
  %v1146 = vunpack.c.l.b16 %v457
  %v1147 = vunpack.c.h.b16 %v457
  %v1148 = vunpack.c.l.b16 %v458
  %v1149 = vunpack.c.h.b16 %v458
  %v1150 = vunpack.c.l.b16 %v459
  %v1151 = vunpack.c.h.b16 %v459
  %v1152 = vunpack.c.l.b16 %v460
  %v1153 = vunpack.c.h.b16 %v460
  %v1154 = vunpack.c.l.b16 %v461
  %v1155 = vunpack.c.h.b16 %v461
  %v1156 = vunpack.c.l.b16 %v462
  %v1157 = vunpack.c.h.b16 %v462
  %v1158 = vunpack.c.l.b16 %v463
  %v1159 = vunpack.c.h.b16 %v463
  %v1160 = vunpack.c.l.b16 %v464
  %v1161 = vunpack.c.h.b16 %v464
  %v1162 = vunpack.c.l.b16 %v465
  %v1163 = vunpack.c.h.b16 %v465
  %v1164 = vunpack.c.l.b16 %v466
  %v1165 = vunpack.c.h.b16 %v466
  %v1166 = vunpack.c.l.b16 %v467
  %v1167 = vunpack.c.h.b16 %v467
  %v1168 = vunpack.c.l.b16 %v468
  %v1169 = vunpack.c.h.b16 %v468
  %v1170 = vunpack.c.l.b16 %v469
  %v1171 = vunpack.c.h.b16 %v469
  %v1172 = vunpack.c.l.b16 %v470
  %v1173 = vunpack.c.h.b16 %v470
  %v1174 = vunpack.c.l.b16 %v471
  %v1175 = vunpack.c.h.b16 %v471
  %v1176 = vunpack.c.l.b16 %v472
  %v1177 = vunpack.c.h.b16 %v472
  %v1178 = vunpack.c.l.b16 %v473
  %v1179 = vunpack.c.h.b16 %v473
  %v1180 = vunpack.c.l.b16 %v474
  %v1181 = vunpack.c.h.b16 %v474
  %v1182 = vunpack.c.l.b16 %v475
  %v1183 = vunpack.c.h.b16 %v475
  %v1184 = vunpack.c.l.b16 %v476
  %v1185 = vunpack.c.h.b16 %v476
  %v1186 = vunpack.c.l.b16 %v477
  %v1187 = vunpack.c.h.b16 %v477
  %v1188 = vunpack.c.l.b16 %v478
  %v1189 = vunpack.c.h.b16 %v478
  %v1190 = vunpack.c.l.b16 %v479
  %v1191 = vunpack.c.h.b16 %v479
  %v1192 = vunpack.c.l.b16 %v480
  %v1193 = vunpack.c.h.b16 %v480
  %v1194 = vunpack.c.l.b16 %v481
  %v1195 = vunpack.c.h.b16 %v481
  %v1196 = vunpack.c.l.b16 %v482
  %v1197 = vunpack.c.h.b16 %v482
  %v1198 = vunpack.c.l.b16 %v483
  %v1199 = vunpack.c.h.b16 %v483
  %v1200 = vunpack.c.l.b16 %v484
  %v1201 = vunpack.c.h.b16 %v484
  %v1202 = vunpack.c.l.b16 %v485
  %v1203 = vunpack.c.h.b16 %v485
  %v1204 = vunpack.c.l.b16 %v486
  %v1205 = vunpack.c.h.b16 %v486
  %v1206 = vunpack.c.l.b16 %v487
  %v1207 = vunpack.c.h.b16 %v487
  %v1208 = vunpack.c.l.b16 %v488
  %v1209 = vunpack.c.h.b16 %v488
  %v1210 = vunpack.c.l.b16 %v489
  %v1211 = vunpack.c.h.b16 %v489
  %v1212 = vunpack.c.l.b16 %v490
  %v1213 = vunpack.c.h.b16 %v490
  %v1214 = vunpack.c.l.b16 %v491
  %v1215 = vunpack.c.h.b16 %v491
  %v1216 = vunpack.c.l.b16 %v492
  %v1217 = vunpack.c.h.b16 %v492
  %v1218 = vunpack.c.l.b16 %v493
  %v1219 = vunpack.c.h.b16 %v493
  %v1220 = vunpack.c.l.b16 %v494
  %v1221 = vunpack.c.h.b16 %v494
  %v1222 = vunpack.c.l.b16 %v495
  %v1223 = vunpack.c.h.b16 %v495
  %v1224 = vunpack.c.l.b16 %v496
  %v1225 = vunpack.c.h.b16 %v496
  %v1226 = vunpack.c.l.b16 %v497
  %v1227 = vunpack.c.h.b16 %v497
  %v1228 = vunpack.c.l.b16 %v498
  %v1229 = vunpack.c.h.b16 %v498
  %v1230 = vunpack.c.l.b16 %v499
  %v1231 = vunpack.c.h.b16 %v499
  %v1232 = vunpack.c.l.b16 %v500
  %v1233 = vunpack.c.h.b16 %v500
  %v1234 = vunpack.c.l.b16 %v501
  %v1235 = vunpack.c.h.b16 %v501
  %v1236 = vunpack.c.l.b16 %v502
  %v1237 = vunpack.c.h.b16 %v502
  %v1238 = vunpack.c.l.b16 %v503
  %v1239 = vunpack.c.h.b16 %v503
  %v1240 = vunpack.c.l.b16 %v504
  %v1241 = vunpack.c.h.b16 %v504
  %v1242 = vunpack.c.l.b16 %v505
  %v1243 = vunpack.c.h.b16 %v505
  %v1244 = vunpack.c.l.b16 %v506
  %v1245 = vunpack.c.h.b16 %v506
  %v1246 = vunpack.c.l.b16 %v507
  %v1247 = vunpack.c.h.b16 %v507
  %v1248 = vunpack.c.l.b16 %v508
  %v1249 = vunpack.c.h.b16 %v508
  %v1250 = vunpack.c.l.b16 %v509
  %v1251 = vunpack.c.h.b16 %v509
  %v1252 = vunpack.c.l.b16 %v510
  %v1253 = vunpack.c.h.b16 %v510
  %v1254 = vunpack.c.l.b16 %v511
  %v1255 = vunpack.c.h.b16 %v511
  %v1256 = vunpack.c.l.b16 %v512
  %v1257 = vunpack.c.h.b16 %v512
  %v1258 = vunpack.c.l.b16 %v513
  %v1259 = vunpack.c.h.b16 %v513
  %v1260 = vunpack.c.l.b16 %v514
  %v1261 = vunpack.c.h.b16 %v514
  %v1262 = vunpack.c.l.b16 %v515
  %v1263 = vunpack.c.h.b16 %v515
  %v1264 = vunpack.c.l.b16 %v516
  %v1265 = vunpack.c.h.b16 %v516
  %v1266 = vunpack.c.l.b16 %v517
  %v1267 = vunpack.c.h.b16 %v517
  %v1268 = vunpack.c.l.b16 %v518
  %v1269 = vunpack.c.h.b16 %v518
  %v1270 = vunpack.c.l.b16 %v519
  %v1271 = vunpack.c.h.b16 %v519
  %v1272 = vunpack.c.l.b16 %v520
  %v1273 = vunpack.c.h.b16 %v520
  %v1274 = vunpack.c.l.b16 %v521
  %v1275 = vunpack.c.h.b16 %v521
  %v1276 = vunpack.c.l.b16 %v522
  %v1277 = vunpack.c.h.b16 %v522
  %v1278 = vunpack.c.l.b16 %v523
  %v1279 = vunpack.c.h.b16 %v523
  %v1280 = vunpack.c.l.b16 %v524
  %v1281 = vunpack.c.h.b16 %v524
  %v1282 = vunpack.c.l.b16 %v525
  %v1283 = vunpack.c.h.b16 %v525
  %v1284 = vunpack.c.l.b16 %v526
  %v1285 = vunpack.c.h.b16 %v526
  %v1286 = vunpack.c.l.b16 %v527
  %v1287 = vunpack.c.h.b16 %v527
  %v1288 = vunpack.c.l.b16 %v528
  %v1289 = vunpack.c.h.b16 %v528
  %v1290 = vunpack.c.l.b16 %v529
  %v1291 = vunpack.c.h.b16 %v529
  %v1292 = vunpack.c.l.b16 %v530
  %v1293 = vunpack.c.h.b16 %v530
  %v1294 = vunpack.c.l.b16 %v531
  %v1295 = vunpack.c.h.b16 %v531
  %v1296 = vunpack.c.l.b16 %v532
  %v1297 = vunpack.c.h.b16 %v532
  %v1298 = vunpack.c.l.b16 %v533
  %v1299 = vunpack.c.h.b16 %v533
  %v1300 = vunpack.c.l.b16 %v534
  %v1301 = vunpack.c.h.b16 %v534
  %v1302 = vunpack.c.l.b16 %v535
  %v1303 = vunpack.c.h.b16 %v535
  %v1304 = vunpack.c.l.b16 %v536
  %v1305 = vunpack.c.h.b16 %v536
  %v1306 = vunpack.c.l.b16 %v537
  %v1307 = vunpack.c.h.b16 %v537
  %v1308 = vunpack.c.l.b16 %v538
  %v1309 = vunpack.c.h.b16 %v538
  %v1310 = vunpack.c.l.b16 %v539
  %v1311 = vunpack.c.h.b16 %v539
  %v1312 = vunpack.c.l.b16 %v540
  %v1313 = vunpack.c.h.b16 %v540
  %v1314 = vunpack.c.l.b16 %v541
  %v1315 = vunpack.c.h.b16 %v541
  %v1316 = vunpack.c.l.b16 %v542
  %v1317 = vunpack.c.h.b16 %v542
  %v1318 = vunpack.c.l.b16 %v543
  %v1319 = vunpack.c.h.b16 %v543
  %v1320 = vunpack.c.l.b16 %v544
  %v1321 = vunpack.c.h.b16 %v544
  %v1322 = vunpack.c.l.b16 %v545
  %v1323 = vunpack.c.h.b16 %v545
  %v1324 = vunpack.c.l.b16 %v546
  %v1325 = vunpack.c.h.b16 %v546
  %v1326 = vunpack.c.l.b16 %v547
  %v1327 = vunpack.c.h.b16 %v547
  %v1328 = vunpack.c.l.b16 %v548
  %v1329 = vunpack.c.h.b16 %v548
  %v1330 = vunpack.c.l.b16 %v549
  %v1331 = vunpack.c.h.b16 %v549
  %v1332 = vunpack.c.l.b16 %v550
  %v1333 = vunpack.c.h.b16 %v550
  %v1334 = vunpack.c.l.b16 %v551
  %v1335 = vunpack.c.h.b16 %v551
  %v1336 = vunpack.c.l.b16 %v552
  %v1337 = vunpack.c.h.b16 %v552
  %v1338 = vunpack.c.l.b16 %v553
  %v1339 = vunpack.c.h.b16 %v553
  %v1340 = vpack.c.b16 %v836, %v828
  %v1341 = vpack.c.b16 %v837, %v829
  %v1342 = vpack.c.b16 %v838, %v830
  %v1343 = vpack.c.b16 %v839, %v831
  %v1344 = vpack.c.b16 %v840, %v832
  %v1345 = vpack.c.b16 %v841, %v833
  %v1346 = vpack.c.b16 %v842, %v834
  %v1347 = vpack.c.b16 %v843, %v835
  %v1348 = vpack.c.b16 %v852, %v844
  %v1349 = vpack.c.b16 %v853, %v845
  %v1350 = vpack.c.b16 %v854, %v846
  %v1351 = vpack.c.b16 %v855, %v847
  %v1352 = vpack.c.b16 %v856, %v848
  %v1353 = vpack.c.b16 %v857, %v849
  %v1354 = vpack.c.b16 %v858, %v850
  %v1355 = vpack.c.b16 %v859, %v851
  %v1356 = vpack.c.b16 %v868, %v860
  %v1357 = vpack.c.b16 %v869, %v861
  %v1358 = vpack.c.b16 %v870, %v862
  %v1359 = vpack.c.b16 %v871, %v863
  %v1360 = vpack.c.b16 %v872, %v864
  %v1361 = vpack.c.b16 %v873, %v865
  %v1362 = vpack.c.b16 %v874, %v866
  %v1363 = vpack.c.b16 %v875, %v867
  %v1364 = vpack.c.b16 %v884, %v876
  %v1365 = vpack.c.b16 %v885, %v877
  %v1366 = vpack.c.b16 %v886, %v878
  %v1367 = vpack.c.b16 %v887, %v879
  %v1368 = vpack.c.b16 %v888, %v880
  %v1369 = vpack.c.b16 %v889, %v881
  %v1370 = vpack.c.b16 %v890, %v882
  %v1371 = vpack.c.b16 %v891, %v883
  %v1372 = vpack.c.b16 %v900, %v892
  %v1373 = vpack.c.b16 %v901, %v893
  %v1374 = vpack.c.b16 %v902, %v894
  %v1375 = vpack.c.b16 %v903, %v895
  %v1376 = vpack.c.b16 %v904, %v896
  %v1377 = vpack.c.b16 %v905, %v897
  %v1378 = vpack.c.b16 %v906, %v898
  %v1379 = vpack.c.b16 %v907, %v899
  %v1380 = vpack.c.b16 %v916, %v908
  %v1381 = vpack.c.b16 %v917, %v909
  %v1382 = vpack.c.b16 %v918, %v910
  %v1383 = vpack.c.b16 %v919, %v911
  %v1384 = vpack.c.b16 %v920, %v912
  %v1385 = vpack.c.b16 %v921, %v913
  %v1386 = vpack.c.b16 %v922, %v914
  %v1387 = vpack.c.b16 %v923, %v915
  %v1388 = vpack.c.b16 %v932, %v924
  %v1389 = vpack.c.b16 %v933, %v925
  %v1390 = vpack.c.b16 %v934, %v926
  %v1391 = vpack.c.b16 %v935, %v927
  %v1392 = vpack.c.b16 %v936, %v928
  %v1393 = vpack.c.b16 %v937, %v929
  %v1394 = vpack.c.b16 %v938, %v930
  %v1395 = vpack.c.b16 %v939, %v931
  %v1396 = vpack.c.b16 %v948, %v940
  %v1397 = vpack.c.b16 %v949, %v941
  %v1398 = vpack.c.b16 %v950, %v942
  %v1399 = vpack.c.b16 %v951, %v943
  %v1400 = vpack.c.b16 %v952, %v944
  %v1401 = vpack.c.b16 %v953, %v945
  %v1402 = vpack.c.b16 %v954, %v946
  %v1403 = vpack.c.b16 %v955, %v947
  %v1404 = vpack.c.b16 %v964, %v956
  %v1405 = vpack.c.b16 %v965, %v957
  %v1406 = vpack.c.b16 %v966, %v958
  %v1407 = vpack.c.b16 %v967, %v959
  %v1408 = vpack.c.b16 %v968, %v960
  %v1409 = vpack.c.b16 %v969, %v961
  %v1410 = vpack.c.b16 %v970, %v962
  %v1411 = vpack.c.b16 %v971, %v963
  %v1412 = vpack.c.b16 %v980, %v972
  %v1413 = vpack.c.b16 %v981, %v973
  %v1414 = vpack.c.b16 %v982, %v974
  %v1415 = vpack.c.b16 %v983, %v975
  %v1416 = vpack.c.b16 %v984, %v976
  %v1417 = vpack.c.b16 %v985, %v977
  %v1418 = vpack.c.b16 %v986, %v978
  %v1419 = vpack.c.b16 %v987, %v979
  %v1420 = vpack.c.b16 %v996, %v988
  %v1421 = vpack.c.b16 %v997, %v989
  %v1422 = vpack.c.b16 %v998, %v990
  %v1423 = vpack.c.b16 %v999, %v991
  %v1424 = vpack.c.b16 %v1000, %v992
  %v1425 = vpack.c.b16 %v1001, %v993
  %v1426 = vpack.c.b16 %v1002, %v994
  %v1427 = vpack.c.b16 %v1003, %v995
  %v1428 = vpack.c.b16 %v1012, %v1004
  %v1429 = vpack.c.b16 %v1013, %v1005
  %v1430 = vpack.c.b16 %v1014, %v1006
  %v1431 = vpack.c.b16 %v1015, %v1007
  %v1432 = vpack.c.b16 %v1016, %v1008
  %v1433 = vpack.c.b16 %v1017, %v1009
  %v1434 = vpack.c.b16 %v1018, %v1010
  %v1435 = vpack.c.b16 %v1019, %v1011
  %v1436 = vpack.c.b16 %v1028, %v1020
  %v1437 = vpack.c.b16 %v1029, %v1021
  %v1438 = vpack.c.b16 %v1030, %v1022
  %v1439 = vpack.c.b16 %v1031, %v1023
  %v1440 = vpack.c.b16 %v1032, %v1024
  %v1441 = vpack.c.b16 %v1033, %v1025
  %v1442 = vpack.c.b16 %v1034, %v1026
  %v1443 = vpack.c.b16 %v1035, %v1027
  %v1444 = vpack.c.b16 %v1044, %v1036
  %v1445 = vpack.c.b16 %v1045, %v1037
  %v1446 = vpack.c.b16 %v1046, %v1038
  %v1447 = vpack.c.b16 %v1047, %v1039
  %v1448 = vpack.c.b16 %v1048, %v1040
  %v1449 = vpack.c.b16 %v1049, %v1041
  %v1450 = vpack.c.b16 %v1050, %v1042
  %v1451 = vpack.c.b16 %v1051, %v1043
  %v1452 = vpack.c.b16 %v1060, %v1052
  %v1453 = vpack.c.b16 %v1061, %v1053
  %v1454 = vpack.c.b16 %v1062, %v1054
  %v1455 = vpack.c.b16 %v1063, %v1055
  %v1456 = vpack.c.b16 %v1064, %v1056
  %v1457 = vpack.c.b16 %v1065, %v1057
  %v1458 = vpack.c.b16 %v1066, %v1058
  %v1459 = vpack.c.b16 %v1067, %v1059
  %v1460 = vpack.c.b16 %v1076, %v1068
  %v1461 = vpack.c.b16 %v1077, %v1069
  %v1462 = vpack.c.b16 %v1078, %v1070
  %v1463 = vpack.c.b16 %v1079, %v1071
  %v1464 = vpack.c.b16 %v1080, %v1072
  %v1465 = vpack.c.b16 %v1081, %v1073
  %v1466 = vpack.c.b16 %v1082, %v1074
  %v1467 = vpack.c.b16 %v1083, %v1075
  %v1468 = vpack.c.b16 %v1092, %v1084
  %v1469 = vpack.c.b16 %v1093, %v1085
  %v1470 = vpack.c.b16 %v1094, %v1086
  %v1471 = vpack.c.b16 %v1095, %v1087
  %v1472 = vpack.c.b16 %v1096, %v1088
  %v1473 = vpack.c.b16 %v1097, %v1089
  %v1474 = vpack.c.b16 %v1098, %v1090
  %v1475 = vpack.c.b16 %v1099, %v1091
  %v1476 = vpack.c.b16 %v1108, %v1100
  %v1477 = vpack.c.b16 %v1109, %v1101
  %v1478 = vpack.c.b16 %v1110, %v1102
  %v1479 = vpack.c.b16 %v1111, %v1103
  %v1480 = vpack.c.b16 %v1112, %v1104
  %v1481 = vpack.c.b16 %v1113, %v1105
  %v1482 = vpack.c.b16 %v1114, %v1106
  %v1483 = vpack.c.b16 %v1115, %v1107
  %v1484 = vpack.c.b16 %v1124, %v1116
  %v1485 = vpack.c.b16 %v1125, %v1117
  %v1486 = vpack.c.b16 %v1126, %v1118
  %v1487 = vpack.c.b16 %v1127, %v1119
  %v1488 = vpack.c.b16 %v1128, %v1120
  %v1489 = vpack.c.b16 %v1129, %v1121
  %v1490 = vpack.c.b16 %v1130, %v1122
  %v1491 = vpack.c.b16 %v1131, %v1123
  %v1492 = vpack.c.b16 %v1140, %v1132
  %v1493 = vpack.c.b16 %v1141, %v1133
  %v1494 = vpack.c.b16 %v1142, %v1134
  %v1495 = vpack.c.b16 %v1143, %v1135
  %v1496 = vpack.c.b16 %v1144, %v1136
  %v1497 = vpack.c.b16 %v1145, %v1137
  %v1498 = vpack.c.b16 %v1146, %v1138
  %v1499 = vpack.c.b16 %v1147, %v1139
  %v1500 = vpack.c.b16 %v1156, %v1148
  %v1501 = vpack.c.b16 %v1157, %v1149
  %v1502 = vpack.c.b16 %v1158, %v1150
  %v1503 = vpack.c.b16 %v1159, %v1151
  %v1504 = vpack.c.b16 %v1160, %v1152
  %v1505 = vpack.c.b16 %v1161, %v1153
  %v1506 = vpack.c.b16 %v1162, %v1154
  %v1507 = vpack.c.b16 %v1163, %v1155
  %v1508 = vpack.c.b16 %v1172, %v1164
  %v1509 = vpack.c.b16 %v1173, %v1165
  %v1510 = vpack.c.b16 %v1174, %v1166
  %v1511 = vpack.c.b16 %v1175, %v1167
  %v1512 = vpack.c.b16 %v1176, %v1168
  %v1513 = vpack.c.b16 %v1177, %v1169
  %v1514 = vpack.c.b16 %v1178, %v1170
  %v1515 = vpack.c.b16 %v1179, %v1171
  %v1516 = vpack.c.b16 %v1188, %v1180
  %v1517 = vpack.c.b16 %v1189, %v1181
  %v1518 = vpack.c.b16 %v1190, %v1182
  %v1519 = vpack.c.b16 %v1191, %v1183
  %v1520 = vpack.c.b16 %v1192, %v1184
  %v1521 = vpack.c.b16 %v1193, %v1185
  %v1522 = vpack.c.b16 %v1194, %v1186
  %v1523 = vpack.c.b16 %v1195, %v1187
  %v1524 = vpack.c.b16 %v1204, %v1196
  %v1525 = vpack.c.b16 %v1205, %v1197
  %v1526 = vpack.c.b16 %v1206, %v1198
  %v1527 = vpack.c.b16 %v1207, %v1199
  %v1528 = vpack.c.b16 %v1208, %v1200
  %v1529 = vpack.c.b16 %v1209, %v1201
  %v1530 = vpack.c.b16 %v1210, %v1202
  %v1531 = vpack.c.b16 %v1211, %v1203
  %v1532 = vpack.c.b16 %v1220, %v1212
  %v1533 = vpack.c.b16 %v1221, %v1213
  %v1534 = vpack.c.b16 %v1222, %v1214
  %v1535 = vpack.c.b16 %v1223, %v1215
  %v1536 = vpack.c.b16 %v1224, %v1216
  %v1537 = vpack.c.b16 %v1225, %v1217
  %v1538 = vpack.c.b16 %v1226, %v1218
  %v1539 = vpack.c.b16 %v1227, %v1219
  %v1540 = vpack.c.b16 %v1236, %v1228
  %v1541 = vpack.c.b16 %v1237, %v1229
  %v1542 = vpack.c.b16 %v1238, %v1230
  %v1543 = vpack.c.b16 %v1239, %v1231
  %v1544 = vpack.c.b16 %v1240, %v1232
  %v1545 = vpack.c.b16 %v1241, %v1233
  %v1546 = vpack.c.b16 %v1242, %v1234
  %v1547 = vpack.c.b16 %v1243, %v1235
  %v1548 = vpack.c.b16 %v1252, %v1244
  %v1549 = vpack.c.b16 %v1253, %v1245
  %v1550 = vpack.c.b16 %v1254, %v1246
  %v1551 = vpack.c.b16 %v1255, %v1247
  %v1552 = vpack.c.b16 %v1256, %v1248
  %v1553 = vpack.c.b16 %v1257, %v1249
  %v1554 = vpack.c.b16 %v1258, %v1250
  %v1555 = vpack.c.b16 %v1259, %v1251
  %v1556 = vpack.c.b16 %v1268, %v1260
  %v1557 = vpack.c.b16 %v1269, %v1261
  %v1558 = vpack.c.b16 %v1270, %v1262
  %v1559 = vpack.c.b16 %v1271, %v1263
  %v1560 = vpack.c.b16 %v1272, %v1264
  %v1561 = vpack.c.b16 %v1273, %v1265
  %v1562 = vpack.c.b16 %v1274, %v1266
  %v1563 = vpack.c.b16 %v1275, %v1267
  %v1564 = vpack.c.b16 %v1284, %v1276
  %v1565 = vpack.c.b16 %v1285, %v1277
  %v1566 = vpack.c.b16 %v1286, %v1278
  %v1567 = vpack.c.b16 %v1287, %v1279
  %v1568 = vpack.c.b16 %v1288, %v1280
  %v1569 = vpack.c.b16 %v1289, %v1281
  %v1570 = vpack.c.b16 %v1290, %v1282
  %v1571 = vpack.c.b16 %v1291, %v1283
  %v1572 = vpack.c.b16 %v1300, %v1292
  %v1573 = vpack.c.b16 %v1301, %v1293
  %v1574 = vpack.c.b16 %v1302, %v1294
  %v1575 = vpack.c.b16 %v1303, %v1295
  %v1576 = vpack.c.b16 %v1304, %v1296
  %v1577 = vpack.c.b16 %v1305, %v1297
  %v1578 = vpack.c.b16 %v1306, %v1298
  %v1579 = vpack.c.b16 %v1307, %v1299
  %v1580 = vpack.c.b16 %v1316, %v1308
  %v1581 = vpack.c.b16 %v1317, %v1309
  %v1582 = vpack.c.b16 %v1318, %v1310
  %v1583 = vpack.c.b16 %v1319, %v1311
  %v1584 = vpack.c.b16 %v1320, %v1312
  %v1585 = vpack.c.b16 %v1321, %v1313
  %v1586 = vpack.c.b16 %v1322, %v1314
  %v1587 = vpack.c.b16 %v1323, %v1315
  %v1588 = vpack.c.b16 %v1332, %v1324
  %v1589 = vpack.c.b16 %v1333, %v1325
  %v1590 = vpack.c.b16 %v1334, %v1326
  %v1591 = vpack.c.b16 %v1335, %v1327
  %v1592 = vpack.c.b16 %v1336, %v1328
  %v1593 = vpack.c.b16 %v1337, %v1329
  %v1594 = vpack.c.b16 %v1338, %v1330
  %v1595 = vpack.c.b16 %v1339, %v1331
  %1852 = vmatpush.bf16.msra.mxu0 %v1396
  %1853 = vmatpush.bf16.msra.mxu0 %v1388
  %1854 = vmatpush.bf16.msra.mxu0 %v1380
  %1855 = vmatpush.bf16.msra.mxu0 %v1372
  %1856 = vmatpush.bf16.msra.mxu0 %v1364
  %1857 = vmatpush.bf16.msra.mxu0 %v1356
  %1858 = vmatpush.bf16.msra.mxu0 %v1348
  %1859 = vmatpush.bf16.msra.mxu0 %v1340
  %1860 = vmatmul.bf16.gmra.mxu0 %v294
  %v1861 = vpop.f32.mrf.mxu0
  %v1862 = vadd.f32 %v556, %v1861
  %v1863 = vpop.f32.mrf.mxu0
  %v1864 = vadd.f32 %v556, %v1863
  %1865 = vdwg.mxu0
  %1866 = vmatpush.bf16.msra.mxu0 %v1460
  %1867 = vmatpush.bf16.msra.mxu0 %v1452
  %1868 = vmatpush.bf16.msra.mxu0 %v1444
  %1869 = vmatpush.bf16.msra.mxu0 %v1436
  %1870 = vmatpush.bf16.msra.mxu0 %v1428
  %1871 = vmatpush.bf16.msra.mxu0 %v1420
  %1872 = vmatpush.bf16.msra.mxu0 %v1412
  %1873 = vmatpush.bf16.msra.mxu0 %v1404
  %1874 = vmatmul.bf16.gmra.mxu0 %v295
  %v1875 = vpop.f32.mrf.mxu0
  %v1876 = vadd.f32 %v1862, %v1875
  %v1877 = vpop.f32.mrf.mxu0
  %v1878 = vadd.f32 %v1864, %v1877
  %1879 = vdwg.mxu0
  %1880 = vmatpush.bf16.msra.mxu0 %v1524
  %1881 = vmatpush.bf16.msra.mxu0 %v1516
  %1882 = vmatpush.bf16.msra.mxu0 %v1508
  %1883 = vmatpush.bf16.msra.mxu0 %v1500
  %1884 = vmatpush.bf16.msra.mxu0 %v1492
  %1885 = vmatpush.bf16.msra.mxu0 %v1484
  %1886 = vmatpush.bf16.msra.mxu0 %v1476
  %1887 = vmatpush.bf16.msra.mxu0 %v1468
  %1888 = vmatmul.bf16.gmra.mxu0 %v296
  %v1889 = vpop.f32.mrf.mxu0
  %v1890 = vadd.f32 %v1876, %v1889
  %v1891 = vpop.f32.mrf.mxu0
  %v1892 = vadd.f32 %v1878, %v1891
  %1893 = vdwg.mxu0
  %1894 = vmatpush.bf16.msra.mxu0 %v1588
  %1895 = vmatpush.bf16.msra.mxu0 %v1580
  %1896 = vmatpush.bf16.msra.mxu0 %v1572
  %1897 = vmatpush.bf16.msra.mxu0 %v1564
  %1898 = vmatpush.bf16.msra.mxu0 %v1556
  %1899 = vmatpush.bf16.msra.mxu0 %v1548
  %1900 = vmatpush.bf16.msra.mxu0 %v1540
  %1901 = vmatpush.bf16.msra.mxu0 %v1532
  %1902 = vmatmul.bf16.gmra.mxu0 %v297
  %v1903 = vpop.f32.mrf.mxu0
  %v1904 = vadd.f32 %v1890, %v1903
  %v1905 = vpop.f32.mrf.mxu0
  %v1906 = vadd.f32 %v1892, %v1905
  %1907 = vdwg.mxu0
  %1908 = vmatpush.bf16.msra.mxu0 %v1397
  %1909 = vmatpush.bf16.msra.mxu0 %v1389
  %1910 = vmatpush.bf16.msra.mxu0 %v1381
  %1911 = vmatpush.bf16.msra.mxu0 %v1373
  %1912 = vmatpush.bf16.msra.mxu0 %v1365
  %1913 = vmatpush.bf16.msra.mxu0 %v1357
  %1914 = vmatpush.bf16.msra.mxu0 %v1349
  %1915 = vmatpush.bf16.msra.mxu0 %v1341
  %1916 = vmatmul.bf16.gmra.mxu0 %v294
  %v1917 = vpop.f32.mrf.mxu0
  %v1918 = vadd.f32 %v557, %v1917
  %v1919 = vpop.f32.mrf.mxu0
  %v1920 = vadd.f32 %v557, %v1919
  %1921 = vdwg.mxu0
  %1922 = vmatpush.bf16.msra.mxu0 %v1461
  %1923 = vmatpush.bf16.msra.mxu0 %v1453
  %1924 = vmatpush.bf16.msra.mxu0 %v1445
  %1925 = vmatpush.bf16.msra.mxu0 %v1437
  %1926 = vmatpush.bf16.msra.mxu0 %v1429
  %1927 = vmatpush.bf16.msra.mxu0 %v1421
  %1928 = vmatpush.bf16.msra.mxu0 %v1413
  %1929 = vmatpush.bf16.msra.mxu0 %v1405
  %1930 = vmatmul.bf16.gmra.mxu0 %v295
  %v1931 = vpop.f32.mrf.mxu0
  %v1932 = vadd.f32 %v1918, %v1931
  %v1933 = vpop.f32.mrf.mxu0
  %v1934 = vadd.f32 %v1920, %v1933
  %1935 = vdwg.mxu0
  %1936 = vmatpush.bf16.msra.mxu0 %v1525
  %1937 = vmatpush.bf16.msra.mxu0 %v1517
  %1938 = vmatpush.bf16.msra.mxu0 %v1509
  %1939 = vmatpush.bf16.msra.mxu0 %v1501
  %1940 = vmatpush.bf16.msra.mxu0 %v1493
  %1941 = vmatpush.bf16.msra.mxu0 %v1485
  %1942 = vmatpush.bf16.msra.mxu0 %v1477
  %1943 = vmatpush.bf16.msra.mxu0 %v1469
  %1944 = vmatmul.bf16.gmra.mxu0 %v296
  %v1945 = vpop.f32.mrf.mxu0
  %v1946 = vadd.f32 %v1932, %v1945
  %v1947 = vpop.f32.mrf.mxu0
  %v1948 = vadd.f32 %v1934, %v1947
  %1949 = vdwg.mxu0
  %1950 = vmatpush.bf16.msra.mxu0 %v1589
  %1951 = vmatpush.bf16.msra.mxu0 %v1581
  %1952 = vmatpush.bf16.msra.mxu0 %v1573
  %1953 = vmatpush.bf16.msra.mxu0 %v1565
  %1954 = vmatpush.bf16.msra.mxu0 %v1557
  %1955 = vmatpush.bf16.msra.mxu0 %v1549
  %1956 = vmatpush.bf16.msra.mxu0 %v1541
  %1957 = vmatpush.bf16.msra.mxu0 %v1533
  %1958 = vmatmul.bf16.gmra.mxu0 %v297
  %v1959 = vpop.f32.mrf.mxu0
  %v1960 = vadd.f32 %v1946, %v1959
  %v1961 = vpop.f32.mrf.mxu0
  %v1962 = vadd.f32 %v1948, %v1961
  %1963 = vdwg.mxu0
  %1964 = vmatpush.bf16.msra.mxu0 %v1398
  %1965 = vmatpush.bf16.msra.mxu0 %v1390
  %1966 = vmatpush.bf16.msra.mxu0 %v1382
  %1967 = vmatpush.bf16.msra.mxu0 %v1374
  %1968 = vmatpush.bf16.msra.mxu0 %v1366
  %1969 = vmatpush.bf16.msra.mxu0 %v1358
  %1970 = vmatpush.bf16.msra.mxu0 %v1350
  %1971 = vmatpush.bf16.msra.mxu0 %v1342
  %1972 = vmatmul.bf16.gmra.mxu0 %v294
  %v1973 = vpop.f32.mrf.mxu0
  %v1974 = vadd.f32 %v558, %v1973
  %v1975 = vpop.f32.mrf.mxu0
  %v1976 = vadd.f32 %v558, %v1975
  %1977 = vdwg.mxu0
  %1978 = vmatpush.bf16.msra.mxu0 %v1462
  %1979 = vmatpush.bf16.msra.mxu0 %v1454
  %1980 = vmatpush.bf16.msra.mxu0 %v1446
  %1981 = vmatpush.bf16.msra.mxu0 %v1438
  %1982 = vmatpush.bf16.msra.mxu0 %v1430
  %1983 = vmatpush.bf16.msra.mxu0 %v1422
  %1984 = vmatpush.bf16.msra.mxu0 %v1414
  %1985 = vmatpush.bf16.msra.mxu0 %v1406
  %1986 = vmatmul.bf16.gmra.mxu0 %v295
  %v1987 = vpop.f32.mrf.mxu0
  %v1988 = vadd.f32 %v1974, %v1987
  %v1989 = vpop.f32.mrf.mxu0
  %v1990 = vadd.f32 %v1976, %v1989
  %1991 = vdwg.mxu0
  %1992 = vmatpush.bf16.msra.mxu0 %v1526
  %1993 = vmatpush.bf16.msra.mxu0 %v1518
  %1994 = vmatpush.bf16.msra.mxu0 %v1510
  %1995 = vmatpush.bf16.msra.mxu0 %v1502
  %1996 = vmatpush.bf16.msra.mxu0 %v1494
  %1997 = vmatpush.bf16.msra.mxu0 %v1486
  %1998 = vmatpush.bf16.msra.mxu0 %v1478
  %1999 = vmatpush.bf16.msra.mxu0 %v1470
  %2000 = vmatmul.bf16.gmra.mxu0 %v296
  %v2001 = vpop.f32.mrf.mxu0
  %v2002 = vadd.f32 %v1988, %v2001
  %v2003 = vpop.f32.mrf.mxu0
  %v2004 = vadd.f32 %v1990, %v2003
  %2005 = vdwg.mxu0
  %2006 = vmatpush.bf16.msra.mxu0 %v1590
  %2007 = vmatpush.bf16.msra.mxu0 %v1582
  %2008 = vmatpush.bf16.msra.mxu0 %v1574
  %2009 = vmatpush.bf16.msra.mxu0 %v1566
  %2010 = vmatpush.bf16.msra.mxu0 %v1558
  %2011 = vmatpush.bf16.msra.mxu0 %v1550
  %2012 = vmatpush.bf16.msra.mxu0 %v1542
  %2013 = vmatpush.bf16.msra.mxu0 %v1534
  %2014 = vmatmul.bf16.gmra.mxu0 %v297
  %v2015 = vpop.f32.mrf.mxu0
  %v2016 = vadd.f32 %v2002, %v2015
  %v2017 = vpop.f32.mrf.mxu0
  %v2018 = vadd.f32 %v2004, %v2017
  %2019 = vdwg.mxu0
  %2020 = vmatpush.bf16.msra.mxu0 %v1399
  %2021 = vmatpush.bf16.msra.mxu0 %v1391
  %2022 = vmatpush.bf16.msra.mxu0 %v1383
  %2023 = vmatpush.bf16.msra.mxu0 %v1375
  %2024 = vmatpush.bf16.msra.mxu0 %v1367
  %2025 = vmatpush.bf16.msra.mxu0 %v1359
  %2026 = vmatpush.bf16.msra.mxu0 %v1351
  %2027 = vmatpush.bf16.msra.mxu0 %v1343
  %2028 = vmatmul.bf16.gmra.mxu0 %v294
  %v2029 = vpop.f32.mrf.mxu0
  %v2030 = vadd.f32 %v559, %v2029
  %v2031 = vpop.f32.mrf.mxu0
  %v2032 = vadd.f32 %v559, %v2031
  %2033 = vdwg.mxu0
  %2034 = vmatpush.bf16.msra.mxu0 %v1463
  %2035 = vmatpush.bf16.msra.mxu0 %v1455
  %2036 = vmatpush.bf16.msra.mxu0 %v1447
  %2037 = vmatpush.bf16.msra.mxu0 %v1439
  %2038 = vmatpush.bf16.msra.mxu0 %v1431
  %2039 = vmatpush.bf16.msra.mxu0 %v1423
  %2040 = vmatpush.bf16.msra.mxu0 %v1415
  %2041 = vmatpush.bf16.msra.mxu0 %v1407
  %2042 = vmatmul.bf16.gmra.mxu0 %v295
  %v2043 = vpop.f32.mrf.mxu0
  %v2044 = vadd.f32 %v2030, %v2043
  %v2045 = vpop.f32.mrf.mxu0
  %v2046 = vadd.f32 %v2032, %v2045
  %2047 = vdwg.mxu0
  %2048 = vmatpush.bf16.msra.mxu0 %v1527
  %2049 = vmatpush.bf16.msra.mxu0 %v1519
  %2050 = vmatpush.bf16.msra.mxu0 %v1511
  %2051 = vmatpush.bf16.msra.mxu0 %v1503
  %2052 = vmatpush.bf16.msra.mxu0 %v1495
  %2053 = vmatpush.bf16.msra.mxu0 %v1487
  %2054 = vmatpush.bf16.msra.mxu0 %v1479
  %2055 = vmatpush.bf16.msra.mxu0 %v1471
  %2056 = vmatmul.bf16.gmra.mxu0 %v296
  %v2057 = vpop.f32.mrf.mxu0
  %v2058 = vadd.f32 %v2044, %v2057
  %v2059 = vpop.f32.mrf.mxu0
  %v2060 = vadd.f32 %v2046, %v2059
  %2061 = vdwg.mxu0
  %2062 = vmatpush.bf16.msra.mxu0 %v1591
  %2063 = vmatpush.bf16.msra.mxu0 %v1583
  %2064 = vmatpush.bf16.msra.mxu0 %v1575
  %2065 = vmatpush.bf16.msra.mxu0 %v1567
  %2066 = vmatpush.bf16.msra.mxu0 %v1559
  %2067 = vmatpush.bf16.msra.mxu0 %v1551
  %2068 = vmatpush.bf16.msra.mxu0 %v1543
  %2069 = vmatpush.bf16.msra.mxu0 %v1535
  %2070 = vmatmul.bf16.gmra.mxu0 %v297
  %v2071 = vpop.f32.mrf.mxu0
  %v2072 = vadd.f32 %v2058, %v2071
  %v2073 = vpop.f32.mrf.mxu0
  %v2074 = vadd.f32 %v2060, %v2073
  %2075 = vdwg.mxu0
  %2076 = vmatpush.bf16.msra.mxu0 %v1400
  %2077 = vmatpush.bf16.msra.mxu0 %v1392
  %2078 = vmatpush.bf16.msra.mxu0 %v1384
  %2079 = vmatpush.bf16.msra.mxu0 %v1376
  %2080 = vmatpush.bf16.msra.mxu0 %v1368
  %2081 = vmatpush.bf16.msra.mxu0 %v1360
  %2082 = vmatpush.bf16.msra.mxu0 %v1352
  %2083 = vmatpush.bf16.msra.mxu0 %v1344
  %2084 = vmatmul.bf16.gmra.mxu0 %v294
  %v2085 = vpop.f32.mrf.mxu0
  %v2086 = vadd.f32 %v560, %v2085
  %v2087 = vpop.f32.mrf.mxu0
  %v2088 = vadd.f32 %v560, %v2087
  %2089 = vdwg.mxu0
  %2090 = vmatpush.bf16.msra.mxu0 %v1464
  %2091 = vmatpush.bf16.msra.mxu0 %v1456
  %2092 = vmatpush.bf16.msra.mxu0 %v1448
  %2093 = vmatpush.bf16.msra.mxu0 %v1440
  %2094 = vmatpush.bf16.msra.mxu0 %v1432
  %2095 = vmatpush.bf16.msra.mxu0 %v1424
  %2096 = vmatpush.bf16.msra.mxu0 %v1416
  %2097 = vmatpush.bf16.msra.mxu0 %v1408
  %2098 = vmatmul.bf16.gmra.mxu0 %v295
  %v2099 = vpop.f32.mrf.mxu0
  %v2100 = vadd.f32 %v2086, %v2099
  %v2101 = vpop.f32.mrf.mxu0
  %v2102 = vadd.f32 %v2088, %v2101
  %2103 = vdwg.mxu0
  %2104 = vmatpush.bf16.msra.mxu0 %v1528
  %2105 = vmatpush.bf16.msra.mxu0 %v1520
  %2106 = vmatpush.bf16.msra.mxu0 %v1512
  %2107 = vmatpush.bf16.msra.mxu0 %v1504
  %2108 = vmatpush.bf16.msra.mxu0 %v1496
  %2109 = vmatpush.bf16.msra.mxu0 %v1488
  %2110 = vmatpush.bf16.msra.mxu0 %v1480
  %2111 = vmatpush.bf16.msra.mxu0 %v1472
  %2112 = vmatmul.bf16.gmra.mxu0 %v296
  %v2113 = vpop.f32.mrf.mxu0
  %v2114 = vadd.f32 %v2100, %v2113
  %v2115 = vpop.f32.mrf.mxu0
  %v2116 = vadd.f32 %v2102, %v2115
  %2117 = vdwg.mxu0
  %2118 = vmatpush.bf16.msra.mxu0 %v1592
  %2119 = vmatpush.bf16.msra.mxu0 %v1584
  %2120 = vmatpush.bf16.msra.mxu0 %v1576
  %2121 = vmatpush.bf16.msra.mxu0 %v1568
  %2122 = vmatpush.bf16.msra.mxu0 %v1560
  %2123 = vmatpush.bf16.msra.mxu0 %v1552
  %2124 = vmatpush.bf16.msra.mxu0 %v1544
  %2125 = vmatpush.bf16.msra.mxu0 %v1536
  %2126 = vmatmul.bf16.gmra.mxu0 %v297
  %v2127 = vpop.f32.mrf.mxu0
  %v2128 = vadd.f32 %v2114, %v2127
  %v2129 = vpop.f32.mrf.mxu0
  %v2130 = vadd.f32 %v2116, %v2129
  %2131 = vdwg.mxu0
  %2132 = vmatpush.bf16.msra.mxu0 %v1401
  %2133 = vmatpush.bf16.msra.mxu0 %v1393
  %2134 = vmatpush.bf16.msra.mxu0 %v1385
  %2135 = vmatpush.bf16.msra.mxu0 %v1377
  %2136 = vmatpush.bf16.msra.mxu0 %v1369
  %2137 = vmatpush.bf16.msra.mxu0 %v1361
  %2138 = vmatpush.bf16.msra.mxu0 %v1353
  %2139 = vmatpush.bf16.msra.mxu0 %v1345
  %2140 = vmatmul.bf16.gmra.mxu0 %v294
  %v2141 = vpop.f32.mrf.mxu0
  %v2142 = vadd.f32 %v561, %v2141
  %v2143 = vpop.f32.mrf.mxu0
  %v2144 = vadd.f32 %v561, %v2143
  %2145 = vdwg.mxu0
  %2146 = vmatpush.bf16.msra.mxu0 %v1465
  %2147 = vmatpush.bf16.msra.mxu0 %v1457
  %2148 = vmatpush.bf16.msra.mxu0 %v1449
  %2149 = vmatpush.bf16.msra.mxu0 %v1441
  %2150 = vmatpush.bf16.msra.mxu0 %v1433
  %2151 = vmatpush.bf16.msra.mxu0 %v1425
  %2152 = vmatpush.bf16.msra.mxu0 %v1417
  %2153 = vmatpush.bf16.msra.mxu0 %v1409
  %2154 = vmatmul.bf16.gmra.mxu0 %v295
  %v2155 = vpop.f32.mrf.mxu0
  %v2156 = vadd.f32 %v2142, %v2155
  %v2157 = vpop.f32.mrf.mxu0
  %v2158 = vadd.f32 %v2144, %v2157
  %2159 = vdwg.mxu0
  %2160 = vmatpush.bf16.msra.mxu0 %v1529
  %2161 = vmatpush.bf16.msra.mxu0 %v1521
  %2162 = vmatpush.bf16.msra.mxu0 %v1513
  %2163 = vmatpush.bf16.msra.mxu0 %v1505
  %2164 = vmatpush.bf16.msra.mxu0 %v1497
  %2165 = vmatpush.bf16.msra.mxu0 %v1489
  %2166 = vmatpush.bf16.msra.mxu0 %v1481
  %2167 = vmatpush.bf16.msra.mxu0 %v1473
  %2168 = vmatmul.bf16.gmra.mxu0 %v296
  %v2169 = vpop.f32.mrf.mxu0
  %v2170 = vadd.f32 %v2156, %v2169
  %v2171 = vpop.f32.mrf.mxu0
  %v2172 = vadd.f32 %v2158, %v2171
  %2173 = vdwg.mxu0
  %2174 = vmatpush.bf16.msra.mxu0 %v1593
  %2175 = vmatpush.bf16.msra.mxu0 %v1585
  %2176 = vmatpush.bf16.msra.mxu0 %v1577
  %2177 = vmatpush.bf16.msra.mxu0 %v1569
  %2178 = vmatpush.bf16.msra.mxu0 %v1561
  %2179 = vmatpush.bf16.msra.mxu0 %v1553
  %2180 = vmatpush.bf16.msra.mxu0 %v1545
  %2181 = vmatpush.bf16.msra.mxu0 %v1537
  %2182 = vmatmul.bf16.gmra.mxu0 %v297
  %v2183 = vpop.f32.mrf.mxu0
  %v2184 = vadd.f32 %v2170, %v2183
  %v2185 = vpop.f32.mrf.mxu0
  %v2186 = vadd.f32 %v2172, %v2185
  %2187 = vdwg.mxu0
  %2188 = vmatpush.bf16.msra.mxu0 %v1402
  %2189 = vmatpush.bf16.msra.mxu0 %v1394
  %2190 = vmatpush.bf16.msra.mxu0 %v1386
  %2191 = vmatpush.bf16.msra.mxu0 %v1378
  %2192 = vmatpush.bf16.msra.mxu0 %v1370
  %2193 = vmatpush.bf16.msra.mxu0 %v1362
  %2194 = vmatpush.bf16.msra.mxu0 %v1354
  %2195 = vmatpush.bf16.msra.mxu0 %v1346
  %2196 = vmatmul.bf16.gmra.mxu0 %v294
  %v2197 = vpop.f32.mrf.mxu0
  %v2198 = vadd.f32 %v562, %v2197
  %v2199 = vpop.f32.mrf.mxu0
  %v2200 = vadd.f32 %v562, %v2199
  %2201 = vdwg.mxu0
  %2202 = vmatpush.bf16.msra.mxu0 %v1466
  %2203 = vmatpush.bf16.msra.mxu0 %v1458
  %2204 = vmatpush.bf16.msra.mxu0 %v1450
  %2205 = vmatpush.bf16.msra.mxu0 %v1442
  %2206 = vmatpush.bf16.msra.mxu0 %v1434
  %2207 = vmatpush.bf16.msra.mxu0 %v1426
  %2208 = vmatpush.bf16.msra.mxu0 %v1418
  %2209 = vmatpush.bf16.msra.mxu0 %v1410
  %2210 = vmatmul.bf16.gmra.mxu0 %v295
  %v2211 = vpop.f32.mrf.mxu0
  %v2212 = vadd.f32 %v2198, %v2211
  %v2213 = vpop.f32.mrf.mxu0
  %v2214 = vadd.f32 %v2200, %v2213
  %2215 = vdwg.mxu0
  %2216 = vmatpush.bf16.msra.mxu0 %v1530
  %2217 = vmatpush.bf16.msra.mxu0 %v1522
  %2218 = vmatpush.bf16.msra.mxu0 %v1514
  %2219 = vmatpush.bf16.msra.mxu0 %v1506
  %2220 = vmatpush.bf16.msra.mxu0 %v1498
  %2221 = vmatpush.bf16.msra.mxu0 %v1490
  %2222 = vmatpush.bf16.msra.mxu0 %v1482
  %2223 = vmatpush.bf16.msra.mxu0 %v1474
  %2224 = vmatmul.bf16.gmra.mxu0 %v296
  %v2225 = vpop.f32.mrf.mxu0
  %v2226 = vadd.f32 %v2212, %v2225
  %v2227 = vpop.f32.mrf.mxu0
  %v2228 = vadd.f32 %v2214, %v2227
  %2229 = vdwg.mxu0
  %2230 = vmatpush.bf16.msra.mxu0 %v1594
  %2231 = vmatpush.bf16.msra.mxu0 %v1586
  %2232 = vmatpush.bf16.msra.mxu0 %v1578
  %2233 = vmatpush.bf16.msra.mxu0 %v1570
  %2234 = vmatpush.bf16.msra.mxu0 %v1562
  %2235 = vmatpush.bf16.msra.mxu0 %v1554
  %2236 = vmatpush.bf16.msra.mxu0 %v1546
  %2237 = vmatpush.bf16.msra.mxu0 %v1538
  %2238 = vmatmul.bf16.gmra.mxu0 %v297
  %v2239 = vpop.f32.mrf.mxu0
  %v2240 = vadd.f32 %v2226, %v2239
  %v2241 = vpop.f32.mrf.mxu0
  %v2242 = vadd.f32 %v2228, %v2241
  %2243 = vdwg.mxu0
  %2244 = vmatpush.bf16.msra.mxu0 %v1403
  %2245 = vmatpush.bf16.msra.mxu0 %v1395
  %2246 = vmatpush.bf16.msra.mxu0 %v1387
  %2247 = vmatpush.bf16.msra.mxu0 %v1379
  %2248 = vmatpush.bf16.msra.mxu0 %v1371
  %2249 = vmatpush.bf16.msra.mxu0 %v1363
  %2250 = vmatpush.bf16.msra.mxu0 %v1355
  %2251 = vmatpush.bf16.msra.mxu0 %v1347
  %2252 = vmatmul.bf16.gmra.mxu0 %v294
  %v2253 = vpop.f32.mrf.mxu0
  %v2254 = vadd.f32 %v563, %v2253
  %v2255 = vpop.f32.mrf.mxu0
  %v2256 = vadd.f32 %v563, %v2255
  %2257 = vdwg.mxu0
  %2258 = vmatpush.bf16.msra.mxu0 %v1467
  %2259 = vmatpush.bf16.msra.mxu0 %v1459
  %2260 = vmatpush.bf16.msra.mxu0 %v1451
  %2261 = vmatpush.bf16.msra.mxu0 %v1443
  %2262 = vmatpush.bf16.msra.mxu0 %v1435
  %2263 = vmatpush.bf16.msra.mxu0 %v1427
  %2264 = vmatpush.bf16.msra.mxu0 %v1419
  %2265 = vmatpush.bf16.msra.mxu0 %v1411
  %2266 = vmatmul.bf16.gmra.mxu0 %v295
  %v2267 = vpop.f32.mrf.mxu0
  %v2268 = vadd.f32 %v2254, %v2267
  %v2269 = vpop.f32.mrf.mxu0
  %v2270 = vadd.f32 %v2256, %v2269
  %2271 = vdwg.mxu0
  %2272 = vmatpush.bf16.msra.mxu0 %v1531
  %2273 = vmatpush.bf16.msra.mxu0 %v1523
  %2274 = vmatpush.bf16.msra.mxu0 %v1515
  %2275 = vmatpush.bf16.msra.mxu0 %v1507
  %2276 = vmatpush.bf16.msra.mxu0 %v1499
  %2277 = vmatpush.bf16.msra.mxu0 %v1491
  %2278 = vmatpush.bf16.msra.mxu0 %v1483
  %2279 = vmatpush.bf16.msra.mxu0 %v1475
  %2280 = vmatmul.bf16.gmra.mxu0 %v296
  %v2281 = vpop.f32.mrf.mxu0
  %v2282 = vadd.f32 %v2268, %v2281
  %v2283 = vpop.f32.mrf.mxu0
  %v2284 = vadd.f32 %v2270, %v2283
  %2285 = vdwg.mxu0
  %2286 = vmatpush.bf16.msra.mxu0 %v1595
  %2287 = vmatpush.bf16.msra.mxu0 %v1587
  %2288 = vmatpush.bf16.msra.mxu0 %v1579
  %2289 = vmatpush.bf16.msra.mxu0 %v1571
  %2290 = vmatpush.bf16.msra.mxu0 %v1563
  %2291 = vmatpush.bf16.msra.mxu0 %v1555
  %2292 = vmatpush.bf16.msra.mxu0 %v1547
  %2293 = vmatpush.bf16.msra.mxu0 %v1539
  %2294 = vmatmul.bf16.gmra.mxu0 %v297
  %v2295 = vpop.f32.mrf.mxu0
  %v2296 = vadd.f32 %v2282, %v2295
  %v2297 = vpop.f32.mrf.mxu0
  %v2298 = vadd.f32 %v2284, %v2297
  %2299 = vdwg.mxu0
  %v2300 = vtanh.pop %v1904
  %v2301 = vtanh.pop %v1960
  %v2302 = vtanh.pop %v2016
  %v2303 = vtanh.pop %v2072
  %v2304 = vtanh.pop %v2128
  %v2305 = vtanh.pop %v2184
  %v2306 = vtanh.pop %v2240
  %v2307 = vtanh.pop %v2296
  %v2308 = vtanh.pop %v1906
  %v2309 = vtanh.pop %v1962
  %v2310 = vtanh.pop %v2018
  %v2311 = vtanh.pop %v2074
  %v2312 = vtanh.pop %v2130
  %v2313 = vtanh.pop %v2186
  %v2314 = vtanh.pop %v2242
  %v2315 = vtanh.pop %v2298
  %v2316 = vpack.c.bf16 %v2301, %v2300
  %v2317 = vpack.c.bf16 %v2303, %v2302
  %v2318 = vpack.c.bf16 %v2305, %v2304
  %v2319 = vpack.c.bf16 %v2307, %v2306
  %v2320 = vpack.c.bf16 %v2309, %v2308
  %v2321 = vpack.c.bf16 %v2311, %v2310
  %v2322 = vpack.c.bf16 %v2313, %v2312
  %v2323 = vpack.c.bf16 %v2315, %v2314
  %2324 = vst [vmem:[%s5] sm:$0xff] %v2316
  %2325 = vst [vmem:[%s5 + $0x8] sm:$0xff] %v2317
  %2326 = vst [vmem:[%s5 + $0x10] sm:$0xff] %v2318
  %2327 = vst [vmem:[%s5 + $0x18] sm:$0xff] %v2319
  %2328 = vst [vmem:[%s5 + $0x20] sm:$0xff] %v2320
  %2329 = vst [vmem:[%s5 + $0x28] sm:$0xff] %v2321
  %2330 = vst [vmem:[%s5 + $0x30] sm:$0xff] %v2322
  %2331 = vst [vmem:[%s5 + $0x38] sm:$0xff] %v2323
  // Predicated region
  $region22: #{fully_connected_generator_forward.3} parent=0 // pred_check
    _
  $region23: #{fully_connected_generator_forward.3} parent=0 // pred_check_branch
    %2333 = sbr.rel (0) target = $region25
  $region24: #{fully_connected_generator_forward.3} parent=0 // pred_region
    _
  $region25: #{fully_connected_generator_forward.3} parent=0 // pred_fallthru
    _
  // Predicated region
  $region26: #{fully_connected_generator_forward.3} parent=0 // pred_check
    _
  $region27: #{fully_connected_generator_forward.3} parent=0 // pred_check_branch
    %2335 = sbr.rel (0) target = $region29
  $region28: #{fully_connected_generator_forward.3} parent=0 // pred_region
    _
  $region29: #{fully_connected_generator_forward.3} parent=0 // pred_fallthru
    _

</llo_original>
